<compile_context>
chip_gen: v7x
topology: tpu7x:2x2x1
jax: 0.10.0
libtpu: 0.0.40
codegen_flags: <defaults>
</compile_context>

<pallas_src>
import jax
import jax.numpy as jnp
from jax.experimental import pallas as pl
from jax.experimental.pallas import tpu as pltpu

BN_EPS = 1e-5
PAD_OUT = 128   # lane-dense padded width of the final Linear / output


def head_mlp_kernel(
    offs_ref,    # SMEM (B*n_off,) int32 — scalar-prefetched gather offsets (flattened)
    bert_ref,    # HBM  (B, S, H)        — memory_space=pl.ANY (manual DMA gather)
    w1_ref,      # VMEM (n_off*H, MID) bf16 — BN1 folded into Linear1, resident
    b1_ref,      # VMEM (1, MID) f32        — folded bias 1
    w2_ref,      # VMEM (MID, PAD_OUT) bf16 — BN2 folded into Linear2, zero-padded
    b2_ref,      # VMEM (1, PAD_OUT) f32    — folded bias 2, zero-padded
    o_ref,       # VMEM (TB, PAD_OUT) f32   — output tile
    xbuf,        # VMEM (2, TB, n_off*H) scratch, bert dtype — double-buffered gather
    sem,         # DMA semaphores, one per slot
):
    i = pl.program_id(0)
    nt = pl.num_programs(0)
    B, S, H = bert_ref.shape
    _, TB, in1 = xbuf.shape
    n_off = in1 // H
    # Static unroll of the DMA-issue loop so address math + descriptor pushes pipeline.
    unroll = 8 if TB % 8 == 0 else (4 if TB % 4 == 0 else (2 if TB % 2 == 0 else 1))

    def issue_gather(tile, slot):
        # Issue exactly TB * n_off row copies (H elements each) into xbuf[slot].
        # Rows past the batch end are clamped to B-1 (duplicate gathers); their matmul
        # results are discarded by Pallas' boundary masking of the output block.  The
        # constant copy count keeps the per-tile semaphore byte total fixed at exactly
        # size(xbuf[slot]), which makes the single per-tile wait below exact.
        @pl.loop(0, TB // unroll)
        def _(t):
            for u in range(unroll):                     # static unroll
                r = t * unroll + u
                b = jnp.minimum(tile * TB + r, B - 1)
                for j in range(n_off):                  # static unroll (n_off == 3)
                    off = offs_ref[b * n_off + j]
                    pltpu.make_async_copy(
                        bert_ref.at[b, off],                 # (H,) row in HBM
                        xbuf.at[slot, r, pl.ds(j * H, H)],   # (H,) lane-aligned VMEM slot
                        sem.at[slot],
                    ).start()

    slot = i % 2

    # Prime the pipeline on the first tile.
    @pl.when(i == 0)
    def _():
        issue_gather(0, 0)

    # Prefetch the NEXT tile's gather while this tile computes (cross-step overlap).
    @pl.when(i + 1 < nt)
    def _():
        issue_gather(i + 1, 1 - slot)

    # Single wait per tile: the descriptor covers the whole slot (same dtype / element
    # count as the TB*n_off issued copies), so its byte count equals the sum of all
    # copies signaled on sem[slot].
    pltpu.make_async_copy(xbuf.at[slot], xbuf.at[slot], sem.at[slot]).wait()

    # ---- folded MLP: (BN1·Linear1) -> ReLU -> (BN2·Linear2)  (Dropout = identity) ----
    x = xbuf[slot].astype(jnp.bfloat16)               # bf16 into the MXU, f32 accumulate
    h = jnp.dot(x, w1_ref[...], preferred_element_type=jnp.float32) + b1_ref[...]
    h = jnp.maximum(h, 0.0)
    out = jnp.dot(h.astype(jnp.bfloat16), w2_ref[...],
                  preferred_element_type=jnp.float32) + b2_ref[...]
    o_ref[...] = out.astype(o_ref.dtype)


def _fold_params(params):
    """Fold eval-mode BatchNorm into the adjacent Linear; pad final Linear to 128 lanes."""
    (g1, b1, m1, v1, w1, bias1, g2, b2, m2, v2, w2, bias2) = params

    s1 = g1 * jax.lax.rsqrt(v1 + BN_EPS)                       # (1, 3H)
    w1f = (w1 * s1.T).astype(jnp.bfloat16)                     # (3H, MID), bf16 for MXU
    b1f = ((b1 - m1 * s1) @ w1 + bias1).astype(jnp.float32)    # (1, MID)

    s2 = g2 * jax.lax.rsqrt(v2 + BN_EPS)                       # (1, MID)
    w2f = (w2 * s2.T).astype(jnp.bfloat16)                     # (MID, out), bf16 for MXU
    b2f = ((b2 - m2 * s2) @ w2 + bias2).astype(jnp.float32)    # (1, out)

    mid, out_dim = w2.shape
    w2p = jnp.zeros((mid, PAD_OUT), jnp.bfloat16).at[:, :out_dim].set(w2f)
    b2p = jnp.zeros((1, PAD_OUT), jnp.float32).at[:, :out_dim].set(b2f)
    return w1f, b1f, w2p, b2p, out_dim


def head_forward(bert_outputs, offsets, params, *, batch_tile=256):
    """Full Head.forward (eval mode): fused gather + BN-folded MLP in one Pallas kernel."""
    B, S, H = bert_outputs.shape
    n_off = offsets.shape[1]                       # 3 offsets per example (A, B, Pronoun)
    in1 = n_off * H
    mid = params[4].shape[1]                       # 512
    assert params[4].shape[0] == in1

    w1f, b1f, w2p, b2p, out_dim = _fold_params(params)

    TB = max(1, min(batch_tile, B))                # batch tile (M dim of the first matmul)
    if TB >= 8:
        TB -= TB % 8                               # sublane-aligned M dim + unrollable loop
    nt = pl.cdiv(B, TB)
    x_dtype = bert_outputs.dtype
    itemsize = jnp.dtype(x_dtype).itemsize

    grid_spec = pltpu.PrefetchScalarGridSpec(
        num_scalar_prefetch=1,                     # offsets -> SMEM, drives in-kernel gather
        grid=(nt,),
        in_specs=[
            pl.BlockSpec(memory_space=pl.ANY),                    # bert_outputs stays in HBM
            # Folded weights/biases: whole-array, single-buffered VMEM residents.
            pl.BlockSpec(memory_space=pltpu.MemorySpace.VMEM),    # w1f
            pl.BlockSpec(memory_space=pltpu.MemorySpace.VMEM),    # b1f
            pl.BlockSpec(memory_space=pltpu.MemorySpace.VMEM),    # w2p
            pl.BlockSpec(memory_space=pltpu.MemorySpace.VMEM),    # b2p
        ],
        out_specs=pl.BlockSpec((TB, PAD_OUT), lambda i, offs: (i, 0)),
        scratch_shapes=[
            pltpu.VMEM((2, TB, in1), x_dtype),     # double-buffered gathered feature tiles
            pltpu.SemaphoreType.DMA((2,)),         # one gather-DMA semaphore per slot
        ],
    )

    flops = 2 * B * (in1 * mid + mid * PAD_OUT)
    bytes_accessed = (B * in1 * itemsize          # gathered rows (read)
                      + in1 * mid * 2             # w1f (bf16)
                      + mid * PAD_OUT * 2         # w2p (bf16)
                      + B * PAD_OUT * 4)          # padded output (write)

    # VMEM budget: double-buffered gather scratch + resident weights + output blocks.
    vmem_need = (2 * TB * in1 * itemsize
                 + in1 * mid * 2 + mid * PAD_OUT * 2 + (mid + PAD_OUT) * 4
                 + 2 * TB * PAD_OUT * 4)
    vmem_limit = int(min(96 * 1024 * 1024, max(32 * 1024 * 1024, 2 * vmem_need)))

    out_padded = pl.pallas_call(
        head_mlp_kernel,
        grid_spec=grid_spec,
        out_shape=jax.ShapeDtypeStruct((B, PAD_OUT), jnp.float32),
        compiler_params=pltpu.CompilerParams(
            # Sequential grid: the cross-step gather prefetch chain relies on tile i+1
            # being issued on the same core that computes it.
            dimension_semantics=("arbitrary",),
            vmem_limit_bytes=vmem_limit,
        ),
        cost_estimate=pl.CostEstimate(
            flops=flops, transcendentals=0, bytes_accessed=bytes_accessed),
    )(offsets.reshape(-1).astype(jnp.int32),
      bert_outputs, w1f, b1f, w2p, b2p)

    return out_padded[:, :out_dim]                 # drop the lane padding -> (B, 3)


def init_head_params(key, hidden, nontrivial_bn_stats=True):
    """Parameters matching Head.__init__ (BN weight=1/bias=0, kaiming Linear, zero bias).

    Running BN stats are optionally randomized (as after training) so the BN-folding
    path is genuinely exercised by the correctness check.
    """
    in1 = hidden * 3
    mid = 512
    out = 3
    k1, k2, k3, k4, k5, k6 = jax.random.split(key, 6)

    g1 = jnp.ones((1, in1), jnp.float32)
    b1 = jnp.zeros((1, in1), jnp.float32)
    g2 = jnp.ones((1, mid), jnp.float32)
    b2 = jnp.zeros((1, mid), jnp.float32)
    if nontrivial_bn_stats:
        m1 = 0.1 * jax.random.normal(k3, (1, in1), jnp.float32)
        v1 = jax.random.uniform(k4, (1, in1), jnp.float32, minval=0.5, maxval=1.5)
        m2 = 0.1 * jax.random.normal(k5, (1, mid), jnp.float32)
        v2 = jax.random.uniform(k6, (1, mid), jnp.float32, minval=0.5, maxval=1.5)
    else:
        m1 = jnp.zeros((1, in1), jnp.float32); v1 = jnp.ones((1, in1), jnp.float32)
        m2 = jnp.zeros((1, mid), jnp.float32); v2 = jnp.ones((1, mid), jnp.float32)

    # Linear weights stored transposed (in, out) so the kernel does x @ W.
    w1 = jax.random.normal(k1, (in1, mid), jnp.float32) * jnp.sqrt(2.0 / in1)
    bias1 = jnp.zeros((1, mid), jnp.float32)
    w2 = jax.random.normal(k2, (mid, out), jnp.float32) * jnp.sqrt(2.0 / mid)
    bias2 = jnp.zeros((1, out), jnp.float32)

    return (g1, b1, m1, v1, w1, bias1, g2, b2, m2, v2, w2, bias2)


def reference_forward(bert_outputs, offsets, params):
    """Pure-JAX f32 reference of the same eval-mode forward (unfolded BN)."""
    B, S, H = bert_outputs.shape
    idx = jnp.broadcast_to(offsets[:, :, None], (B, offsets.shape[1], H))
    x = jnp.take_along_axis(bert_outputs, idx, axis=1).reshape(B, -1)
    (g1, b1, m1, v1, w1, bias1, g2, b2, m2, v2, w2, bias2) = params
    h = (x - m1) * jax.lax.rsqrt(v1 + BN_EPS) * g1 + b1
    h = jnp.maximum(h @ w1 + bias1, 0.0)
    h = (h - m2) * jax.lax.rsqrt(v2 + BN_EPS) * g2 + b2
    return h @ w2 + bias2


if __name__ == "__main__":
    # Small shapes: batch=8, seq=16, bert_hidden_size=128 (module parameterizes H).
    B, S, H = 8, 16, 128

    key = jax.random.PRNGKey(0)
    k_x, k_off, k_p = jax.random.split(key, 3)

    bert_outputs = jax.random.normal(k_x, (B, S, H), jnp.float32)
    offsets = jax.random.randint(k_off, (B, 3), 0, S, dtype=jnp.int32)
    params = init_head_params(k_p, H)

    out = head_forward(bert_outputs, offsets, params)
    out = jax.block_until_ready(out)

    ref = reference_forward(bert_outputs, offsets, params)
    assert out.shape == (B, 3)
    # bf16 feeds into both matmuls -> moderate tolerance vs the pure-f32 reference.
    assert jnp.allclose(out, ref, atol=5e-2, rtol=5e-2), (
        f"mismatch vs reference: max abs diff {jnp.max(jnp.abs(out - ref))}")

    print("KERNEL_OK")
</pallas_src>

<mosaic_0001>
module attributes {stable_mosaic.version = 11 : i64} {
  func.func @head_mlp_kernel(%arg0: i32, %arg1: memref<24xi32, #tpu.memory_space<smem>>, %arg2: memref<8x16x128xf32, #tpu.memory_space<any>>, %arg3: memref<384x512xbf16, #tpu.memory_space<vmem>>, %arg4: memref<1x512xf32, #tpu.memory_space<vmem>>, %arg5: memref<512x128xbf16, #tpu.memory_space<vmem>>, %arg6: memref<1x128xf32, #tpu.memory_space<vmem>>, %arg7: memref<8x128xf32, #tpu.memory_space<vmem>>, %arg8: memref<2x8x384xf32, #tpu.memory_space<vmem>>, %arg9: memref<2x!tpu.dma_semaphore, #tpu.memory_space<semaphore_mem>>) attributes {dimension_semantics = [#tpu.dimension_semantics<arbitrary>], iteration_bounds = array<i64: 1>, scalar_prefetch = 1 : i64, scratch_operands = 2 : i64, tpu.core_type = #tpu.core_type<tc>, window_params = [{}, {pipeline_mode = #tpu.pipeline_mode<synchronous>, transform_indices = @transform_1, window_bounds = array<i64: 384, 512>}, {pipeline_mode = #tpu.pipeline_mode<synchronous>, transform_indices = @transform_2, window_bounds = array<i64: 1, 512>}, {pipeline_mode = #tpu.pipeline_mode<synchronous>, transform_indices = @transform_3, window_bounds = array<i64: 512, 128>}, {pipeline_mode = #tpu.pipeline_mode<synchronous>, transform_indices = @transform_4, window_bounds = array<i64: 1, 128>}, {transform_indices = @transform_5, window_bounds = array<i64: 8, 128>}]} {
    %c2_i32 = arith.constant 2 : i32
    %c0_i32 = arith.constant 0 : i32
    %0 = arith.cmpi eq, %c2_i32, %c0_i32 : i32
    %c1_i32 = arith.constant 1 : i32
    %1 = arith.select %0, %c1_i32, %c2_i32 : i32
    %2 = arith.remsi %arg0, %1 : i32
    %c0_i32_0 = arith.constant 0 : i32
    %3 = arith.cmpi ne, %2, %c0_i32_0 : i32
    %c0_i32_1 = arith.constant 0 : i32
    %4 = arith.cmpi slt, %2, %c0_i32_1 : i32
    %c0_i32_2 = arith.constant 0 : i32
    %5 = arith.cmpi slt, %1, %c0_i32_2 : i32
    %6 = arith.xori %4, %5 : i1
    %7 = arith.andi %6, %3 : i1
    %8 = arith.addi %2, %1 : i32
    %9 = arith.select %7, %8, %2 : i32
    %c0_i32_3 = arith.constant 0 : i32
    %10 = arith.cmpi eq, %arg0, %c0_i32_3 : i32
    %11 = arith.extui %10 : i1 to i32
    %c0_i32_4 = arith.constant 0 : i32
    %12 = arith.cmpi ne, %11, %c0_i32_4 : i32
    scf.if %12 {
      %c0_i32_25 = arith.constant 0 : i32
      %c1_i32_26 = arith.constant 1 : i32
      %41 = arith.muli %c0_i32_25, %c1_i32_26 : i32
      %c0_i32_27 = arith.constant 0 : i32
      %42 = arith.addi %c0_i32_27, %41 : i32
      %c8_i32 = arith.constant 8 : i32
      %43 = arith.muli %42, %c8_i32 : i32
      %c0_i32_28 = arith.constant 0 : i32
      %44 = arith.addi %43, %c0_i32_28 : i32
      %c0_i32_29 = arith.constant 0 : i32
      %45 = arith.addi %c0_i32_29, %44 : i32
      %c7_i32 = arith.constant 7 : i32
      %46 = arith.minsi %45, %c7_i32 : i32
      %c3_i32 = arith.constant 3 : i32
      %47 = arith.muli %46, %c3_i32 : i32
      %c0_i32_30 = arith.constant 0 : i32
      %48 = arith.addi %47, %c0_i32_30 : i32
      %49 = arith.index_cast %48 : i32 to index
      %50 = memref.load %arg1[%49] : memref<24xi32, #tpu.memory_space<smem>>
      %c0_i32_31 = arith.constant 0 : i32
      %c0_i32_32 = arith.constant 0 : i32
      %c0_i32_33 = arith.constant 0 : i32
      %51 = tpu.memref_slice %arg2[%46, %50, %c0_i32_33] : memref<8x16x128xf32, #tpu.memory_space<any>> -> memref<1x1x128xf32, #tpu.memory_space<any>>
      %52 = tpu.memref_squeeze %51 : memref<1x1x128xf32, #tpu.memory_space<any>> -> memref<128xf32, #tpu.memory_space<any>>
      %c0_i32_34 = arith.constant 0 : i32
      %53 = tpu.memref_slice %arg8[%c0_i32_31, %44, %c0_i32_34] : memref<2x8x384xf32, #tpu.memory_space<vmem>> -> memref<1x1x128xf32, #tpu.memory_space<vmem>>
      %54 = tpu.memref_squeeze %53 : memref<1x1x128xf32, #tpu.memory_space<vmem>> -> memref<128xf32, #tpu.memory_space<vmem>>
      %55 = tpu.memref_slice %arg9[%c0_i32_32] : memref<2x!tpu.dma_semaphore, #tpu.memory_space<semaphore_mem>> -> memref<1x!tpu.dma_semaphore, #tpu.memory_space<semaphore_mem>>
      %56 = tpu.memref_squeeze %55 : memref<1x!tpu.dma_semaphore, #tpu.memory_space<semaphore_mem>> -> memref<!tpu.dma_semaphore, #tpu.memory_space<semaphore_mem>>
      tpu.enqueue_dma source(%52 : memref<128xf32, #tpu.memory_space<any>>) target(%54 : memref<128xf32, #tpu.memory_space<vmem>>) target_semaphore(%56 : memref<!tpu.dma_semaphore, #tpu.memory_space<semaphore_mem>>)
      %c3_i32_35 = arith.constant 3 : i32
      %57 = arith.muli %46, %c3_i32_35 : i32
      %c1_i32_36 = arith.constant 1 : i32
      %58 = arith.addi %57, %c1_i32_36 : i32
      %59 = arith.index_cast %58 : i32 to index
      %60 = memref.load %arg1[%59] : memref<24xi32, #tpu.memory_space<smem>>
      %c0_i32_37 = arith.constant 0 : i32
      %c0_i32_38 = arith.constant 0 : i32
      %c0_i32_39 = arith.constant 0 : i32
      %61 = tpu.memref_slice %arg2[%46, %60, %c0_i32_39] : memref<8x16x128xf32, #tpu.memory_space<any>> -> memref<1x1x128xf32, #tpu.memory_space<any>>
      %62 = tpu.memref_squeeze %61 : memref<1x1x128xf32, #tpu.memory_space<any>> -> memref<128xf32, #tpu.memory_space<any>>
      %c128_i32 = arith.constant 128 : i32
      %63 = tpu.memref_slice %arg8[%c0_i32_37, %44, %c128_i32] : memref<2x8x384xf32, #tpu.memory_space<vmem>> -> memref<1x1x128xf32, #tpu.memory_space<vmem>>
      %64 = tpu.memref_squeeze %63 : memref<1x1x128xf32, #tpu.memory_space<vmem>> -> memref<128xf32, #tpu.memory_space<vmem>>
      %65 = tpu.memref_slice %arg9[%c0_i32_38] : memref<2x!tpu.dma_semaphore, #tpu.memory_space<semaphore_mem>> -> memref<1x!tpu.dma_semaphore, #tpu.memory_space<semaphore_mem>>
      %66 = tpu.memref_squeeze %65 : memref<1x!tpu.dma_semaphore, #tpu.memory_space<semaphore_mem>> -> memref<!tpu.dma_semaphore, #tpu.memory_space<semaphore_mem>>
      tpu.enqueue_dma source(%62 : memref<128xf32, #tpu.memory_space<any>>) target(%64 : memref<128xf32, #tpu.memory_space<vmem>>) target_semaphore(%66 : memref<!tpu.dma_semaphore, #tpu.memory_space<semaphore_mem>>)
      %c3_i32_40 = arith.constant 3 : i32
      %67 = arith.muli %46, %c3_i32_40 : i32
      %c2_i32_41 = arith.constant 2 : i32
      %68 = arith.addi %67, %c2_i32_41 : i32
      %69 = arith.index_cast %68 : i32 to index
      %70 = memref.load %arg1[%69] : memref<24xi32, #tpu.memory_space<smem>>
      %c0_i32_42 = arith.constant 0 : i32
      %c0_i32_43 = arith.constant 0 : i32
      %c0_i32_44 = arith.constant 0 : i32
      %71 = tpu.memref_slice %arg2[%46, %70, %c0_i32_44] : memref<8x16x128xf32, #tpu.memory_space<any>> -> memref<1x1x128xf32, #tpu.memory_space<any>>
      %72 = tpu.memref_squeeze %71 : memref<1x1x128xf32, #tpu.memory_space<any>> -> memref<128xf32, #tpu.memory_space<any>>
      %c256_i32 = arith.constant 256 : i32
      %73 = tpu.memref_slice %arg8[%c0_i32_42, %44, %c256_i32] : memref<2x8x384xf32, #tpu.memory_space<vmem>> -> memref<1x1x128xf32, #tpu.memory_space<vmem>>
      %74 = tpu.memref_squeeze %73 : memref<1x1x128xf32, #tpu.memory_space<vmem>> -> memref<128xf32, #tpu.memory_space<vmem>>
      %75 = tpu.memref_slice %arg9[%c0_i32_43] : memref<2x!tpu.dma_semaphore, #tpu.memory_space<semaphore_mem>> -> memref<1x!tpu.dma_semaphore, #tpu.memory_space<semaphore_mem>>
      %76 = tpu.memref_squeeze %75 : memref<1x!tpu.dma_semaphore, #tpu.memory_space<semaphore_mem>> -> memref<!tpu.dma_semaphore, #tpu.memory_space<semaphore_mem>>
      tpu.enqueue_dma source(%72 : memref<128xf32, #tpu.memory_space<any>>) target(%74 : memref<128xf32, #tpu.memory_space<vmem>>) target_semaphore(%76 : memref<!tpu.dma_semaphore, #tpu.memory_space<semaphore_mem>>)
      %c8_i32_45 = arith.constant 8 : i32
      %77 = arith.muli %42, %c8_i32_45 : i32
      %c1_i32_46 = arith.constant 1 : i32
      %78 = arith.addi %77, %c1_i32_46 : i32
      %c0_i32_47 = arith.constant 0 : i32
      %79 = arith.addi %c0_i32_47, %78 : i32
      %c7_i32_48 = arith.constant 7 : i32
      %80 = arith.minsi %79, %c7_i32_48 : i32
      %c3_i32_49 = arith.constant 3 : i32
      %81 = arith.muli %80, %c3_i32_49 : i32
      %c0_i32_50 = arith.constant 0 : i32
      %82 = arith.addi %81, %c0_i32_50 : i32
      %83 = arith.index_cast %82 : i32 to index
      %84 = memref.load %arg1[%83] : memref<24xi32, #tpu.memory_space<smem>>
      %c0_i32_51 = arith.constant 0 : i32
      %c0_i32_52 = arith.constant 0 : i32
      %c0_i32_53 = arith.constant 0 : i32
      %85 = tpu.memref_slice %arg2[%80, %84, %c0_i32_53] : memref<8x16x128xf32, #tpu.memory_space<any>> -> memref<1x1x128xf32, #tpu.memory_space<any>>
      %86 = tpu.memref_squeeze %85 : memref<1x1x128xf32, #tpu.memory_space<any>> -> memref<128xf32, #tpu.memory_space<any>>
      %c0_i32_54 = arith.constant 0 : i32
      %87 = tpu.memref_slice %arg8[%c0_i32_51, %78, %c0_i32_54] : memref<2x8x384xf32, #tpu.memory_space<vmem>> -> memref<1x1x128xf32, #tpu.memory_space<vmem>>
      %88 = tpu.memref_squeeze %87 : memref<1x1x128xf32, #tpu.memory_space<vmem>> -> memref<128xf32, #tpu.memory_space<vmem>>
      %89 = tpu.memref_slice %arg9[%c0_i32_52] : memref<2x!tpu.dma_semaphore, #tpu.memory_space<semaphore_mem>> -> memref<1x!tpu.dma_semaphore, #tpu.memory_space<semaphore_mem>>
      %90 = tpu.memref_squeeze %89 : memref<1x!tpu.dma_semaphore, #tpu.memory_space<semaphore_mem>> -> memref<!tpu.dma_semaphore, #tpu.memory_space<semaphore_mem>>
      tpu.enqueue_dma source(%86 : memref<128xf32, #tpu.memory_space<any>>) target(%88 : memref<128xf32, #tpu.memory_space<vmem>>) target_semaphore(%90 : memref<!tpu.dma_semaphore, #tpu.memory_space<semaphore_mem>>)
      %c3_i32_55 = arith.constant 3 : i32
      %91 = arith.muli %80, %c3_i32_55 : i32
      %c1_i32_56 = arith.constant 1 : i32
      %92 = arith.addi %91, %c1_i32_56 : i32
      %93 = arith.index_cast %92 : i32 to index
      %94 = memref.load %arg1[%93] : memref<24xi32, #tpu.memory_space<smem>>
      %c0_i32_57 = arith.constant 0 : i32
      %c0_i32_58 = arith.constant 0 : i32
      %c0_i32_59 = arith.constant 0 : i32
      %95 = tpu.memref_slice %arg2[%80, %94, %c0_i32_59] : memref<8x16x128xf32, #tpu.memory_space<any>> -> memref<1x1x128xf32, #tpu.memory_space<any>>
      %96 = tpu.memref_squeeze %95 : memref<1x1x128xf32, #tpu.memory_space<any>> -> memref<128xf32, #tpu.memory_space<any>>
      %c128_i32_60 = arith.constant 128 : i32
      %97 = tpu.memref_slice %arg8[%c0_i32_57, %78, %c128_i32_60] : memref<2x8x384xf32, #tpu.memory_space<vmem>> -> memref<1x1x128xf32, #tpu.memory_space<vmem>>
      %98 = tpu.memref_squeeze %97 : memref<1x1x128xf32, #tpu.memory_space<vmem>> -> memref<128xf32, #tpu.memory_space<vmem>>
      %99 = tpu.memref_slice %arg9[%c0_i32_58] : memref<2x!tpu.dma_semaphore, #tpu.memory_space<semaphore_mem>> -> memref<1x!tpu.dma_semaphore, #tpu.memory_space<semaphore_mem>>
      %100 = tpu.memref_squeeze %99 : memref<1x!tpu.dma_semaphore, #tpu.memory_space<semaphore_mem>> -> memref<!tpu.dma_semaphore, #tpu.memory_space<semaphore_mem>>
      tpu.enqueue_dma source(%96 : memref<128xf32, #tpu.memory_space<any>>) target(%98 : memref<128xf32, #tpu.memory_space<vmem>>) target_semaphore(%100 : memref<!tpu.dma_semaphore, #tpu.memory_space<semaphore_mem>>)
      %c3_i32_61 = arith.constant 3 : i32
      %101 = arith.muli %80, %c3_i32_61 : i32
      %c2_i32_62 = arith.constant 2 : i32
      %102 = arith.addi %101, %c2_i32_62 : i32
      %103 = arith.index_cast %102 : i32 to index
      %104 = memref.load %arg1[%103] : memref<24xi32, #tpu.memory_space<smem>>
      %c0_i32_63 = arith.constant 0 : i32
      %c0_i32_64 = arith.constant 0 : i32
      %c0_i32_65 = arith.constant 0 : i32
      %105 = tpu.memref_slice %arg2[%80, %104, %c0_i32_65] : memref<8x16x128xf32, #tpu.memory_space<any>> -> memref<1x1x128xf32, #tpu.memory_space<any>>
      %106 = tpu.memref_squeeze %105 : memref<1x1x128xf32, #tpu.memory_space<any>> -> memref<128xf32, #tpu.memory_space<any>>
      %c256_i32_66 = arith.constant 256 : i32
      %107 = tpu.memref_slice %arg8[%c0_i32_63, %78, %c256_i32_66] : memref<2x8x384xf32, #tpu.memory_space<vmem>> -> memref<1x1x128xf32, #tpu.memory_space<vmem>>
      %108 = tpu.memref_squeeze %107 : memref<1x1x128xf32, #tpu.memory_space<vmem>> -> memref<128xf32, #tpu.memory_space<vmem>>
      %109 = tpu.memref_slice %arg9[%c0_i32_64] : memref<2x!tpu.dma_semaphore, #tpu.memory_space<semaphore_mem>> -> memref<1x!tpu.dma_semaphore, #tpu.memory_space<semaphore_mem>>
      %110 = tpu.memref_squeeze %109 : memref<1x!tpu.dma_semaphore, #tpu.memory_space<semaphore_mem>> -> memref<!tpu.dma_semaphore, #tpu.memory_space<semaphore_mem>>
      tpu.enqueue_dma source(%106 : memref<128xf32, #tpu.memory_space<any>>) target(%108 : memref<128xf32, #tpu.memory_space<vmem>>) target_semaphore(%110 : memref<!tpu.dma_semaphore, #tpu.memory_space<semaphore_mem>>)
      %c8_i32_67 = arith.constant 8 : i32
      %111 = arith.muli %42, %c8_i32_67 : i32
      %c2_i32_68 = arith.constant 2 : i32
      %112 = arith.addi %111, %c2_i32_68 : i32
      %c0_i32_69 = arith.constant 0 : i32
      %113 = arith.addi %c0_i32_69, %112 : i32
      %c7_i32_70 = arith.constant 7 : i32
      %114 = arith.minsi %113, %c7_i32_70 : i32
      %c3_i32_71 = arith.constant 3 : i32
      %115 = arith.muli %114, %c3_i32_71 : i32
      %c0_i32_72 = arith.constant 0 : i32
      %116 = arith.addi %115, %c0_i32_72 : i32
      %117 = arith.index_cast %116 : i32 to index
      %118 = memref.load %arg1[%117] : memref<24xi32, #tpu.memory_space<smem>>
      %c0_i32_73 = arith.constant 0 : i32
      %c0_i32_74 = arith.constant 0 : i32
      %c0_i32_75 = arith.constant 0 : i32
      %119 = tpu.memref_slice %arg2[%114, %118, %c0_i32_75] : memref<8x16x128xf32, #tpu.memory_space<any>> -> memref<1x1x128xf32, #tpu.memory_space<any>>
      %120 = tpu.memref_squeeze %119 : memref<1x1x128xf32, #tpu.memory_space<any>> -> memref<128xf32, #tpu.memory_space<any>>
      %c0_i32_76 = arith.constant 0 : i32
      %121 = tpu.memref_slice %arg8[%c0_i32_73, %112, %c0_i32_76] : memref<2x8x384xf32, #tpu.memory_space<vmem>> -> memref<1x1x128xf32, #tpu.memory_space<vmem>>
      %122 = tpu.memref_squeeze %121 : memref<1x1x128xf32, #tpu.memory_space<vmem>> -> memref<128xf32, #tpu.memory_space<vmem>>
      %123 = tpu.memref_slice %arg9[%c0_i32_74] : memref<2x!tpu.dma_semaphore, #tpu.memory_space<semaphore_mem>> -> memref<1x!tpu.dma_semaphore, #tpu.memory_space<semaphore_mem>>
      %124 = tpu.memref_squeeze %123 : memref<1x!tpu.dma_semaphore, #tpu.memory_space<semaphore_mem>> -> memref<!tpu.dma_semaphore, #tpu.memory_space<semaphore_mem>>
      tpu.enqueue_dma source(%120 : memref<128xf32, #tpu.memory_space<any>>) target(%122 : memref<128xf32, #tpu.memory_space<vmem>>) target_semaphore(%124 : memref<!tpu.dma_semaphore, #tpu.memory_space<semaphore_mem>>)
      %c3_i32_77 = arith.constant 3 : i32
      %125 = arith.muli %114, %c3_i32_77 : i32
      %c1_i32_78 = arith.constant 1 : i32
      %126 = arith.addi %125, %c1_i32_78 : i32
      %127 = arith.index_cast %126 : i32 to index
      %128 = memref.load %arg1[%127] : memref<24xi32, #tpu.memory_space<smem>>
      %c0_i32_79 = arith.constant 0 : i32
      %c0_i32_80 = arith.constant 0 : i32
      %c0_i32_81 = arith.constant 0 : i32
      %129 = tpu.memref_slice %arg2[%114, %128, %c0_i32_81] : memref<8x16x128xf32, #tpu.memory_space<any>> -> memref<1x1x128xf32, #tpu.memory_space<any>>
      %130 = tpu.memref_squeeze %129 : memref<1x1x128xf32, #tpu.memory_space<any>> -> memref<128xf32, #tpu.memory_space<any>>
      %c128_i32_82 = arith.constant 128 : i32
      %131 = tpu.memref_slice %arg8[%c0_i32_79, %112, %c128_i32_82] : memref<2x8x384xf32, #tpu.memory_space<vmem>> -> memref<1x1x128xf32, #tpu.memory_space<vmem>>
      %132 = tpu.memref_squeeze %131 : memref<1x1x128xf32, #tpu.memory_space<vmem>> -> memref<128xf32, #tpu.memory_space<vmem>>
      %133 = tpu.memref_slice %arg9[%c0_i32_80] : memref<2x!tpu.dma_semaphore, #tpu.memory_space<semaphore_mem>> -> memref<1x!tpu.dma_semaphore, #tpu.memory_space<semaphore_mem>>
      %134 = tpu.memref_squeeze %133 : memref<1x!tpu.dma_semaphore, #tpu.memory_space<semaphore_mem>> -> memref<!tpu.dma_semaphore, #tpu.memory_space<semaphore_mem>>
      tpu.enqueue_dma source(%130 : memref<128xf32, #tpu.memory_space<any>>) target(%132 : memref<128xf32, #tpu.memory_space<vmem>>) target_semaphore(%134 : memref<!tpu.dma_semaphore, #tpu.memory_space<semaphore_mem>>)
      %c3_i32_83 = arith.constant 3 : i32
      %135 = arith.muli %114, %c3_i32_83 : i32
      %c2_i32_84 = arith.constant 2 : i32
      %136 = arith.addi %135, %c2_i32_84 : i32
      %137 = arith.index_cast %136 : i32 to index
      %138 = memref.load %arg1[%137] : memref<24xi32, #tpu.memory_space<smem>>
      %c0_i32_85 = arith.constant 0 : i32
      %c0_i32_86 = arith.constant 0 : i32
      %c0_i32_87 = arith.constant 0 : i32
      %139 = tpu.memref_slice %arg2[%114, %138, %c0_i32_87] : memref<8x16x128xf32, #tpu.memory_space<any>> -> memref<1x1x128xf32, #tpu.memory_space<any>>
      %140 = tpu.memref_squeeze %139 : memref<1x1x128xf32, #tpu.memory_space<any>> -> memref<128xf32, #tpu.memory_space<any>>
      %c256_i32_88 = arith.constant 256 : i32
      %141 = tpu.memref_slice %arg8[%c0_i32_85, %112, %c256_i32_88] : memref<2x8x384xf32, #tpu.memory_space<vmem>> -> memref<1x1x128xf32, #tpu.memory_space<vmem>>
      %142 = tpu.memref_squeeze %141 : memref<1x1x128xf32, #tpu.memory_space<vmem>> -> memref<128xf32, #tpu.memory_space<vmem>>
      %143 = tpu.memref_slice %arg9[%c0_i32_86] : memref<2x!tpu.dma_semaphore, #tpu.memory_space<semaphore_mem>> -> memref<1x!tpu.dma_semaphore, #tpu.memory_space<semaphore_mem>>
      %144 = tpu.memref_squeeze %143 : memref<1x!tpu.dma_semaphore, #tpu.memory_space<semaphore_mem>> -> memref<!tpu.dma_semaphore, #tpu.memory_space<semaphore_mem>>
      tpu.enqueue_dma source(%140 : memref<128xf32, #tpu.memory_space<any>>) target(%142 : memref<128xf32, #tpu.memory_space<vmem>>) target_semaphore(%144 : memref<!tpu.dma_semaphore, #tpu.memory_space<semaphore_mem>>)
      %c8_i32_89 = arith.constant 8 : i32
      %145 = arith.muli %42, %c8_i32_89 : i32
      %c3_i32_90 = arith.constant 3 : i32
      %146 = arith.addi %145, %c3_i32_90 : i32
      %c0_i32_91 = arith.constant 0 : i32
      %147 = arith.addi %c0_i32_91, %146 : i32
      %c7_i32_92 = arith.constant 7 : i32
      %148 = arith.minsi %147, %c7_i32_92 : i32
      %c3_i32_93 = arith.constant 3 : i32
      %149 = arith.muli %148, %c3_i32_93 : i32
      %c0_i32_94 = arith.constant 0 : i32
      %150 = arith.addi %149, %c0_i32_94 : i32
      %151 = arith.index_cast %150 : i32 to index
      %152 = memref.load %arg1[%151] : memref<24xi32, #tpu.memory_space<smem>>
      %c0_i32_95 = arith.constant 0 : i32
      %c0_i32_96 = arith.constant 0 : i32
      %c0_i32_97 = arith.constant 0 : i32
      %153 = tpu.memref_slice %arg2[%148, %152, %c0_i32_97] : memref<8x16x128xf32, #tpu.memory_space<any>> -> memref<1x1x128xf32, #tpu.memory_space<any>>
      %154 = tpu.memref_squeeze %153 : memref<1x1x128xf32, #tpu.memory_space<any>> -> memref<128xf32, #tpu.memory_space<any>>
      %c0_i32_98 = arith.constant 0 : i32
      %155 = tpu.memref_slice %arg8[%c0_i32_95, %146, %c0_i32_98] : memref<2x8x384xf32, #tpu.memory_space<vmem>> -> memref<1x1x128xf32, #tpu.memory_space<vmem>>
      %156 = tpu.memref_squeeze %155 : memref<1x1x128xf32, #tpu.memory_space<vmem>> -> memref<128xf32, #tpu.memory_space<vmem>>
      %157 = tpu.memref_slice %arg9[%c0_i32_96] : memref<2x!tpu.dma_semaphore, #tpu.memory_space<semaphore_mem>> -> memref<1x!tpu.dma_semaphore, #tpu.memory_space<semaphore_mem>>
      %158 = tpu.memref_squeeze %157 : memref<1x!tpu.dma_semaphore, #tpu.memory_space<semaphore_mem>> -> memref<!tpu.dma_semaphore, #tpu.memory_space<semaphore_mem>>
      tpu.enqueue_dma source(%154 : memref<128xf32, #tpu.memory_space<any>>) target(%156 : memref<128xf32, #tpu.memory_space<vmem>>) target_semaphore(%158 : memref<!tpu.dma_semaphore, #tpu.memory_space<semaphore_mem>>)
      %c3_i32_99 = arith.constant 3 : i32
      %159 = arith.muli %148, %c3_i32_99 : i32
      %c1_i32_100 = arith.constant 1 : i32
      %160 = arith.addi %159, %c1_i32_100 : i32
      %161 = arith.index_cast %160 : i32 to index
      %162 = memref.load %arg1[%161] : memref<24xi32, #tpu.memory_space<smem>>
      %c0_i32_101 = arith.constant 0 : i32
      %c0_i32_102 = arith.constant 0 : i32
      %c0_i32_103 = arith.constant 0 : i32
      %163 = tpu.memref_slice %arg2[%148, %162, %c0_i32_103] : memref<8x16x128xf32, #tpu.memory_space<any>> -> memref<1x1x128xf32, #tpu.memory_space<any>>
      %164 = tpu.memref_squeeze %163 : memref<1x1x128xf32, #tpu.memory_space<any>> -> memref<128xf32, #tpu.memory_space<any>>
      %c128_i32_104 = arith.constant 128 : i32
      %165 = tpu.memref_slice %arg8[%c0_i32_101, %146, %c128_i32_104] : memref<2x8x384xf32, #tpu.memory_space<vmem>> -> memref<1x1x128xf32, #tpu.memory_space<vmem>>
      %166 = tpu.memref_squeeze %165 : memref<1x1x128xf32, #tpu.memory_space<vmem>> -> memref<128xf32, #tpu.memory_space<vmem>>
      %167 = tpu.memref_slice %arg9[%c0_i32_102] : memref<2x!tpu.dma_semaphore, #tpu.memory_space<semaphore_mem>> -> memref<1x!tpu.dma_semaphore, #tpu.memory_space<semaphore_mem>>
      %168 = tpu.memref_squeeze %167 : memref<1x!tpu.dma_semaphore, #tpu.memory_space<semaphore_mem>> -> memref<!tpu.dma_semaphore, #tpu.memory_space<semaphore_mem>>
      tpu.enqueue_dma source(%164 : memref<128xf32, #tpu.memory_space<any>>) target(%166 : memref<128xf32, #tpu.memory_space<vmem>>) target_semaphore(%168 : memref<!tpu.dma_semaphore, #tpu.memory_space<semaphore_mem>>)
      %c3_i32_105 = arith.constant 3 : i32
      %169 = arith.muli %148, %c3_i32_105 : i32
      %c2_i32_106 = arith.constant 2 : i32
      %170 = arith.addi %169, %c2_i32_106 : i32
      %171 = arith.index_cast %170 : i32 to index
      %172 = memref.load %arg1[%171] : memref<24xi32, #tpu.memory_space<smem>>
      %c0_i32_107 = arith.constant 0 : i32
      %c0_i32_108 = arith.constant 0 : i32
      %c0_i32_109 = arith.constant 0 : i32
      %173 = tpu.memref_slice %arg2[%148, %172, %c0_i32_109] : memref<8x16x128xf32, #tpu.memory_space<any>> -> memref<1x1x128xf32, #tpu.memory_space<any>>
      %174 = tpu.memref_squeeze %173 : memref<1x1x128xf32, #tpu.memory_space<any>> -> memref<128xf32, #tpu.memory_space<any>>
      %c256_i32_110 = arith.constant 256 : i32
      %175 = tpu.memref_slice %arg8[%c0_i32_107, %146, %c256_i32_110] : memref<2x8x384xf32, #tpu.memory_space<vmem>> -> memref<1x1x128xf32, #tpu.memory_space<vmem>>
      %176 = tpu.memref_squeeze %175 : memref<1x1x128xf32, #tpu.memory_space<vmem>> -> memref<128xf32, #tpu.memory_space<vmem>>
      %177 = tpu.memref_slice %arg9[%c0_i32_108] : memref<2x!tpu.dma_semaphore, #tpu.memory_space<semaphore_mem>> -> memref<1x!tpu.dma_semaphore, #tpu.memory_space<semaphore_mem>>
      %178 = tpu.memref_squeeze %177 : memref<1x!tpu.dma_semaphore, #tpu.memory_space<semaphore_mem>> -> memref<!tpu.dma_semaphore, #tpu.memory_space<semaphore_mem>>
      tpu.enqueue_dma source(%174 : memref<128xf32, #tpu.memory_space<any>>) target(%176 : memref<128xf32, #tpu.memory_space<vmem>>) target_semaphore(%178 : memref<!tpu.dma_semaphore, #tpu.memory_space<semaphore_mem>>)
      %c8_i32_111 = arith.constant 8 : i32
      %179 = arith.muli %42, %c8_i32_111 : i32
      %c4_i32 = arith.constant 4 : i32
      %180 = arith.addi %179, %c4_i32 : i32
      %c0_i32_112 = arith.constant 0 : i32
      %181 = arith.addi %c0_i32_112, %180 : i32
      %c7_i32_113 = arith.constant 7 : i32
      %182 = arith.minsi %181, %c7_i32_113 : i32
      %c3_i32_114 = arith.constant 3 : i32
      %183 = arith.muli %182, %c3_i32_114 : i32
      %c0_i32_115 = arith.constant 0 : i32
      %184 = arith.addi %183, %c0_i32_115 : i32
      %185 = arith.index_cast %184 : i32 to index
      %186 = memref.load %arg1[%185] : memref<24xi32, #tpu.memory_space<smem>>
      %c0_i32_116 = arith.constant 0 : i32
      %c0_i32_117 = arith.constant 0 : i32
      %c0_i32_118 = arith.constant 0 : i32
      %187 = tpu.memref_slice %arg2[%182, %186, %c0_i32_118] : memref<8x16x128xf32, #tpu.memory_space<any>> -> memref<1x1x128xf32, #tpu.memory_space<any>>
      %188 = tpu.memref_squeeze %187 : memref<1x1x128xf32, #tpu.memory_space<any>> -> memref<128xf32, #tpu.memory_space<any>>
      %c0_i32_119 = arith.constant 0 : i32
      %189 = tpu.memref_slice %arg8[%c0_i32_116, %180, %c0_i32_119] : memref<2x8x384xf32, #tpu.memory_space<vmem>> -> memref<1x1x128xf32, #tpu.memory_space<vmem>>
      %190 = tpu.memref_squeeze %189 : memref<1x1x128xf32, #tpu.memory_space<vmem>> -> memref<128xf32, #tpu.memory_space<vmem>>
      %191 = tpu.memref_slice %arg9[%c0_i32_117] : memref<2x!tpu.dma_semaphore, #tpu.memory_space<semaphore_mem>> -> memref<1x!tpu.dma_semaphore, #tpu.memory_space<semaphore_mem>>
      %192 = tpu.memref_squeeze %191 : memref<1x!tpu.dma_semaphore, #tpu.memory_space<semaphore_mem>> -> memref<!tpu.dma_semaphore, #tpu.memory_space<semaphore_mem>>
      tpu.enqueue_dma source(%188 : memref<128xf32, #tpu.memory_space<any>>) target(%190 : memref<128xf32, #tpu.memory_space<vmem>>) target_semaphore(%192 : memref<!tpu.dma_semaphore, #tpu.memory_space<semaphore_mem>>)
      %c3_i32_120 = arith.constant 3 : i32
      %193 = arith.muli %182, %c3_i32_120 : i32
      %c1_i32_121 = arith.constant 1 : i32
      %194 = arith.addi %193, %c1_i32_121 : i32
      %195 = arith.index_cast %194 : i32 to index
      %196 = memref.load %arg1[%195] : memref<24xi32, #tpu.memory_space<smem>>
      %c0_i32_122 = arith.constant 0 : i32
      %c0_i32_123 = arith.constant 0 : i32
      %c0_i32_124 = arith.constant 0 : i32
      %197 = tpu.memref_slice %arg2[%182, %196, %c0_i32_124] : memref<8x16x128xf32, #tpu.memory_space<any>> -> memref<1x1x128xf32, #tpu.memory_space<any>>
      %198 = tpu.memref_squeeze %197 : memref<1x1x128xf32, #tpu.memory_space<any>> -> memref<128xf32, #tpu.memory_space<any>>
      %c128_i32_125 = arith.constant 128 : i32
      %199 = tpu.memref_slice %arg8[%c0_i32_122, %180, %c128_i32_125] : memref<2x8x384xf32, #tpu.memory_space<vmem>> -> memref<1x1x128xf32, #tpu.memory_space<vmem>>
      %200 = tpu.memref_squeeze %199 : memref<1x1x128xf32, #tpu.memory_space<vmem>> -> memref<128xf32, #tpu.memory_space<vmem>>
      %201 = tpu.memref_slice %arg9[%c0_i32_123] : memref<2x!tpu.dma_semaphore, #tpu.memory_space<semaphore_mem>> -> memref<1x!tpu.dma_semaphore, #tpu.memory_space<semaphore_mem>>
      %202 = tpu.memref_squeeze %201 : memref<1x!tpu.dma_semaphore, #tpu.memory_space<semaphore_mem>> -> memref<!tpu.dma_semaphore, #tpu.memory_space<semaphore_mem>>
      tpu.enqueue_dma source(%198 : memref<128xf32, #tpu.memory_space<any>>) target(%200 : memref<128xf32, #tpu.memory_space<vmem>>) target_semaphore(%202 : memref<!tpu.dma_semaphore, #tpu.memory_space<semaphore_mem>>)
      %c3_i32_126 = arith.constant 3 : i32
      %203 = arith.muli %182, %c3_i32_126 : i32
      %c2_i32_127 = arith.constant 2 : i32
      %204 = arith.addi %203, %c2_i32_127 : i32
      %205 = arith.index_cast %204 : i32 to index
      %206 = memref.load %arg1[%205] : memref<24xi32, #tpu.memory_space<smem>>
      %c0_i32_128 = arith.constant 0 : i32
      %c0_i32_129 = arith.constant 0 : i32
      %c0_i32_130 = arith.constant 0 : i32
      %207 = tpu.memref_slice %arg2[%182, %206, %c0_i32_130] : memref<8x16x128xf32, #tpu.memory_space<any>> -> memref<1x1x128xf32, #tpu.memory_space<any>>
      %208 = tpu.memref_squeeze %207 : memref<1x1x128xf32, #tpu.memory_space<any>> -> memref<128xf32, #tpu.memory_space<any>>
      %c256_i32_131 = arith.constant 256 : i32
      %209 = tpu.memref_slice %arg8[%c0_i32_128, %180, %c256_i32_131] : memref<2x8x384xf32, #tpu.memory_space<vmem>> -> memref<1x1x128xf32, #tpu.memory_space<vmem>>
      %210 = tpu.memref_squeeze %209 : memref<1x1x128xf32, #tpu.memory_space<vmem>> -> memref<128xf32, #tpu.memory_space<vmem>>
      %211 = tpu.memref_slice %arg9[%c0_i32_129] : memref<2x!tpu.dma_semaphore, #tpu.memory_space<semaphore_mem>> -> memref<1x!tpu.dma_semaphore, #tpu.memory_space<semaphore_mem>>
      %212 = tpu.memref_squeeze %211 : memref<1x!tpu.dma_semaphore, #tpu.memory_space<semaphore_mem>> -> memref<!tpu.dma_semaphore, #tpu.memory_space<semaphore_mem>>
      tpu.enqueue_dma source(%208 : memref<128xf32, #tpu.memory_space<any>>) target(%210 : memref<128xf32, #tpu.memory_space<vmem>>) target_semaphore(%212 : memref<!tpu.dma_semaphore, #tpu.memory_space<semaphore_mem>>)
      %c8_i32_132 = arith.constant 8 : i32
      %213 = arith.muli %42, %c8_i32_132 : i32
      %c5_i32 = arith.constant 5 : i32
      %214 = arith.addi %213, %c5_i32 : i32
      %c0_i32_133 = arith.constant 0 : i32
      %215 = arith.addi %c0_i32_133, %214 : i32
      %c7_i32_134 = arith.constant 7 : i32
      %216 = arith.minsi %215, %c7_i32_134 : i32
      %c3_i32_135 = arith.constant 3 : i32
      %217 = arith.muli %216, %c3_i32_135 : i32
      %c0_i32_136 = arith.constant 0 : i32
      %218 = arith.addi %217, %c0_i32_136 : i32
      %219 = arith.index_cast %218 : i32 to index
      %220 = memref.load %arg1[%219] : memref<24xi32, #tpu.memory_space<smem>>
      %c0_i32_137 = arith.constant 0 : i32
      %c0_i32_138 = arith.constant 0 : i32
      %c0_i32_139 = arith.constant 0 : i32
      %221 = tpu.memref_slice %arg2[%216, %220, %c0_i32_139] : memref<8x16x128xf32, #tpu.memory_space<any>> -> memref<1x1x128xf32, #tpu.memory_space<any>>
      %222 = tpu.memref_squeeze %221 : memref<1x1x128xf32, #tpu.memory_space<any>> -> memref<128xf32, #tpu.memory_space<any>>
      %c0_i32_140 = arith.constant 0 : i32
      %223 = tpu.memref_slice %arg8[%c0_i32_137, %214, %c0_i32_140] : memref<2x8x384xf32, #tpu.memory_space<vmem>> -> memref<1x1x128xf32, #tpu.memory_space<vmem>>
      %224 = tpu.memref_squeeze %223 : memref<1x1x128xf32, #tpu.memory_space<vmem>> -> memref<128xf32, #tpu.memory_space<vmem>>
      %225 = tpu.memref_slice %arg9[%c0_i32_138] : memref<2x!tpu.dma_semaphore, #tpu.memory_space<semaphore_mem>> -> memref<1x!tpu.dma_semaphore, #tpu.memory_space<semaphore_mem>>
      %226 = tpu.memref_squeeze %225 : memref<1x!tpu.dma_semaphore, #tpu.memory_space<semaphore_mem>> -> memref<!tpu.dma_semaphore, #tpu.memory_space<semaphore_mem>>
      tpu.enqueue_dma source(%222 : memref<128xf32, #tpu.memory_space<any>>) target(%224 : memref<128xf32, #tpu.memory_space<vmem>>) target_semaphore(%226 : memref<!tpu.dma_semaphore, #tpu.memory_space<semaphore_mem>>)
      %c3_i32_141 = arith.constant 3 : i32
      %227 = arith.muli %216, %c3_i32_141 : i32
      %c1_i32_142 = arith.constant 1 : i32
      %228 = arith.addi %227, %c1_i32_142 : i32
      %229 = arith.index_cast %228 : i32 to index
      %230 = memref.load %arg1[%229] : memref<24xi32, #tpu.memory_space<smem>>
      %c0_i32_143 = arith.constant 0 : i32
      %c0_i32_144 = arith.constant 0 : i32
      %c0_i32_145 = arith.constant 0 : i32
      %231 = tpu.memref_slice %arg2[%216, %230, %c0_i32_145] : memref<8x16x128xf32, #tpu.memory_space<any>> -> memref<1x1x128xf32, #tpu.memory_space<any>>
      %232 = tpu.memref_squeeze %231 : memref<1x1x128xf32, #tpu.memory_space<any>> -> memref<128xf32, #tpu.memory_space<any>>
      %c128_i32_146 = arith.constant 128 : i32
      %233 = tpu.memref_slice %arg8[%c0_i32_143, %214, %c128_i32_146] : memref<2x8x384xf32, #tpu.memory_space<vmem>> -> memref<1x1x128xf32, #tpu.memory_space<vmem>>
      %234 = tpu.memref_squeeze %233 : memref<1x1x128xf32, #tpu.memory_space<vmem>> -> memref<128xf32, #tpu.memory_space<vmem>>
      %235 = tpu.memref_slice %arg9[%c0_i32_144] : memref<2x!tpu.dma_semaphore, #tpu.memory_space<semaphore_mem>> -> memref<1x!tpu.dma_semaphore, #tpu.memory_space<semaphore_mem>>
      %236 = tpu.memref_squeeze %235 : memref<1x!tpu.dma_semaphore, #tpu.memory_space<semaphore_mem>> -> memref<!tpu.dma_semaphore, #tpu.memory_space<semaphore_mem>>
      tpu.enqueue_dma source(%232 : memref<128xf32, #tpu.memory_space<any>>) target(%234 : memref<128xf32, #tpu.memory_space<vmem>>) target_semaphore(%236 : memref<!tpu.dma_semaphore, #tpu.memory_space<semaphore_mem>>)
      %c3_i32_147 = arith.constant 3 : i32
      %237 = arith.muli %216, %c3_i32_147 : i32
      %c2_i32_148 = arith.constant 2 : i32
      %238 = arith.addi %237, %c2_i32_148 : i32
      %239 = arith.index_cast %238 : i32 to index
      %240 = memref.load %arg1[%239] : memref<24xi32, #tpu.memory_space<smem>>
      %c0_i32_149 = arith.constant 0 : i32
      %c0_i32_150 = arith.constant 0 : i32
      %c0_i32_151 = arith.constant 0 : i32
      %241 = tpu.memref_slice %arg2[%216, %240, %c0_i32_151] : memref<8x16x128xf32, #tpu.memory_space<any>> -> memref<1x1x128xf32, #tpu.memory_space<any>>
      %242 = tpu.memref_squeeze %241 : memref<1x1x128xf32, #tpu.memory_space<any>> -> memref<128xf32, #tpu.memory_space<any>>
      %c256_i32_152 = arith.constant 256 : i32
      %243 = tpu.memref_slice %arg8[%c0_i32_149, %214, %c256_i32_152] : memref<2x8x384xf32, #tpu.memory_space<vmem>> -> memref<1x1x128xf32, #tpu.memory_space<vmem>>
      %244 = tpu.memref_squeeze %243 : memref<1x1x128xf32, #tpu.memory_space<vmem>> -> memref<128xf32, #tpu.memory_space<vmem>>
      %245 = tpu.memref_slice %arg9[%c0_i32_150] : memref<2x!tpu.dma_semaphore, #tpu.memory_space<semaphore_mem>> -> memref<1x!tpu.dma_semaphore, #tpu.memory_space<semaphore_mem>>
      %246 = tpu.memref_squeeze %245 : memref<1x!tpu.dma_semaphore, #tpu.memory_space<semaphore_mem>> -> memref<!tpu.dma_semaphore, #tpu.memory_space<semaphore_mem>>
      tpu.enqueue_dma source(%242 : memref<128xf32, #tpu.memory_space<any>>) target(%244 : memref<128xf32, #tpu.memory_space<vmem>>) target_semaphore(%246 : memref<!tpu.dma_semaphore, #tpu.memory_space<semaphore_mem>>)
      %c8_i32_153 = arith.constant 8 : i32
      %247 = arith.muli %42, %c8_i32_153 : i32
      %c6_i32 = arith.constant 6 : i32
      %248 = arith.addi %247, %c6_i32 : i32
      %c0_i32_154 = arith.constant 0 : i32
      %249 = arith.addi %c0_i32_154, %248 : i32
      %c7_i32_155 = arith.constant 7 : i32
      %250 = arith.minsi %249, %c7_i32_155 : i32
      %c3_i32_156 = arith.constant 3 : i32
      %251 = arith.muli %250, %c3_i32_156 : i32
      %c0_i32_157 = arith.constant 0 : i32
      %252 = arith.addi %251, %c0_i32_157 : i32
      %253 = arith.index_cast %252 : i32 to index
      %254 = memref.load %arg1[%253] : memref<24xi32, #tpu.memory_space<smem>>
      %c0_i32_158 = arith.constant 0 : i32
      %c0_i32_159 = arith.constant 0 : i32
      %c0_i32_160 = arith.constant 0 : i32
      %255 = tpu.memref_slice %arg2[%250, %254, %c0_i32_160] : memref<8x16x128xf32, #tpu.memory_space<any>> -> memref<1x1x128xf32, #tpu.memory_space<any>>
      %256 = tpu.memref_squeeze %255 : memref<1x1x128xf32, #tpu.memory_space<any>> -> memref<128xf32, #tpu.memory_space<any>>
      %c0_i32_161 = arith.constant 0 : i32
      %257 = tpu.memref_slice %arg8[%c0_i32_158, %248, %c0_i32_161] : memref<2x8x384xf32, #tpu.memory_space<vmem>> -> memref<1x1x128xf32, #tpu.memory_space<vmem>>
      %258 = tpu.memref_squeeze %257 : memref<1x1x128xf32, #tpu.memory_space<vmem>> -> memref<128xf32, #tpu.memory_space<vmem>>
      %259 = tpu.memref_slice %arg9[%c0_i32_159] : memref<2x!tpu.dma_semaphore, #tpu.memory_space<semaphore_mem>> -> memref<1x!tpu.dma_semaphore, #tpu.memory_space<semaphore_mem>>
      %260 = tpu.memref_squeeze %259 : memref<1x!tpu.dma_semaphore, #tpu.memory_space<semaphore_mem>> -> memref<!tpu.dma_semaphore, #tpu.memory_space<semaphore_mem>>
      tpu.enqueue_dma source(%256 : memref<128xf32, #tpu.memory_space<any>>) target(%258 : memref<128xf32, #tpu.memory_space<vmem>>) target_semaphore(%260 : memref<!tpu.dma_semaphore, #tpu.memory_space<semaphore_mem>>)
      %c3_i32_162 = arith.constant 3 : i32
      %261 = arith.muli %250, %c3_i32_162 : i32
      %c1_i32_163 = arith.constant 1 : i32
      %262 = arith.addi %261, %c1_i32_163 : i32
      %263 = arith.index_cast %262 : i32 to index
      %264 = memref.load %arg1[%263] : memref<24xi32, #tpu.memory_space<smem>>
      %c0_i32_164 = arith.constant 0 : i32
      %c0_i32_165 = arith.constant 0 : i32
      %c0_i32_166 = arith.constant 0 : i32
      %265 = tpu.memref_slice %arg2[%250, %264, %c0_i32_166] : memref<8x16x128xf32, #tpu.memory_space<any>> -> memref<1x1x128xf32, #tpu.memory_space<any>>
      %266 = tpu.memref_squeeze %265 : memref<1x1x128xf32, #tpu.memory_space<any>> -> memref<128xf32, #tpu.memory_space<any>>
      %c128_i32_167 = arith.constant 128 : i32
      %267 = tpu.memref_slice %arg8[%c0_i32_164, %248, %c128_i32_167] : memref<2x8x384xf32, #tpu.memory_space<vmem>> -> memref<1x1x128xf32, #tpu.memory_space<vmem>>
      %268 = tpu.memref_squeeze %267 : memref<1x1x128xf32, #tpu.memory_space<vmem>> -> memref<128xf32, #tpu.memory_space<vmem>>
      %269 = tpu.memref_slice %arg9[%c0_i32_165] : memref<2x!tpu.dma_semaphore, #tpu.memory_space<semaphore_mem>> -> memref<1x!tpu.dma_semaphore, #tpu.memory_space<semaphore_mem>>
      %270 = tpu.memref_squeeze %269 : memref<1x!tpu.dma_semaphore, #tpu.memory_space<semaphore_mem>> -> memref<!tpu.dma_semaphore, #tpu.memory_space<semaphore_mem>>
      tpu.enqueue_dma source(%266 : memref<128xf32, #tpu.memory_space<any>>) target(%268 : memref<128xf32, #tpu.memory_space<vmem>>) target_semaphore(%270 : memref<!tpu.dma_semaphore, #tpu.memory_space<semaphore_mem>>)
      %c3_i32_168 = arith.constant 3 : i32
      %271 = arith.muli %250, %c3_i32_168 : i32
      %c2_i32_169 = arith.constant 2 : i32
      %272 = arith.addi %271, %c2_i32_169 : i32
      %273 = arith.index_cast %272 : i32 to index
      %274 = memref.load %arg1[%273] : memref<24xi32, #tpu.memory_space<smem>>
      %c0_i32_170 = arith.constant 0 : i32
      %c0_i32_171 = arith.constant 0 : i32
      %c0_i32_172 = arith.constant 0 : i32
      %275 = tpu.memref_slice %arg2[%250, %274, %c0_i32_172] : memref<8x16x128xf32, #tpu.memory_space<any>> -> memref<1x1x128xf32, #tpu.memory_space<any>>
      %276 = tpu.memref_squeeze %275 : memref<1x1x128xf32, #tpu.memory_space<any>> -> memref<128xf32, #tpu.memory_space<any>>
      %c256_i32_173 = arith.constant 256 : i32
      %277 = tpu.memref_slice %arg8[%c0_i32_170, %248, %c256_i32_173] : memref<2x8x384xf32, #tpu.memory_space<vmem>> -> memref<1x1x128xf32, #tpu.memory_space<vmem>>
      %278 = tpu.memref_squeeze %277 : memref<1x1x128xf32, #tpu.memory_space<vmem>> -> memref<128xf32, #tpu.memory_space<vmem>>
      %279 = tpu.memref_slice %arg9[%c0_i32_171] : memref<2x!tpu.dma_semaphore, #tpu.memory_space<semaphore_mem>> -> memref<1x!tpu.dma_semaphore, #tpu.memory_space<semaphore_mem>>
      %280 = tpu.memref_squeeze %279 : memref<1x!tpu.dma_semaphore, #tpu.memory_space<semaphore_mem>> -> memref<!tpu.dma_semaphore, #tpu.memory_space<semaphore_mem>>
      tpu.enqueue_dma source(%276 : memref<128xf32, #tpu.memory_space<any>>) target(%278 : memref<128xf32, #tpu.memory_space<vmem>>) target_semaphore(%280 : memref<!tpu.dma_semaphore, #tpu.memory_space<semaphore_mem>>)
      %c8_i32_174 = arith.constant 8 : i32
      %281 = arith.muli %42, %c8_i32_174 : i32
      %c7_i32_175 = arith.constant 7 : i32
      %282 = arith.addi %281, %c7_i32_175 : i32
      %c0_i32_176 = arith.constant 0 : i32
      %283 = arith.addi %c0_i32_176, %282 : i32
      %c7_i32_177 = arith.constant 7 : i32
      %284 = arith.minsi %283, %c7_i32_177 : i32
      %c3_i32_178 = arith.constant 3 : i32
      %285 = arith.muli %284, %c3_i32_178 : i32
      %c0_i32_179 = arith.constant 0 : i32
      %286 = arith.addi %285, %c0_i32_179 : i32
      %287 = arith.index_cast %286 : i32 to index
      %288 = memref.load %arg1[%287] : memref<24xi32, #tpu.memory_space<smem>>
      %c0_i32_180 = arith.constant 0 : i32
      %c0_i32_181 = arith.constant 0 : i32
      %c0_i32_182 = arith.constant 0 : i32
      %289 = tpu.memref_slice %arg2[%284, %288, %c0_i32_182] : memref<8x16x128xf32, #tpu.memory_space<any>> -> memref<1x1x128xf32, #tpu.memory_space<any>>
      %290 = tpu.memref_squeeze %289 : memref<1x1x128xf32, #tpu.memory_space<any>> -> memref<128xf32, #tpu.memory_space<any>>
      %c0_i32_183 = arith.constant 0 : i32
      %291 = tpu.memref_slice %arg8[%c0_i32_180, %282, %c0_i32_183] : memref<2x8x384xf32, #tpu.memory_space<vmem>> -> memref<1x1x128xf32, #tpu.memory_space<vmem>>
      %292 = tpu.memref_squeeze %291 : memref<1x1x128xf32, #tpu.memory_space<vmem>> -> memref<128xf32, #tpu.memory_space<vmem>>
      %293 = tpu.memref_slice %arg9[%c0_i32_181] : memref<2x!tpu.dma_semaphore, #tpu.memory_space<semaphore_mem>> -> memref<1x!tpu.dma_semaphore, #tpu.memory_space<semaphore_mem>>
      %294 = tpu.memref_squeeze %293 : memref<1x!tpu.dma_semaphore, #tpu.memory_space<semaphore_mem>> -> memref<!tpu.dma_semaphore, #tpu.memory_space<semaphore_mem>>
      tpu.enqueue_dma source(%290 : memref<128xf32, #tpu.memory_space<any>>) target(%292 : memref<128xf32, #tpu.memory_space<vmem>>) target_semaphore(%294 : memref<!tpu.dma_semaphore, #tpu.memory_space<semaphore_mem>>)
      %c3_i32_184 = arith.constant 3 : i32
      %295 = arith.muli %284, %c3_i32_184 : i32
      %c1_i32_185 = arith.constant 1 : i32
      %296 = arith.addi %295, %c1_i32_185 : i32
      %297 = arith.index_cast %296 : i32 to index
      %298 = memref.load %arg1[%297] : memref<24xi32, #tpu.memory_space<smem>>
      %c0_i32_186 = arith.constant 0 : i32
      %c0_i32_187 = arith.constant 0 : i32
      %c0_i32_188 = arith.constant 0 : i32
      %299 = tpu.memref_slice %arg2[%284, %298, %c0_i32_188] : memref<8x16x128xf32, #tpu.memory_space<any>> -> memref<1x1x128xf32, #tpu.memory_space<any>>
      %300 = tpu.memref_squeeze %299 : memref<1x1x128xf32, #tpu.memory_space<any>> -> memref<128xf32, #tpu.memory_space<any>>
      %c128_i32_189 = arith.constant 128 : i32
      %301 = tpu.memref_slice %arg8[%c0_i32_186, %282, %c128_i32_189] : memref<2x8x384xf32, #tpu.memory_space<vmem>> -> memref<1x1x128xf32, #tpu.memory_space<vmem>>
      %302 = tpu.memref_squeeze %301 : memref<1x1x128xf32, #tpu.memory_space<vmem>> -> memref<128xf32, #tpu.memory_space<vmem>>
      %303 = tpu.memref_slice %arg9[%c0_i32_187] : memref<2x!tpu.dma_semaphore, #tpu.memory_space<semaphore_mem>> -> memref<1x!tpu.dma_semaphore, #tpu.memory_space<semaphore_mem>>
      %304 = tpu.memref_squeeze %303 : memref<1x!tpu.dma_semaphore, #tpu.memory_space<semaphore_mem>> -> memref<!tpu.dma_semaphore, #tpu.memory_space<semaphore_mem>>
      tpu.enqueue_dma source(%300 : memref<128xf32, #tpu.memory_space<any>>) target(%302 : memref<128xf32, #tpu.memory_space<vmem>>) target_semaphore(%304 : memref<!tpu.dma_semaphore, #tpu.memory_space<semaphore_mem>>)
      %c3_i32_190 = arith.constant 3 : i32
      %305 = arith.muli %284, %c3_i32_190 : i32
      %c2_i32_191 = arith.constant 2 : i32
      %306 = arith.addi %305, %c2_i32_191 : i32
      %307 = arith.index_cast %306 : i32 to index
      %308 = memref.load %arg1[%307] : memref<24xi32, #tpu.memory_space<smem>>
      %c0_i32_192 = arith.constant 0 : i32
      %c0_i32_193 = arith.constant 0 : i32
      %c0_i32_194 = arith.constant 0 : i32
      %309 = tpu.memref_slice %arg2[%284, %308, %c0_i32_194] : memref<8x16x128xf32, #tpu.memory_space<any>> -> memref<1x1x128xf32, #tpu.memory_space<any>>
      %310 = tpu.memref_squeeze %309 : memref<1x1x128xf32, #tpu.memory_space<any>> -> memref<128xf32, #tpu.memory_space<any>>
      %c256_i32_195 = arith.constant 256 : i32
      %311 = tpu.memref_slice %arg8[%c0_i32_192, %282, %c256_i32_195] : memref<2x8x384xf32, #tpu.memory_space<vmem>> -> memref<1x1x128xf32, #tpu.memory_space<vmem>>
      %312 = tpu.memref_squeeze %311 : memref<1x1x128xf32, #tpu.memory_space<vmem>> -> memref<128xf32, #tpu.memory_space<vmem>>
      %313 = tpu.memref_slice %arg9[%c0_i32_193] : memref<2x!tpu.dma_semaphore, #tpu.memory_space<semaphore_mem>> -> memref<1x!tpu.dma_semaphore, #tpu.memory_space<semaphore_mem>>
      %314 = tpu.memref_squeeze %313 : memref<1x!tpu.dma_semaphore, #tpu.memory_space<semaphore_mem>> -> memref<!tpu.dma_semaphore, #tpu.memory_space<semaphore_mem>>
      tpu.enqueue_dma source(%310 : memref<128xf32, #tpu.memory_space<any>>) target(%312 : memref<128xf32, #tpu.memory_space<vmem>>) target_semaphore(%314 : memref<!tpu.dma_semaphore, #tpu.memory_space<semaphore_mem>>)
      %c1_i32_196 = arith.constant 1 : i32
    } else {
    }
    %c1_i32_5 = arith.constant 1 : i32
    %13 = arith.addi %arg0, %c1_i32_5 : i32
    %c1_i32_6 = arith.constant 1 : i32
    %14 = arith.cmpi slt, %13, %c1_i32_6 : i32
    %15 = arith.extui %14 : i1 to i32
    %c0_i32_7 = arith.constant 0 : i32
    %16 = arith.cmpi ne, %15, %c0_i32_7 : i32
    scf.if %16 {
      %c1_i32_25 = arith.constant 1 : i32
      %41 = arith.addi %arg0, %c1_i32_25 : i32
      %c1_i32_26 = arith.constant 1 : i32
      %42 = arith.subi %c1_i32_26, %9 : i32
      %c0_i32_27 = arith.constant 0 : i32
      %c1_i32_28 = arith.constant 1 : i32
      %43 = arith.muli %c0_i32_27, %c1_i32_28 : i32
      %c0_i32_29 = arith.constant 0 : i32
      %44 = arith.addi %c0_i32_29, %43 : i32
      %c8_i32 = arith.constant 8 : i32
      %45 = arith.muli %44, %c8_i32 : i32
      %c0_i32_30 = arith.constant 0 : i32
      %46 = arith.addi %45, %c0_i32_30 : i32
      %c8_i32_31 = arith.constant 8 : i32
      %47 = arith.muli %41, %c8_i32_31 : i32
      %48 = arith.addi %47, %46 : i32
      %c7_i32 = arith.constant 7 : i32
      %49 = arith.minsi %48, %c7_i32 : i32
      %c3_i32 = arith.constant 3 : i32
      %50 = arith.muli %49, %c3_i32 : i32
      %c0_i32_32 = arith.constant 0 : i32
      %51 = arith.addi %50, %c0_i32_32 : i32
      %52 = arith.index_cast %51 : i32 to index
      %53 = memref.load %arg1[%52] : memref<24xi32, #tpu.memory_space<smem>>
      %c0_i32_33 = arith.constant 0 : i32
      %54 = tpu.memref_slice %arg2[%49, %53, %c0_i32_33] : memref<8x16x128xf32, #tpu.memory_space<any>> -> memref<1x1x128xf32, #tpu.memory_space<any>>
      %55 = tpu.memref_squeeze %54 : memref<1x1x128xf32, #tpu.memory_space<any>> -> memref<128xf32, #tpu.memory_space<any>>
      %c0_i32_34 = arith.constant 0 : i32
      %56 = tpu.memref_slice %arg8[%42, %46, %c0_i32_34] : memref<2x8x384xf32, #tpu.memory_space<vmem>> -> memref<1x1x128xf32, #tpu.memory_space<vmem>>
      %57 = tpu.memref_squeeze %56 : memref<1x1x128xf32, #tpu.memory_space<vmem>> -> memref<128xf32, #tpu.memory_space<vmem>>
      %58 = tpu.memref_slice %arg9[%42] : memref<2x!tpu.dma_semaphore, #tpu.memory_space<semaphore_mem>> -> memref<1x!tpu.dma_semaphore, #tpu.memory_space<semaphore_mem>>
      %59 = tpu.memref_squeeze %58 : memref<1x!tpu.dma_semaphore, #tpu.memory_space<semaphore_mem>> -> memref<!tpu.dma_semaphore, #tpu.memory_space<semaphore_mem>>
      tpu.enqueue_dma source(%55 : memref<128xf32, #tpu.memory_space<any>>) target(%57 : memref<128xf32, #tpu.memory_space<vmem>>) target_semaphore(%59 : memref<!tpu.dma_semaphore, #tpu.memory_space<semaphore_mem>>)
      %c3_i32_35 = arith.constant 3 : i32
      %60 = arith.muli %49, %c3_i32_35 : i32
      %c1_i32_36 = arith.constant 1 : i32
      %61 = arith.addi %60, %c1_i32_36 : i32
      %62 = arith.index_cast %61 : i32 to index
      %63 = memref.load %arg1[%62] : memref<24xi32, #tpu.memory_space<smem>>
      %c0_i32_37 = arith.constant 0 : i32
      %64 = tpu.memref_slice %arg2[%49, %63, %c0_i32_37] : memref<8x16x128xf32, #tpu.memory_space<any>> -> memref<1x1x128xf32, #tpu.memory_space<any>>
      %65 = tpu.memref_squeeze %64 : memref<1x1x128xf32, #tpu.memory_space<any>> -> memref<128xf32, #tpu.memory_space<any>>
      %c128_i32 = arith.constant 128 : i32
      %66 = tpu.memref_slice %arg8[%42, %46, %c128_i32] : memref<2x8x384xf32, #tpu.memory_space<vmem>> -> memref<1x1x128xf32, #tpu.memory_space<vmem>>
      %67 = tpu.memref_squeeze %66 : memref<1x1x128xf32, #tpu.memory_space<vmem>> -> memref<128xf32, #tpu.memory_space<vmem>>
      %68 = tpu.memref_slice %arg9[%42] : memref<2x!tpu.dma_semaphore, #tpu.memory_space<semaphore_mem>> -> memref<1x!tpu.dma_semaphore, #tpu.memory_space<semaphore_mem>>
      %69 = tpu.memref_squeeze %68 : memref<1x!tpu.dma_semaphore, #tpu.memory_space<semaphore_mem>> -> memref<!tpu.dma_semaphore, #tpu.memory_space<semaphore_mem>>
      tpu.enqueue_dma source(%65 : memref<128xf32, #tpu.memory_space<any>>) target(%67 : memref<128xf32, #tpu.memory_space<vmem>>) target_semaphore(%69 : memref<!tpu.dma_semaphore, #tpu.memory_space<semaphore_mem>>)
      %c3_i32_38 = arith.constant 3 : i32
      %70 = arith.muli %49, %c3_i32_38 : i32
      %c2_i32_39 = arith.constant 2 : i32
      %71 = arith.addi %70, %c2_i32_39 : i32
      %72 = arith.index_cast %71 : i32 to index
      %73 = memref.load %arg1[%72] : memref<24xi32, #tpu.memory_space<smem>>
      %c0_i32_40 = arith.constant 0 : i32
      %74 = tpu.memref_slice %arg2[%49, %73, %c0_i32_40] : memref<8x16x128xf32, #tpu.memory_space<any>> -> memref<1x1x128xf32, #tpu.memory_space<any>>
      %75 = tpu.memref_squeeze %74 : memref<1x1x128xf32, #tpu.memory_space<any>> -> memref<128xf32, #tpu.memory_space<any>>
      %c256_i32 = arith.constant 256 : i32
      %76 = tpu.memref_slice %arg8[%42, %46, %c256_i32] : memref<2x8x384xf32, #tpu.memory_space<vmem>> -> memref<1x1x128xf32, #tpu.memory_space<vmem>>
      %77 = tpu.memref_squeeze %76 : memref<1x1x128xf32, #tpu.memory_space<vmem>> -> memref<128xf32, #tpu.memory_space<vmem>>
      %78 = tpu.memref_slice %arg9[%42] : memref<2x!tpu.dma_semaphore, #tpu.memory_space<semaphore_mem>> -> memref<1x!tpu.dma_semaphore, #tpu.memory_space<semaphore_mem>>
      %79 = tpu.memref_squeeze %78 : memref<1x!tpu.dma_semaphore, #tpu.memory_space<semaphore_mem>> -> memref<!tpu.dma_semaphore, #tpu.memory_space<semaphore_mem>>
      tpu.enqueue_dma source(%75 : memref<128xf32, #tpu.memory_space<any>>) target(%77 : memref<128xf32, #tpu.memory_space<vmem>>) target_semaphore(%79 : memref<!tpu.dma_semaphore, #tpu.memory_space<semaphore_mem>>)
      %c8_i32_41 = arith.constant 8 : i32
      %80 = arith.muli %44, %c8_i32_41 : i32
      %c1_i32_42 = arith.constant 1 : i32
      %81 = arith.addi %80, %c1_i32_42 : i32
      %c8_i32_43 = arith.constant 8 : i32
      %82 = arith.muli %41, %c8_i32_43 : i32
      %83 = arith.addi %82, %81 : i32
      %c7_i32_44 = arith.constant 7 : i32
      %84 = arith.minsi %83, %c7_i32_44 : i32
      %c3_i32_45 = arith.constant 3 : i32
      %85 = arith.muli %84, %c3_i32_45 : i32
      %c0_i32_46 = arith.constant 0 : i32
      %86 = arith.addi %85, %c0_i32_46 : i32
      %87 = arith.index_cast %86 : i32 to index
      %88 = memref.load %arg1[%87] : memref<24xi32, #tpu.memory_space<smem>>
      %c0_i32_47 = arith.constant 0 : i32
      %89 = tpu.memref_slice %arg2[%84, %88, %c0_i32_47] : memref<8x16x128xf32, #tpu.memory_space<any>> -> memref<1x1x128xf32, #tpu.memory_space<any>>
      %90 = tpu.memref_squeeze %89 : memref<1x1x128xf32, #tpu.memory_space<any>> -> memref<128xf32, #tpu.memory_space<any>>
      %c0_i32_48 = arith.constant 0 : i32
      %91 = tpu.memref_slice %arg8[%42, %81, %c0_i32_48] : memref<2x8x384xf32, #tpu.memory_space<vmem>> -> memref<1x1x128xf32, #tpu.memory_space<vmem>>
      %92 = tpu.memref_squeeze %91 : memref<1x1x128xf32, #tpu.memory_space<vmem>> -> memref<128xf32, #tpu.memory_space<vmem>>
      %93 = tpu.memref_slice %arg9[%42] : memref<2x!tpu.dma_semaphore, #tpu.memory_space<semaphore_mem>> -> memref<1x!tpu.dma_semaphore, #tpu.memory_space<semaphore_mem>>
      %94 = tpu.memref_squeeze %93 : memref<1x!tpu.dma_semaphore, #tpu.memory_space<semaphore_mem>> -> memref<!tpu.dma_semaphore, #tpu.memory_space<semaphore_mem>>
      tpu.enqueue_dma source(%90 : memref<128xf32, #tpu.memory_space<any>>) target(%92 : memref<128xf32, #tpu.memory_space<vmem>>) target_semaphore(%94 : memref<!tpu.dma_semaphore, #tpu.memory_space<semaphore_mem>>)
      %c3_i32_49 = arith.constant 3 : i32
      %95 = arith.muli %84, %c3_i32_49 : i32
      %c1_i32_50 = arith.constant 1 : i32
      %96 = arith.addi %95, %c1_i32_50 : i32
      %97 = arith.index_cast %96 : i32 to index
      %98 = memref.load %arg1[%97] : memref<24xi32, #tpu.memory_space<smem>>
      %c0_i32_51 = arith.constant 0 : i32
      %99 = tpu.memref_slice %arg2[%84, %98, %c0_i32_51] : memref<8x16x128xf32, #tpu.memory_space<any>> -> memref<1x1x128xf32, #tpu.memory_space<any>>
      %100 = tpu.memref_squeeze %99 : memref<1x1x128xf32, #tpu.memory_space<any>> -> memref<128xf32, #tpu.memory_space<any>>
      %c128_i32_52 = arith.constant 128 : i32
      %101 = tpu.memref_slice %arg8[%42, %81, %c128_i32_52] : memref<2x8x384xf32, #tpu.memory_space<vmem>> -> memref<1x1x128xf32, #tpu.memory_space<vmem>>
      %102 = tpu.memref_squeeze %101 : memref<1x1x128xf32, #tpu.memory_space<vmem>> -> memref<128xf32, #tpu.memory_space<vmem>>
      %103 = tpu.memref_slice %arg9[%42] : memref<2x!tpu.dma_semaphore, #tpu.memory_space<semaphore_mem>> -> memref<1x!tpu.dma_semaphore, #tpu.memory_space<semaphore_mem>>
      %104 = tpu.memref_squeeze %103 : memref<1x!tpu.dma_semaphore, #tpu.memory_space<semaphore_mem>> -> memref<!tpu.dma_semaphore, #tpu.memory_space<semaphore_mem>>
      tpu.enqueue_dma source(%100 : memref<128xf32, #tpu.memory_space<any>>) target(%102 : memref<128xf32, #tpu.memory_space<vmem>>) target_semaphore(%104 : memref<!tpu.dma_semaphore, #tpu.memory_space<semaphore_mem>>)
      %c3_i32_53 = arith.constant 3 : i32
      %105 = arith.muli %84, %c3_i32_53 : i32
      %c2_i32_54 = arith.constant 2 : i32
      %106 = arith.addi %105, %c2_i32_54 : i32
      %107 = arith.index_cast %106 : i32 to index
      %108 = memref.load %arg1[%107] : memref<24xi32, #tpu.memory_space<smem>>
      %c0_i32_55 = arith.constant 0 : i32
      %109 = tpu.memref_slice %arg2[%84, %108, %c0_i32_55] : memref<8x16x128xf32, #tpu.memory_space<any>> -> memref<1x1x128xf32, #tpu.memory_space<any>>
      %110 = tpu.memref_squeeze %109 : memref<1x1x128xf32, #tpu.memory_space<any>> -> memref<128xf32, #tpu.memory_space<any>>
      %c256_i32_56 = arith.constant 256 : i32
      %111 = tpu.memref_slice %arg8[%42, %81, %c256_i32_56] : memref<2x8x384xf32, #tpu.memory_space<vmem>> -> memref<1x1x128xf32, #tpu.memory_space<vmem>>
      %112 = tpu.memref_squeeze %111 : memref<1x1x128xf32, #tpu.memory_space<vmem>> -> memref<128xf32, #tpu.memory_space<vmem>>
      %113 = tpu.memref_slice %arg9[%42] : memref<2x!tpu.dma_semaphore, #tpu.memory_space<semaphore_mem>> -> memref<1x!tpu.dma_semaphore, #tpu.memory_space<semaphore_mem>>
      %114 = tpu.memref_squeeze %113 : memref<1x!tpu.dma_semaphore, #tpu.memory_space<semaphore_mem>> -> memref<!tpu.dma_semaphore, #tpu.memory_space<semaphore_mem>>
      tpu.enqueue_dma source(%110 : memref<128xf32, #tpu.memory_space<any>>) target(%112 : memref<128xf32, #tpu.memory_space<vmem>>) target_semaphore(%114 : memref<!tpu.dma_semaphore, #tpu.memory_space<semaphore_mem>>)
      %c8_i32_57 = arith.constant 8 : i32
      %115 = arith.muli %44, %c8_i32_57 : i32
      %c2_i32_58 = arith.constant 2 : i32
      %116 = arith.addi %115, %c2_i32_58 : i32
      %c8_i32_59 = arith.constant 8 : i32
      %117 = arith.muli %41, %c8_i32_59 : i32
      %118 = arith.addi %117, %116 : i32
      %c7_i32_60 = arith.constant 7 : i32
      %119 = arith.minsi %118, %c7_i32_60 : i32
      %c3_i32_61 = arith.constant 3 : i32
      %120 = arith.muli %119, %c3_i32_61 : i32
      %c0_i32_62 = arith.constant 0 : i32
      %121 = arith.addi %120, %c0_i32_62 : i32
      %122 = arith.index_cast %121 : i32 to index
      %123 = memref.load %arg1[%122] : memref<24xi32, #tpu.memory_space<smem>>
      %c0_i32_63 = arith.constant 0 : i32
      %124 = tpu.memref_slice %arg2[%119, %123, %c0_i32_63] : memref<8x16x128xf32, #tpu.memory_space<any>> -> memref<1x1x128xf32, #tpu.memory_space<any>>
      %125 = tpu.memref_squeeze %124 : memref<1x1x128xf32, #tpu.memory_space<any>> -> memref<128xf32, #tpu.memory_space<any>>
      %c0_i32_64 = arith.constant 0 : i32
      %126 = tpu.memref_slice %arg8[%42, %116, %c0_i32_64] : memref<2x8x384xf32, #tpu.memory_space<vmem>> -> memref<1x1x128xf32, #tpu.memory_space<vmem>>
      %127 = tpu.memref_squeeze %126 : memref<1x1x128xf32, #tpu.memory_space<vmem>> -> memref<128xf32, #tpu.memory_space<vmem>>
      %128 = tpu.memref_slice %arg9[%42] : memref<2x!tpu.dma_semaphore, #tpu.memory_space<semaphore_mem>> -> memref<1x!tpu.dma_semaphore, #tpu.memory_space<semaphore_mem>>
      %129 = tpu.memref_squeeze %128 : memref<1x!tpu.dma_semaphore, #tpu.memory_space<semaphore_mem>> -> memref<!tpu.dma_semaphore, #tpu.memory_space<semaphore_mem>>
      tpu.enqueue_dma source(%125 : memref<128xf32, #tpu.memory_space<any>>) target(%127 : memref<128xf32, #tpu.memory_space<vmem>>) target_semaphore(%129 : memref<!tpu.dma_semaphore, #tpu.memory_space<semaphore_mem>>)
      %c3_i32_65 = arith.constant 3 : i32
      %130 = arith.muli %119, %c3_i32_65 : i32
      %c1_i32_66 = arith.constant 1 : i32
      %131 = arith.addi %130, %c1_i32_66 : i32
      %132 = arith.index_cast %131 : i32 to index
      %133 = memref.load %arg1[%132] : memref<24xi32, #tpu.memory_space<smem>>
      %c0_i32_67 = arith.constant 0 : i32
      %134 = tpu.memref_slice %arg2[%119, %133, %c0_i32_67] : memref<8x16x128xf32, #tpu.memory_space<any>> -> memref<1x1x128xf32, #tpu.memory_space<any>>
      %135 = tpu.memref_squeeze %134 : memref<1x1x128xf32, #tpu.memory_space<any>> -> memref<128xf32, #tpu.memory_space<any>>
      %c128_i32_68 = arith.constant 128 : i32
      %136 = tpu.memref_slice %arg8[%42, %116, %c128_i32_68] : memref<2x8x384xf32, #tpu.memory_space<vmem>> -> memref<1x1x128xf32, #tpu.memory_space<vmem>>
      %137 = tpu.memref_squeeze %136 : memref<1x1x128xf32, #tpu.memory_space<vmem>> -> memref<128xf32, #tpu.memory_space<vmem>>
      %138 = tpu.memref_slice %arg9[%42] : memref<2x!tpu.dma_semaphore, #tpu.memory_space<semaphore_mem>> -> memref<1x!tpu.dma_semaphore, #tpu.memory_space<semaphore_mem>>
      %139 = tpu.memref_squeeze %138 : memref<1x!tpu.dma_semaphore, #tpu.memory_space<semaphore_mem>> -> memref<!tpu.dma_semaphore, #tpu.memory_space<semaphore_mem>>
      tpu.enqueue_dma source(%135 : memref<128xf32, #tpu.memory_space<any>>) target(%137 : memref<128xf32, #tpu.memory_space<vmem>>) target_semaphore(%139 : memref<!tpu.dma_semaphore, #tpu.memory_space<semaphore_mem>>)
      %c3_i32_69 = arith.constant 3 : i32
      %140 = arith.muli %119, %c3_i32_69 : i32
      %c2_i32_70 = arith.constant 2 : i32
      %141 = arith.addi %140, %c2_i32_70 : i32
      %142 = arith.index_cast %141 : i32 to index
      %143 = memref.load %arg1[%142] : memref<24xi32, #tpu.memory_space<smem>>
      %c0_i32_71 = arith.constant 0 : i32
      %144 = tpu.memref_slice %arg2[%119, %143, %c0_i32_71] : memref<8x16x128xf32, #tpu.memory_space<any>> -> memref<1x1x128xf32, #tpu.memory_space<any>>
      %145 = tpu.memref_squeeze %144 : memref<1x1x128xf32, #tpu.memory_space<any>> -> memref<128xf32, #tpu.memory_space<any>>
      %c256_i32_72 = arith.constant 256 : i32
      %146 = tpu.memref_slice %arg8[%42, %116, %c256_i32_72] : memref<2x8x384xf32, #tpu.memory_space<vmem>> -> memref<1x1x128xf32, #tpu.memory_space<vmem>>
      %147 = tpu.memref_squeeze %146 : memref<1x1x128xf32, #tpu.memory_space<vmem>> -> memref<128xf32, #tpu.memory_space<vmem>>
      %148 = tpu.memref_slice %arg9[%42] : memref<2x!tpu.dma_semaphore, #tpu.memory_space<semaphore_mem>> -> memref<1x!tpu.dma_semaphore, #tpu.memory_space<semaphore_mem>>
      %149 = tpu.memref_squeeze %148 : memref<1x!tpu.dma_semaphore, #tpu.memory_space<semaphore_mem>> -> memref<!tpu.dma_semaphore, #tpu.memory_space<semaphore_mem>>
      tpu.enqueue_dma source(%145 : memref<128xf32, #tpu.memory_space<any>>) target(%147 : memref<128xf32, #tpu.memory_space<vmem>>) target_semaphore(%149 : memref<!tpu.dma_semaphore, #tpu.memory_space<semaphore_mem>>)
      %c8_i32_73 = arith.constant 8 : i32
      %150 = arith.muli %44, %c8_i32_73 : i32
      %c3_i32_74 = arith.constant 3 : i32
      %151 = arith.addi %150, %c3_i32_74 : i32
      %c8_i32_75 = arith.constant 8 : i32
      %152 = arith.muli %41, %c8_i32_75 : i32
      %153 = arith.addi %152, %151 : i32
      %c7_i32_76 = arith.constant 7 : i32
      %154 = arith.minsi %153, %c7_i32_76 : i32
      %c3_i32_77 = arith.constant 3 : i32
      %155 = arith.muli %154, %c3_i32_77 : i32
      %c0_i32_78 = arith.constant 0 : i32
      %156 = arith.addi %155, %c0_i32_78 : i32
      %157 = arith.index_cast %156 : i32 to index
      %158 = memref.load %arg1[%157] : memref<24xi32, #tpu.memory_space<smem>>
      %c0_i32_79 = arith.constant 0 : i32
      %159 = tpu.memref_slice %arg2[%154, %158, %c0_i32_79] : memref<8x16x128xf32, #tpu.memory_space<any>> -> memref<1x1x128xf32, #tpu.memory_space<any>>
      %160 = tpu.memref_squeeze %159 : memref<1x1x128xf32, #tpu.memory_space<any>> -> memref<128xf32, #tpu.memory_space<any>>
      %c0_i32_80 = arith.constant 0 : i32
      %161 = tpu.memref_slice %arg8[%42, %151, %c0_i32_80] : memref<2x8x384xf32, #tpu.memory_space<vmem>> -> memref<1x1x128xf32, #tpu.memory_space<vmem>>
      %162 = tpu.memref_squeeze %161 : memref<1x1x128xf32, #tpu.memory_space<vmem>> -> memref<128xf32, #tpu.memory_space<vmem>>
      %163 = tpu.memref_slice %arg9[%42] : memref<2x!tpu.dma_semaphore, #tpu.memory_space<semaphore_mem>> -> memref<1x!tpu.dma_semaphore, #tpu.memory_space<semaphore_mem>>
      %164 = tpu.memref_squeeze %163 : memref<1x!tpu.dma_semaphore, #tpu.memory_space<semaphore_mem>> -> memref<!tpu.dma_semaphore, #tpu.memory_space<semaphore_mem>>
      tpu.enqueue_dma source(%160 : memref<128xf32, #tpu.memory_space<any>>) target(%162 : memref<128xf32, #tpu.memory_space<vmem>>) target_semaphore(%164 : memref<!tpu.dma_semaphore, #tpu.memory_space<semaphore_mem>>)
      %c3_i32_81 = arith.constant 3 : i32
      %165 = arith.muli %154, %c3_i32_81 : i32
      %c1_i32_82 = arith.constant 1 : i32
      %166 = arith.addi %165, %c1_i32_82 : i32
      %167 = arith.index_cast %166 : i32 to index
      %168 = memref.load %arg1[%167] : memref<24xi32, #tpu.memory_space<smem>>
      %c0_i32_83 = arith.constant 0 : i32
      %169 = tpu.memref_slice %arg2[%154, %168, %c0_i32_83] : memref<8x16x128xf32, #tpu.memory_space<any>> -> memref<1x1x128xf32, #tpu.memory_space<any>>
      %170 = tpu.memref_squeeze %169 : memref<1x1x128xf32, #tpu.memory_space<any>> -> memref<128xf32, #tpu.memory_space<any>>
      %c128_i32_84 = arith.constant 128 : i32
      %171 = tpu.memref_slice %arg8[%42, %151, %c128_i32_84] : memref<2x8x384xf32, #tpu.memory_space<vmem>> -> memref<1x1x128xf32, #tpu.memory_space<vmem>>
      %172 = tpu.memref_squeeze %171 : memref<1x1x128xf32, #tpu.memory_space<vmem>> -> memref<128xf32, #tpu.memory_space<vmem>>
      %173 = tpu.memref_slice %arg9[%42] : memref<2x!tpu.dma_semaphore, #tpu.memory_space<semaphore_mem>> -> memref<1x!tpu.dma_semaphore, #tpu.memory_space<semaphore_mem>>
      %174 = tpu.memref_squeeze %173 : memref<1x!tpu.dma_semaphore, #tpu.memory_space<semaphore_mem>> -> memref<!tpu.dma_semaphore, #tpu.memory_space<semaphore_mem>>
      tpu.enqueue_dma source(%170 : memref<128xf32, #tpu.memory_space<any>>) target(%172 : memref<128xf32, #tpu.memory_space<vmem>>) target_semaphore(%174 : memref<!tpu.dma_semaphore, #tpu.memory_space<semaphore_mem>>)
      %c3_i32_85 = arith.constant 3 : i32
      %175 = arith.muli %154, %c3_i32_85 : i32
      %c2_i32_86 = arith.constant 2 : i32
      %176 = arith.addi %175, %c2_i32_86 : i32
      %177 = arith.index_cast %176 : i32 to index
      %178 = memref.load %arg1[%177] : memref<24xi32, #tpu.memory_space<smem>>
      %c0_i32_87 = arith.constant 0 : i32
      %179 = tpu.memref_slice %arg2[%154, %178, %c0_i32_87] : memref<8x16x128xf32, #tpu.memory_space<any>> -> memref<1x1x128xf32, #tpu.memory_space<any>>
      %180 = tpu.memref_squeeze %179 : memref<1x1x128xf32, #tpu.memory_space<any>> -> memref<128xf32, #tpu.memory_space<any>>
      %c256_i32_88 = arith.constant 256 : i32
      %181 = tpu.memref_slice %arg8[%42, %151, %c256_i32_88] : memref<2x8x384xf32, #tpu.memory_space<vmem>> -> memref<1x1x128xf32, #tpu.memory_space<vmem>>
      %182 = tpu.memref_squeeze %181 : memref<1x1x128xf32, #tpu.memory_space<vmem>> -> memref<128xf32, #tpu.memory_space<vmem>>
      %183 = tpu.memref_slice %arg9[%42] : memref<2x!tpu.dma_semaphore, #tpu.memory_space<semaphore_mem>> -> memref<1x!tpu.dma_semaphore, #tpu.memory_space<semaphore_mem>>
      %184 = tpu.memref_squeeze %183 : memref<1x!tpu.dma_semaphore, #tpu.memory_space<semaphore_mem>> -> memref<!tpu.dma_semaphore, #tpu.memory_space<semaphore_mem>>
      tpu.enqueue_dma source(%180 : memref<128xf32, #tpu.memory_space<any>>) target(%182 : memref<128xf32, #tpu.memory_space<vmem>>) target_semaphore(%184 : memref<!tpu.dma_semaphore, #tpu.memory_space<semaphore_mem>>)
      %c8_i32_89 = arith.constant 8 : i32
      %185 = arith.muli %44, %c8_i32_89 : i32
      %c4_i32 = arith.constant 4 : i32
      %186 = arith.addi %185, %c4_i32 : i32
      %c8_i32_90 = arith.constant 8 : i32
      %187 = arith.muli %41, %c8_i32_90 : i32
      %188 = arith.addi %187, %186 : i32
      %c7_i32_91 = arith.constant 7 : i32
      %189 = arith.minsi %188, %c7_i32_91 : i32
      %c3_i32_92 = arith.constant 3 : i32
      %190 = arith.muli %189, %c3_i32_92 : i32
      %c0_i32_93 = arith.constant 0 : i32
      %191 = arith.addi %190, %c0_i32_93 : i32
      %192 = arith.index_cast %191 : i32 to index
      %193 = memref.load %arg1[%192] : memref<24xi32, #tpu.memory_space<smem>>
      %c0_i32_94 = arith.constant 0 : i32
      %194 = tpu.memref_slice %arg2[%189, %193, %c0_i32_94] : memref<8x16x128xf32, #tpu.memory_space<any>> -> memref<1x1x128xf32, #tpu.memory_space<any>>
      %195 = tpu.memref_squeeze %194 : memref<1x1x128xf32, #tpu.memory_space<any>> -> memref<128xf32, #tpu.memory_space<any>>
      %c0_i32_95 = arith.constant 0 : i32
      %196 = tpu.memref_slice %arg8[%42, %186, %c0_i32_95] : memref<2x8x384xf32, #tpu.memory_space<vmem>> -> memref<1x1x128xf32, #tpu.memory_space<vmem>>
      %197 = tpu.memref_squeeze %196 : memref<1x1x128xf32, #tpu.memory_space<vmem>> -> memref<128xf32, #tpu.memory_space<vmem>>
      %198 = tpu.memref_slice %arg9[%42] : memref<2x!tpu.dma_semaphore, #tpu.memory_space<semaphore_mem>> -> memref<1x!tpu.dma_semaphore, #tpu.memory_space<semaphore_mem>>
      %199 = tpu.memref_squeeze %198 : memref<1x!tpu.dma_semaphore, #tpu.memory_space<semaphore_mem>> -> memref<!tpu.dma_semaphore, #tpu.memory_space<semaphore_mem>>
      tpu.enqueue_dma source(%195 : memref<128xf32, #tpu.memory_space<any>>) target(%197 : memref<128xf32, #tpu.memory_space<vmem>>) target_semaphore(%199 : memref<!tpu.dma_semaphore, #tpu.memory_space<semaphore_mem>>)
      %c3_i32_96 = arith.constant 3 : i32
      %200 = arith.muli %189, %c3_i32_96 : i32
      %c1_i32_97 = arith.constant 1 : i32
      %201 = arith.addi %200, %c1_i32_97 : i32
      %202 = arith.index_cast %201 : i32 to index
      %203 = memref.load %arg1[%202] : memref<24xi32, #tpu.memory_space<smem>>
      %c0_i32_98 = arith.constant 0 : i32
      %204 = tpu.memref_slice %arg2[%189, %203, %c0_i32_98] : memref<8x16x128xf32, #tpu.memory_space<any>> -> memref<1x1x128xf32, #tpu.memory_space<any>>
      %205 = tpu.memref_squeeze %204 : memref<1x1x128xf32, #tpu.memory_space<any>> -> memref<128xf32, #tpu.memory_space<any>>
      %c128_i32_99 = arith.constant 128 : i32
      %206 = tpu.memref_slice %arg8[%42, %186, %c128_i32_99] : memref<2x8x384xf32, #tpu.memory_space<vmem>> -> memref<1x1x128xf32, #tpu.memory_space<vmem>>
      %207 = tpu.memref_squeeze %206 : memref<1x1x128xf32, #tpu.memory_space<vmem>> -> memref<128xf32, #tpu.memory_space<vmem>>
      %208 = tpu.memref_slice %arg9[%42] : memref<2x!tpu.dma_semaphore, #tpu.memory_space<semaphore_mem>> -> memref<1x!tpu.dma_semaphore, #tpu.memory_space<semaphore_mem>>
      %209 = tpu.memref_squeeze %208 : memref<1x!tpu.dma_semaphore, #tpu.memory_space<semaphore_mem>> -> memref<!tpu.dma_semaphore, #tpu.memory_space<semaphore_mem>>
      tpu.enqueue_dma source(%205 : memref<128xf32, #tpu.memory_space<any>>) target(%207 : memref<128xf32, #tpu.memory_space<vmem>>) target_semaphore(%209 : memref<!tpu.dma_semaphore, #tpu.memory_space<semaphore_mem>>)
      %c3_i32_100 = arith.constant 3 : i32
      %210 = arith.muli %189, %c3_i32_100 : i32
      %c2_i32_101 = arith.constant 2 : i32
      %211 = arith.addi %210, %c2_i32_101 : i32
      %212 = arith.index_cast %211 : i32 to index
      %213 = memref.load %arg1[%212] : memref<24xi32, #tpu.memory_space<smem>>
      %c0_i32_102 = arith.constant 0 : i32
      %214 = tpu.memref_slice %arg2[%189, %213, %c0_i32_102] : memref<8x16x128xf32, #tpu.memory_space<any>> -> memref<1x1x128xf32, #tpu.memory_space<any>>
      %215 = tpu.memref_squeeze %214 : memref<1x1x128xf32, #tpu.memory_space<any>> -> memref<128xf32, #tpu.memory_space<any>>
      %c256_i32_103 = arith.constant 256 : i32
      %216 = tpu.memref_slice %arg8[%42, %186, %c256_i32_103] : memref<2x8x384xf32, #tpu.memory_space<vmem>> -> memref<1x1x128xf32, #tpu.memory_space<vmem>>
      %217 = tpu.memref_squeeze %216 : memref<1x1x128xf32, #tpu.memory_space<vmem>> -> memref<128xf32, #tpu.memory_space<vmem>>
      %218 = tpu.memref_slice %arg9[%42] : memref<2x!tpu.dma_semaphore, #tpu.memory_space<semaphore_mem>> -> memref<1x!tpu.dma_semaphore, #tpu.memory_space<semaphore_mem>>
      %219 = tpu.memref_squeeze %218 : memref<1x!tpu.dma_semaphore, #tpu.memory_space<semaphore_mem>> -> memref<!tpu.dma_semaphore, #tpu.memory_space<semaphore_mem>>
      tpu.enqueue_dma source(%215 : memref<128xf32, #tpu.memory_space<any>>) target(%217 : memref<128xf32, #tpu.memory_space<vmem>>) target_semaphore(%219 : memref<!tpu.dma_semaphore, #tpu.memory_space<semaphore_mem>>)
      %c8_i32_104 = arith.constant 8 : i32
      %220 = arith.muli %44, %c8_i32_104 : i32
      %c5_i32 = arith.constant 5 : i32
      %221 = arith.addi %220, %c5_i32 : i32
      %c8_i32_105 = arith.constant 8 : i32
      %222 = arith.muli %41, %c8_i32_105 : i32
      %223 = arith.addi %222, %221 : i32
      %c7_i32_106 = arith.constant 7 : i32
      %224 = arith.minsi %223, %c7_i32_106 : i32
      %c3_i32_107 = arith.constant 3 : i32
      %225 = arith.muli %224, %c3_i32_107 : i32
      %c0_i32_108 = arith.constant 0 : i32
      %226 = arith.addi %225, %c0_i32_108 : i32
      %227 = arith.index_cast %226 : i32 to index
      %228 = memref.load %arg1[%227] : memref<24xi32, #tpu.memory_space<smem>>
      %c0_i32_109 = arith.constant 0 : i32
      %229 = tpu.memref_slice %arg2[%224, %228, %c0_i32_109] : memref<8x16x128xf32, #tpu.memory_space<any>> -> memref<1x1x128xf32, #tpu.memory_space<any>>
      %230 = tpu.memref_squeeze %229 : memref<1x1x128xf32, #tpu.memory_space<any>> -> memref<128xf32, #tpu.memory_space<any>>
      %c0_i32_110 = arith.constant 0 : i32
      %231 = tpu.memref_slice %arg8[%42, %221, %c0_i32_110] : memref<2x8x384xf32, #tpu.memory_space<vmem>> -> memref<1x1x128xf32, #tpu.memory_space<vmem>>
      %232 = tpu.memref_squeeze %231 : memref<1x1x128xf32, #tpu.memory_space<vmem>> -> memref<128xf32, #tpu.memory_space<vmem>>
      %233 = tpu.memref_slice %arg9[%42] : memref<2x!tpu.dma_semaphore, #tpu.memory_space<semaphore_mem>> -> memref<1x!tpu.dma_semaphore, #tpu.memory_space<semaphore_mem>>
      %234 = tpu.memref_squeeze %233 : memref<1x!tpu.dma_semaphore, #tpu.memory_space<semaphore_mem>> -> memref<!tpu.dma_semaphore, #tpu.memory_space<semaphore_mem>>
      tpu.enqueue_dma source(%230 : memref<128xf32, #tpu.memory_space<any>>) target(%232 : memref<128xf32, #tpu.memory_space<vmem>>) target_semaphore(%234 : memref<!tpu.dma_semaphore, #tpu.memory_space<semaphore_mem>>)
      %c3_i32_111 = arith.constant 3 : i32
      %235 = arith.muli %224, %c3_i32_111 : i32
      %c1_i32_112 = arith.constant 1 : i32
      %236 = arith.addi %235, %c1_i32_112 : i32
      %237 = arith.index_cast %236 : i32 to index
      %238 = memref.load %arg1[%237] : memref<24xi32, #tpu.memory_space<smem>>
      %c0_i32_113 = arith.constant 0 : i32
      %239 = tpu.memref_slice %arg2[%224, %238, %c0_i32_113] : memref<8x16x128xf32, #tpu.memory_space<any>> -> memref<1x1x128xf32, #tpu.memory_space<any>>
      %240 = tpu.memref_squeeze %239 : memref<1x1x128xf32, #tpu.memory_space<any>> -> memref<128xf32, #tpu.memory_space<any>>
      %c128_i32_114 = arith.constant 128 : i32
      %241 = tpu.memref_slice %arg8[%42, %221, %c128_i32_114] : memref<2x8x384xf32, #tpu.memory_space<vmem>> -> memref<1x1x128xf32, #tpu.memory_space<vmem>>
      %242 = tpu.memref_squeeze %241 : memref<1x1x128xf32, #tpu.memory_space<vmem>> -> memref<128xf32, #tpu.memory_space<vmem>>
      %243 = tpu.memref_slice %arg9[%42] : memref<2x!tpu.dma_semaphore, #tpu.memory_space<semaphore_mem>> -> memref<1x!tpu.dma_semaphore, #tpu.memory_space<semaphore_mem>>
      %244 = tpu.memref_squeeze %243 : memref<1x!tpu.dma_semaphore, #tpu.memory_space<semaphore_mem>> -> memref<!tpu.dma_semaphore, #tpu.memory_space<semaphore_mem>>
      tpu.enqueue_dma source(%240 : memref<128xf32, #tpu.memory_space<any>>) target(%242 : memref<128xf32, #tpu.memory_space<vmem>>) target_semaphore(%244 : memref<!tpu.dma_semaphore, #tpu.memory_space<semaphore_mem>>)
      %c3_i32_115 = arith.constant 3 : i32
      %245 = arith.muli %224, %c3_i32_115 : i32
      %c2_i32_116 = arith.constant 2 : i32
      %246 = arith.addi %245, %c2_i32_116 : i32
      %247 = arith.index_cast %246 : i32 to index
      %248 = memref.load %arg1[%247] : memref<24xi32, #tpu.memory_space<smem>>
      %c0_i32_117 = arith.constant 0 : i32
      %249 = tpu.memref_slice %arg2[%224, %248, %c0_i32_117] : memref<8x16x128xf32, #tpu.memory_space<any>> -> memref<1x1x128xf32, #tpu.memory_space<any>>
      %250 = tpu.memref_squeeze %249 : memref<1x1x128xf32, #tpu.memory_space<any>> -> memref<128xf32, #tpu.memory_space<any>>
      %c256_i32_118 = arith.constant 256 : i32
      %251 = tpu.memref_slice %arg8[%42, %221, %c256_i32_118] : memref<2x8x384xf32, #tpu.memory_space<vmem>> -> memref<1x1x128xf32, #tpu.memory_space<vmem>>
      %252 = tpu.memref_squeeze %251 : memref<1x1x128xf32, #tpu.memory_space<vmem>> -> memref<128xf32, #tpu.memory_space<vmem>>
      %253 = tpu.memref_slice %arg9[%42] : memref<2x!tpu.dma_semaphore, #tpu.memory_space<semaphore_mem>> -> memref<1x!tpu.dma_semaphore, #tpu.memory_space<semaphore_mem>>
      %254 = tpu.memref_squeeze %253 : memref<1x!tpu.dma_semaphore, #tpu.memory_space<semaphore_mem>> -> memref<!tpu.dma_semaphore, #tpu.memory_space<semaphore_mem>>
      tpu.enqueue_dma source(%250 : memref<128xf32, #tpu.memory_space<any>>) target(%252 : memref<128xf32, #tpu.memory_space<vmem>>) target_semaphore(%254 : memref<!tpu.dma_semaphore, #tpu.memory_space<semaphore_mem>>)
      %c8_i32_119 = arith.constant 8 : i32
      %255 = arith.muli %44, %c8_i32_119 : i32
      %c6_i32 = arith.constant 6 : i32
      %256 = arith.addi %255, %c6_i32 : i32
      %c8_i32_120 = arith.constant 8 : i32
      %257 = arith.muli %41, %c8_i32_120 : i32
      %258 = arith.addi %257, %256 : i32
      %c7_i32_121 = arith.constant 7 : i32
      %259 = arith.minsi %258, %c7_i32_121 : i32
      %c3_i32_122 = arith.constant 3 : i32
      %260 = arith.muli %259, %c3_i32_122 : i32
      %c0_i32_123 = arith.constant 0 : i32
      %261 = arith.addi %260, %c0_i32_123 : i32
      %262 = arith.index_cast %261 : i32 to index
      %263 = memref.load %arg1[%262] : memref<24xi32, #tpu.memory_space<smem>>
      %c0_i32_124 = arith.constant 0 : i32
      %264 = tpu.memref_slice %arg2[%259, %263, %c0_i32_124] : memref<8x16x128xf32, #tpu.memory_space<any>> -> memref<1x1x128xf32, #tpu.memory_space<any>>
      %265 = tpu.memref_squeeze %264 : memref<1x1x128xf32, #tpu.memory_space<any>> -> memref<128xf32, #tpu.memory_space<any>>
      %c0_i32_125 = arith.constant 0 : i32
      %266 = tpu.memref_slice %arg8[%42, %256, %c0_i32_125] : memref<2x8x384xf32, #tpu.memory_space<vmem>> -> memref<1x1x128xf32, #tpu.memory_space<vmem>>
      %267 = tpu.memref_squeeze %266 : memref<1x1x128xf32, #tpu.memory_space<vmem>> -> memref<128xf32, #tpu.memory_space<vmem>>
      %268 = tpu.memref_slice %arg9[%42] : memref<2x!tpu.dma_semaphore, #tpu.memory_space<semaphore_mem>> -> memref<1x!tpu.dma_semaphore, #tpu.memory_space<semaphore_mem>>
      %269 = tpu.memref_squeeze %268 : memref<1x!tpu.dma_semaphore, #tpu.memory_space<semaphore_mem>> -> memref<!tpu.dma_semaphore, #tpu.memory_space<semaphore_mem>>
      tpu.enqueue_dma source(%265 : memref<128xf32, #tpu.memory_space<any>>) target(%267 : memref<128xf32, #tpu.memory_space<vmem>>) target_semaphore(%269 : memref<!tpu.dma_semaphore, #tpu.memory_space<semaphore_mem>>)
      %c3_i32_126 = arith.constant 3 : i32
      %270 = arith.muli %259, %c3_i32_126 : i32
      %c1_i32_127 = arith.constant 1 : i32
      %271 = arith.addi %270, %c1_i32_127 : i32
      %272 = arith.index_cast %271 : i32 to index
      %273 = memref.load %arg1[%272] : memref<24xi32, #tpu.memory_space<smem>>
      %c0_i32_128 = arith.constant 0 : i32
      %274 = tpu.memref_slice %arg2[%259, %273, %c0_i32_128] : memref<8x16x128xf32, #tpu.memory_space<any>> -> memref<1x1x128xf32, #tpu.memory_space<any>>
      %275 = tpu.memref_squeeze %274 : memref<1x1x128xf32, #tpu.memory_space<any>> -> memref<128xf32, #tpu.memory_space<any>>
      %c128_i32_129 = arith.constant 128 : i32
      %276 = tpu.memref_slice %arg8[%42, %256, %c128_i32_129] : memref<2x8x384xf32, #tpu.memory_space<vmem>> -> memref<1x1x128xf32, #tpu.memory_space<vmem>>
      %277 = tpu.memref_squeeze %276 : memref<1x1x128xf32, #tpu.memory_space<vmem>> -> memref<128xf32, #tpu.memory_space<vmem>>
      %278 = tpu.memref_slice %arg9[%42] : memref<2x!tpu.dma_semaphore, #tpu.memory_space<semaphore_mem>> -> memref<1x!tpu.dma_semaphore, #tpu.memory_space<semaphore_mem>>
      %279 = tpu.memref_squeeze %278 : memref<1x!tpu.dma_semaphore, #tpu.memory_space<semaphore_mem>> -> memref<!tpu.dma_semaphore, #tpu.memory_space<semaphore_mem>>
      tpu.enqueue_dma source(%275 : memref<128xf32, #tpu.memory_space<any>>) target(%277 : memref<128xf32, #tpu.memory_space<vmem>>) target_semaphore(%279 : memref<!tpu.dma_semaphore, #tpu.memory_space<semaphore_mem>>)
      %c3_i32_130 = arith.constant 3 : i32
      %280 = arith.muli %259, %c3_i32_130 : i32
      %c2_i32_131 = arith.constant 2 : i32
      %281 = arith.addi %280, %c2_i32_131 : i32
      %282 = arith.index_cast %281 : i32 to index
      %283 = memref.load %arg1[%282] : memref<24xi32, #tpu.memory_space<smem>>
      %c0_i32_132 = arith.constant 0 : i32
      %284 = tpu.memref_slice %arg2[%259, %283, %c0_i32_132] : memref<8x16x128xf32, #tpu.memory_space<any>> -> memref<1x1x128xf32, #tpu.memory_space<any>>
      %285 = tpu.memref_squeeze %284 : memref<1x1x128xf32, #tpu.memory_space<any>> -> memref<128xf32, #tpu.memory_space<any>>
      %c256_i32_133 = arith.constant 256 : i32
      %286 = tpu.memref_slice %arg8[%42, %256, %c256_i32_133] : memref<2x8x384xf32, #tpu.memory_space<vmem>> -> memref<1x1x128xf32, #tpu.memory_space<vmem>>
      %287 = tpu.memref_squeeze %286 : memref<1x1x128xf32, #tpu.memory_space<vmem>> -> memref<128xf32, #tpu.memory_space<vmem>>
      %288 = tpu.memref_slice %arg9[%42] : memref<2x!tpu.dma_semaphore, #tpu.memory_space<semaphore_mem>> -> memref<1x!tpu.dma_semaphore, #tpu.memory_space<semaphore_mem>>
      %289 = tpu.memref_squeeze %288 : memref<1x!tpu.dma_semaphore, #tpu.memory_space<semaphore_mem>> -> memref<!tpu.dma_semaphore, #tpu.memory_space<semaphore_mem>>
      tpu.enqueue_dma source(%285 : memref<128xf32, #tpu.memory_space<any>>) target(%287 : memref<128xf32, #tpu.memory_space<vmem>>) target_semaphore(%289 : memref<!tpu.dma_semaphore, #tpu.memory_space<semaphore_mem>>)
      %c8_i32_134 = arith.constant 8 : i32
      %290 = arith.muli %44, %c8_i32_134 : i32
      %c7_i32_135 = arith.constant 7 : i32
      %291 = arith.addi %290, %c7_i32_135 : i32
      %c8_i32_136 = arith.constant 8 : i32
      %292 = arith.muli %41, %c8_i32_136 : i32
      %293 = arith.addi %292, %291 : i32
      %c7_i32_137 = arith.constant 7 : i32
      %294 = arith.minsi %293, %c7_i32_137 : i32
      %c3_i32_138 = arith.constant 3 : i32
      %295 = arith.muli %294, %c3_i32_138 : i32
      %c0_i32_139 = arith.constant 0 : i32
      %296 = arith.addi %295, %c0_i32_139 : i32
      %297 = arith.index_cast %296 : i32 to index
      %298 = memref.load %arg1[%297] : memref<24xi32, #tpu.memory_space<smem>>
      %c0_i32_140 = arith.constant 0 : i32
      %299 = tpu.memref_slice %arg2[%294, %298, %c0_i32_140] : memref<8x16x128xf32, #tpu.memory_space<any>> -> memref<1x1x128xf32, #tpu.memory_space<any>>
      %300 = tpu.memref_squeeze %299 : memref<1x1x128xf32, #tpu.memory_space<any>> -> memref<128xf32, #tpu.memory_space<any>>
      %c0_i32_141 = arith.constant 0 : i32
      %301 = tpu.memref_slice %arg8[%42, %291, %c0_i32_141] : memref<2x8x384xf32, #tpu.memory_space<vmem>> -> memref<1x1x128xf32, #tpu.memory_space<vmem>>
      %302 = tpu.memref_squeeze %301 : memref<1x1x128xf32, #tpu.memory_space<vmem>> -> memref<128xf32, #tpu.memory_space<vmem>>
      %303 = tpu.memref_slice %arg9[%42] : memref<2x!tpu.dma_semaphore, #tpu.memory_space<semaphore_mem>> -> memref<1x!tpu.dma_semaphore, #tpu.memory_space<semaphore_mem>>
      %304 = tpu.memref_squeeze %303 : memref<1x!tpu.dma_semaphore, #tpu.memory_space<semaphore_mem>> -> memref<!tpu.dma_semaphore, #tpu.memory_space<semaphore_mem>>
      tpu.enqueue_dma source(%300 : memref<128xf32, #tpu.memory_space<any>>) target(%302 : memref<128xf32, #tpu.memory_space<vmem>>) target_semaphore(%304 : memref<!tpu.dma_semaphore, #tpu.memory_space<semaphore_mem>>)
      %c3_i32_142 = arith.constant 3 : i32
      %305 = arith.muli %294, %c3_i32_142 : i32
      %c1_i32_143 = arith.constant 1 : i32
      %306 = arith.addi %305, %c1_i32_143 : i32
      %307 = arith.index_cast %306 : i32 to index
      %308 = memref.load %arg1[%307] : memref<24xi32, #tpu.memory_space<smem>>
      %c0_i32_144 = arith.constant 0 : i32
      %309 = tpu.memref_slice %arg2[%294, %308, %c0_i32_144] : memref<8x16x128xf32, #tpu.memory_space<any>> -> memref<1x1x128xf32, #tpu.memory_space<any>>
      %310 = tpu.memref_squeeze %309 : memref<1x1x128xf32, #tpu.memory_space<any>> -> memref<128xf32, #tpu.memory_space<any>>
      %c128_i32_145 = arith.constant 128 : i32
      %311 = tpu.memref_slice %arg8[%42, %291, %c128_i32_145] : memref<2x8x384xf32, #tpu.memory_space<vmem>> -> memref<1x1x128xf32, #tpu.memory_space<vmem>>
      %312 = tpu.memref_squeeze %311 : memref<1x1x128xf32, #tpu.memory_space<vmem>> -> memref<128xf32, #tpu.memory_space<vmem>>
      %313 = tpu.memref_slice %arg9[%42] : memref<2x!tpu.dma_semaphore, #tpu.memory_space<semaphore_mem>> -> memref<1x!tpu.dma_semaphore, #tpu.memory_space<semaphore_mem>>
      %314 = tpu.memref_squeeze %313 : memref<1x!tpu.dma_semaphore, #tpu.memory_space<semaphore_mem>> -> memref<!tpu.dma_semaphore, #tpu.memory_space<semaphore_mem>>
      tpu.enqueue_dma source(%310 : memref<128xf32, #tpu.memory_space<any>>) target(%312 : memref<128xf32, #tpu.memory_space<vmem>>) target_semaphore(%314 : memref<!tpu.dma_semaphore, #tpu.memory_space<semaphore_mem>>)
      %c3_i32_146 = arith.constant 3 : i32
      %315 = arith.muli %294, %c3_i32_146 : i32
      %c2_i32_147 = arith.constant 2 : i32
      %316 = arith.addi %315, %c2_i32_147 : i32
      %317 = arith.index_cast %316 : i32 to index
      %318 = memref.load %arg1[%317] : memref<24xi32, #tpu.memory_space<smem>>
      %c0_i32_148 = arith.constant 0 : i32
      %319 = tpu.memref_slice %arg2[%294, %318, %c0_i32_148] : memref<8x16x128xf32, #tpu.memory_space<any>> -> memref<1x1x128xf32, #tpu.memory_space<any>>
      %320 = tpu.memref_squeeze %319 : memref<1x1x128xf32, #tpu.memory_space<any>> -> memref<128xf32, #tpu.memory_space<any>>
      %c256_i32_149 = arith.constant 256 : i32
      %321 = tpu.memref_slice %arg8[%42, %291, %c256_i32_149] : memref<2x8x384xf32, #tpu.memory_space<vmem>> -> memref<1x1x128xf32, #tpu.memory_space<vmem>>
      %322 = tpu.memref_squeeze %321 : memref<1x1x128xf32, #tpu.memory_space<vmem>> -> memref<128xf32, #tpu.memory_space<vmem>>
      %323 = tpu.memref_slice %arg9[%42] : memref<2x!tpu.dma_semaphore, #tpu.memory_space<semaphore_mem>> -> memref<1x!tpu.dma_semaphore, #tpu.memory_space<semaphore_mem>>
      %324 = tpu.memref_squeeze %323 : memref<1x!tpu.dma_semaphore, #tpu.memory_space<semaphore_mem>> -> memref<!tpu.dma_semaphore, #tpu.memory_space<semaphore_mem>>
      tpu.enqueue_dma source(%320 : memref<128xf32, #tpu.memory_space<any>>) target(%322 : memref<128xf32, #tpu.memory_space<vmem>>) target_semaphore(%324 : memref<!tpu.dma_semaphore, #tpu.memory_space<semaphore_mem>>)
      %c1_i32_150 = arith.constant 1 : i32
    } else {
    }
    %c0_i32_8 = arith.constant 0 : i32
    %c0_i32_9 = arith.constant 0 : i32
    %17 = tpu.memref_slice %arg8[%9, %c0_i32_8, %c0_i32_9] : memref<2x8x384xf32, #tpu.memory_space<vmem>> -> memref<1x8x384xf32, #tpu.memory_space<vmem>>
    %18 = tpu.memref_squeeze %17 : memref<1x8x384xf32, #tpu.memory_space<vmem>> -> memref<8x384xf32, #tpu.memory_space<vmem>>
    %c0_i32_10 = arith.constant 0 : i32
    %c0_i32_11 = arith.constant 0 : i32
    %19 = tpu.memref_slice %arg8[%9, %c0_i32_10, %c0_i32_11] : memref<2x8x384xf32, #tpu.memory_space<vmem>> -> memref<1x8x384xf32, #tpu.memory_space<vmem>>
    %20 = tpu.memref_squeeze %19 : memref<1x8x384xf32, #tpu.memory_space<vmem>> -> memref<8x384xf32, #tpu.memory_space<vmem>>
    %21 = tpu.memref_slice %arg9[%9] : memref<2x!tpu.dma_semaphore, #tpu.memory_space<semaphore_mem>> -> memref<1x!tpu.dma_semaphore, #tpu.memory_space<semaphore_mem>>
    %22 = tpu.memref_squeeze %21 : memref<1x!tpu.dma_semaphore, #tpu.memory_space<semaphore_mem>> -> memref<!tpu.dma_semaphore, #tpu.memory_space<semaphore_mem>>
    tpu.wait_dma2 semaphore(%22 : memref<!tpu.dma_semaphore, #tpu.memory_space<semaphore_mem>>) src(%18 : memref<8x384xf32, #tpu.memory_space<vmem>>) dst(%20 : memref<8x384xf32, #tpu.memory_space<vmem>>)
    %23 = arith.index_cast %9 : i32 to index
    %c0 = arith.constant 0 : index
    %c0_12 = arith.constant 0 : index
    %24 = vector.load %arg8[%23, %c0, %c0_12] : memref<2x8x384xf32, #tpu.memory_space<vmem>>, vector<1x8x384xf32>
    %25 = vector.shape_cast %24 : vector<1x8x384xf32> to vector<8x384xf32>
    %26 = arith.truncf %25 : vector<8x384xf32> to vector<8x384xbf16>
    %c0_13 = arith.constant 0 : index
    %c0_14 = arith.constant 0 : index
    %27 = vector.load %arg3[%c0_13, %c0_14] : memref<384x512xbf16, #tpu.memory_space<vmem>>, vector<384x512xbf16>
    %cst = arith.constant dense<0.000000e+00> : vector<8x512xf32>
    %28 = tpu.matmul %26, %27, %cst {dimension_numbers = #tpu.dot_dimension_numbers<[1], [0], [0], [1], [0, 0, 1, 1], [], []>} : vector<8x384xbf16>, vector<384x512xbf16>, vector<8x512xf32> -> vector<8x512xf32>
    %c0_15 = arith.constant 0 : index
    %c0_16 = arith.constant 0 : index
    %29 = vector.load %arg4[%c0_15, %c0_16] : memref<1x512xf32, #tpu.memory_space<vmem>>, vector<1x512xf32>
    %30 = vector.broadcast %29 : vector<1x512xf32> to vector<8x512xf32>
    %31 = arith.addf %28, %30 : vector<8x512xf32>
    %cst_17 = arith.constant 0.000000e+00 : f32
    %32 = vector.broadcast %cst_17 : f32 to vector<8x512xf32>
    %33 = arith.maximumf %31, %32 : vector<8x512xf32>
    %34 = arith.truncf %33 : vector<8x512xf32> to vector<8x512xbf16>
    %c0_18 = arith.constant 0 : index
    %c0_19 = arith.constant 0 : index
    %35 = vector.load %arg5[%c0_18, %c0_19] : memref<512x128xbf16, #tpu.memory_space<vmem>>, vector<512x128xbf16>
    %cst_20 = arith.constant dense<0.000000e+00> : vector<8x128xf32>
    %36 = tpu.matmul %34, %35, %cst_20 {dimension_numbers = #tpu.dot_dimension_numbers<[1], [0], [0], [1], [0, 0, 1, 1], [], []>} : vector<8x512xbf16>, vector<512x128xbf16>, vector<8x128xf32> -> vector<8x128xf32>
    %c0_21 = arith.constant 0 : index
    %c0_22 = arith.constant 0 : index
    %37 = vector.load %arg6[%c0_21, %c0_22] : memref<1x128xf32, #tpu.memory_space<vmem>>, vector<1x128xf32>
    %38 = vector.broadcast %37 : vector<1x128xf32> to vector<8x128xf32>
    %39 = arith.addf %36, %38 : vector<8x128xf32>
    %c0_23 = arith.constant 0 : index
    %c0_24 = arith.constant 0 : index
    %40 = vector.load %arg7[%c0_23, %c0_24] : memref<8x128xf32, #tpu.memory_space<vmem>>, vector<8x128xf32>
    tpu.vector_store %arg7[%c0_23, %c0_24], %39 {strides = array<i32>} : memref<8x128xf32, #tpu.memory_space<vmem>>, vector<8x128xf32>,
    return
  }
  func.func @transform_1(%arg0: i32, %arg1: memref<24xi32, #tpu.memory_space<smem>>) -> (i32, i32) {
    %c0_i32 = arith.constant 0 : i32
    %c0_i32_0 = arith.constant 0 : i32
    %c0_i32_1 = arith.constant 0 : i32
    return %c0_i32, %c0_i32_0 : i32, i32
  }
  func.func @transform_2(%arg0: i32, %arg1: memref<24xi32, #tpu.memory_space<smem>>) -> (i32, i32) {
    %c0_i32 = arith.constant 0 : i32
    %c0_i32_0 = arith.constant 0 : i32
    %c0_i32_1 = arith.constant 0 : i32
    return %c0_i32, %c0_i32_0 : i32, i32
  }
  func.func @transform_3(%arg0: i32, %arg1: memref<24xi32, #tpu.memory_space<smem>>) -> (i32, i32) {
    %c0_i32 = arith.constant 0 : i32
    %c0_i32_0 = arith.constant 0 : i32
    %c0_i32_1 = arith.constant 0 : i32
    return %c0_i32, %c0_i32_0 : i32, i32
  }
  func.func @transform_4(%arg0: i32, %arg1: memref<24xi32, #tpu.memory_space<smem>>) -> (i32, i32) {
    %c0_i32 = arith.constant 0 : i32
    %c0_i32_0 = arith.constant 0 : i32
    %c0_i32_1 = arith.constant 0 : i32
    return %c0_i32, %c0_i32_0 : i32, i32
  }
  func.func @transform_5(%arg0: i32, %arg1: memref<24xi32, #tpu.memory_space<smem>>) -> (i32, i32) {
    %c0_i32 = arith.constant 0 : i32
    %c0_i32_0 = arith.constant 0 : i32
    return %arg0, %c0_i32 : i32, i32
  }
}

</mosaic_0001>

<llo_original>
// kernel: tpu_custom_call.1
$region0: #{tpu_custom_call.1}
  #allocation0 [shape = 'u32[]', space=smem, size = 0x4, offset = 0x4, fixed_abs, tag = 'smem constant byte address 0x4 - core index']
  #allocation1 [shape = 'u32[144,128]{1,0:T(1,128)}', space=vmem, size = 0x12000, scoped, tag = 'internal scratch']
  #allocation2 [shape = 'f32[2,8,384]{2,1,0:T(8,128)}', space=vmem, size = 0x6000, scoped, tag = 'scratch operand']
  #allocation3 [shape = 's32[2]{0}', space=sflag, size = 0x8, scoped, tag = 'scratch operand']
  #allocation4 [shape = 's32[1]{0}', space=sflag, size = 0x4, scoped, tag = 'scoped memory for tpu_custom_call.1']
  #allocation5 [shape = 'u8[512]{0}', space=smem, size = 0x200, scoped, tag = 'prefetched SMEM operand 0']
  #allocation12 [shape = 's32[]', space=sflag, size = 0x4, offset = 0, fixed_abs, tag = 'sflag constant byte address 0x0 - dummy sync flag']
  #allocation13 [shape = 's32[]', space=sflag, size = 0x4, offset = 0, fixed_abs, tag = 'sflag constant byte address 0x0 - dummy sync flag']
  #allocation14 [shape = 'u32[]', space=smem, size = 0x4, offset = 0x44, fixed_abs, tag = 'smem constant byte address 0x44 - assertion arg 0']
  #allocation15 [shape = 'u32[]', space=smem, size = 0x4, offset = 0x48, fixed_abs, tag = 'smem constant byte address 0x48 - assertion arg 1']
  #allocation16 [shape = 's32[]', space=sflag, size = 0x4, offset = 0, fixed_abs, tag = 'sflag constant byte address 0x0 - dummy sync flag']
  #allocation17 [shape = 's32[]', space=sflag, size = 0x4, offset = 0, fixed_abs, tag = 'sflag constant byte address 0x0 - dummy sync flag']
  #allocation18 [shape = 's32[]', space=sflag, size = 0x4, offset = 0, fixed_abs, tag = 'sflag constant byte address 0x0 - dummy sync flag']
  #allocation19 [shape = 's32[]', space=sflag, size = 0x4, offset = 0, fixed_abs, tag = 'sflag constant byte address 0x0 - dummy sync flag']
  #allocation20 [shape = 's32[]', space=sflag, size = 0x4, offset = 0, fixed_abs, tag = 'sflag constant byte address 0x0 - dummy sync flag']
  #allocation21 [shape = 's32[]', space=sflag, size = 0x4, offset = 0, fixed_abs, tag = 'sflag constant byte address 0x0 - dummy sync flag']
  #allocation22 [shape = 's32[]', space=sflag, size = 0x4, offset = 0, fixed_abs, tag = 'sflag constant byte address 0x0 - dummy sync flag']
  #allocation23 [shape = 's32[]', space=sflag, size = 0x4, offset = 0, fixed_abs, tag = 'sflag constant byte address 0x0 - dummy sync flag']
  #allocation24 [shape = 's32[]', space=sflag, size = 0x4, offset = 0, fixed_abs, tag = 'sflag constant byte address 0x0 - dummy sync flag']
  #allocation25 [shape = 's32[]', space=sflag, size = 0x4, offset = 0, fixed_abs, tag = 'sflag constant byte address 0x0 - dummy sync flag']
  #allocation26 [shape = 's32[]', space=sflag, size = 0x4, offset = 0, fixed_abs, tag = 'sflag constant byte address 0x0 - dummy sync flag']
  #allocation27 [shape = 's32[]', space=sflag, size = 0x4, offset = 0, fixed_abs, tag = 'sflag constant byte address 0x0 - dummy sync flag']
  #allocation28 [shape = 's32[]', space=sflag, size = 0x4, offset = 0, fixed_abs, tag = 'sflag constant byte address 0x0 - dummy sync flag']
  #allocation29 [shape = 's32[]', space=sflag, size = 0x4, offset = 0, fixed_abs, tag = 'sflag constant byte address 0x0 - dummy sync flag']
  #allocation30 [shape = 's32[]', space=sflag, size = 0x4, offset = 0, fixed_abs, tag = 'sflag constant byte address 0x0 - dummy sync flag']
  #allocation31 [shape = 's32[]', space=sflag, size = 0x4, offset = 0, fixed_abs, tag = 'sflag constant byte address 0x0 - dummy sync flag']
  #allocation32 [shape = 's32[]', space=sflag, size = 0x4, offset = 0, fixed_abs, tag = 'sflag constant byte address 0x0 - dummy sync flag']
  #allocation33 [shape = 's32[]', space=sflag, size = 0x4, offset = 0, fixed_abs, tag = 'sflag constant byte address 0x0 - dummy sync flag']
  #allocation34 [shape = 's32[]', space=sflag, size = 0x4, offset = 0, fixed_abs, tag = 'sflag constant byte address 0x0 - dummy sync flag']
  #allocation35 [shape = 's32[]', space=sflag, size = 0x4, offset = 0, fixed_abs, tag = 'sflag constant byte address 0x0 - dummy sync flag']
  #allocation36 [shape = 's32[]', space=sflag, size = 0x4, offset = 0, fixed_abs, tag = 'sflag constant byte address 0x0 - dummy sync flag']
  #allocation37 [shape = 's32[]', space=sflag, size = 0x4, offset = 0, fixed_abs, tag = 'sflag constant byte address 0x0 - dummy sync flag']
  #allocation38 [shape = 's32[]', space=sflag, size = 0x4, offset = 0, fixed_abs, tag = 'sflag constant byte address 0x0 - dummy sync flag']
  #allocation39 [shape = 's32[]', space=sflag, size = 0x4, offset = 0, fixed_abs, tag = 'sflag constant byte address 0x0 - dummy sync flag']
  #allocation40 [shape = 's32[]', space=sflag, size = 0x4, offset = 0, fixed_abs, tag = 'sflag constant byte address 0x0 - dummy sync flag']
  #allocation41 [shape = 's32[]', space=sflag, size = 0x4, offset = 0, fixed_abs, tag = 'sflag constant byte address 0x0 - dummy sync flag']
  #allocation42 [shape = 's32[]', space=sflag, size = 0x4, offset = 0, fixed_abs, tag = 'sflag constant byte address 0x0 - dummy sync flag']
  #allocation43 [shape = 's32[]', space=sflag, size = 0x4, offset = 0, fixed_abs, tag = 'sflag constant byte address 0x0 - dummy sync flag']
  #allocation44 [shape = 's32[]', space=sflag, size = 0x4, offset = 0, fixed_abs, tag = 'sflag constant byte address 0x0 - dummy sync flag']
  #allocation45 [shape = 's32[]', space=sflag, size = 0x4, offset = 0, fixed_abs, tag = 'sflag constant byte address 0x0 - dummy sync flag']
  #allocation46 [shape = 's32[]', space=sflag, size = 0x4, offset = 0, fixed_abs, tag = 'sflag constant byte address 0x0 - dummy sync flag']
  #allocation47 [shape = 's32[]', space=sflag, size = 0x4, offset = 0, fixed_abs, tag = 'sflag constant byte address 0x0 - dummy sync flag']
  #allocation48 [shape = 's32[]', space=sflag, size = 0x4, offset = 0, fixed_abs, tag = 'sflag constant byte address 0x0 - dummy sync flag']
  #allocation49 [shape = 's32[]', space=sflag, size = 0x4, offset = 0, fixed_abs, tag = 'sflag constant byte address 0x0 - dummy sync flag']
  #allocation50 [shape = 's32[]', space=sflag, size = 0x4, offset = 0, fixed_abs, tag = 'sflag constant byte address 0x0 - dummy sync flag']
  #allocation51 [shape = 's32[]', space=sflag, size = 0x4, offset = 0, fixed_abs, tag = 'sflag constant byte address 0x0 - dummy sync flag']
  #allocation52 [shape = 's32[]', space=sflag, size = 0x4, offset = 0, fixed_abs, tag = 'sflag constant byte address 0x0 - dummy sync flag']
  #allocation53 [shape = 's32[]', space=sflag, size = 0x4, offset = 0, fixed_abs, tag = 'sflag constant byte address 0x0 - dummy sync flag']
  #allocation54 [shape = 's32[]', space=sflag, size = 0x4, offset = 0, fixed_abs, tag = 'sflag constant byte address 0x0 - dummy sync flag']
  #allocation55 [shape = 's32[]', space=sflag, size = 0x4, offset = 0, fixed_abs, tag = 'sflag constant byte address 0x0 - dummy sync flag']
  #allocation56 [shape = 's32[]', space=sflag, size = 0x4, offset = 0, fixed_abs, tag = 'sflag constant byte address 0x0 - dummy sync flag']
  #allocation57 [shape = 's32[]', space=sflag, size = 0x4, offset = 0, fixed_abs, tag = 'sflag constant byte address 0x0 - dummy sync flag']
  #allocation58 [shape = 's32[]', space=sflag, size = 0x4, offset = 0, fixed_abs, tag = 'sflag constant byte address 0x0 - dummy sync flag']
  #allocation59 [shape = 's32[]', space=sflag, size = 0x4, offset = 0, fixed_abs, tag = 'sflag constant byte address 0x0 - dummy sync flag']
  #allocation60 [shape = 's32[]', space=sflag, size = 0x4, offset = 0, fixed_abs, tag = 'sflag constant byte address 0x0 - dummy sync flag']
  #allocation61 [shape = 's32[]', space=sflag, size = 0x4, offset = 0, fixed_abs, tag = 'sflag constant byte address 0x0 - dummy sync flag']
  #allocation62 [shape = 's32[]', space=sflag, size = 0x4, offset = 0, fixed_abs, tag = 'sflag constant byte address 0x0 - dummy sync flag']
  #allocation63 [shape = 's32[]', space=sflag, size = 0x4, offset = 0, fixed_abs, tag = 'sflag constant byte address 0x0 - dummy sync flag']
  #allocation64 [shape = 's32[]', space=sflag, size = 0x4, offset = 0, fixed_abs, tag = 'sflag constant byte address 0x0 - dummy sync flag']
  #allocation65 [shape = 's32[]', space=sflag, size = 0x4, offset = 0, fixed_abs, tag = 'sflag constant byte address 0x0 - dummy sync flag']
  #allocation66 [shape = 's32[]', space=sflag, size = 0x4, offset = 0, fixed_abs, tag = 'sflag constant byte address 0x0 - dummy sync flag']
  #allocation67 [shape = 's32[]', space=sflag, size = 0x4, offset = 0, fixed_abs, tag = 'sflag constant byte address 0x0 - dummy sync flag']
  #allocation68 [shape = 's32[]', space=sflag, size = 0x4, offset = 0, fixed_abs, tag = 'sflag constant byte address 0x0 - dummy sync flag']
  #allocation69 [shape = 's32[]', space=sflag, size = 0x4, offset = 0, fixed_abs, tag = 'sflag constant byte address 0x0 - dummy sync flag']
  #allocation70 [shape = 's32[]', space=sflag, size = 0x4, offset = 0, fixed_abs, tag = 'sflag constant byte address 0x0 - dummy sync flag']
  #allocation71 [shape = 's32[]', space=sflag, size = 0x4, offset = 0, fixed_abs, tag = 'sflag constant byte address 0x0 - dummy sync flag']
  #allocation72 [shape = 's32[]', space=sflag, size = 0x4, offset = 0, fixed_abs, tag = 'sflag constant byte address 0x0 - dummy sync flag']
  #allocation73 [shape = 's32[]', space=sflag, size = 0x4, offset = 0, fixed_abs, tag = 'sflag constant byte address 0x0 - dummy sync flag']
  #allocation74 [shape = 's32[]', space=sflag, size = 0x4, offset = 0, fixed_abs, tag = 'sflag constant byte address 0x0 - dummy sync flag']
  #allocation75 [shape = 's32[]', space=sflag, size = 0x4, offset = 0, fixed_abs, tag = 'sflag constant byte address 0x0 - dummy sync flag']
  #allocation76 [shape = 's32[]', space=sflag, size = 0x4, offset = 0, fixed_abs, tag = 'sflag constant byte address 0x0 - dummy sync flag']
  #allocation77 [shape = 's32[]', space=sflag, size = 0x4, offset = 0, fixed_abs, tag = 'sflag constant byte address 0x0 - dummy sync flag']
  #allocation78 [shape = 's32[]', space=sflag, size = 0x4, offset = 0, fixed_abs, tag = 'sflag constant byte address 0x0 - dummy sync flag']
  #allocation79 [shape = 's32[]', space=sflag, size = 0x4, offset = 0, fixed_abs, tag = 'sflag constant byte address 0x0 - dummy sync flag']
  #allocation80 [shape = 's32[]', space=sflag, size = 0x4, offset = 0, fixed_abs, tag = 'sflag constant byte address 0x0 - dummy sync flag']
  #allocation81 [shape = 's32[]', space=sflag, size = 0x4, offset = 0, fixed_abs, tag = 'sflag constant byte address 0x0 - dummy sync flag']
  #allocation82 [shape = 's32[]', space=sflag, size = 0x4, offset = 0, fixed_abs, tag = 'sflag constant byte address 0x0 - dummy sync flag']
  #allocation83 [shape = 's32[]', space=sflag, size = 0x4, offset = 0, fixed_abs, tag = 'sflag constant byte address 0x0 - dummy sync flag']
  #allocation84 [shape = 's32[]', space=sflag, size = 0x4, offset = 0, fixed_abs, tag = 'sflag constant byte address 0x0 - dummy sync flag']
  #allocation85 [shape = 's32[]', space=sflag, size = 0x4, offset = 0, fixed_abs, tag = 'sflag constant byte address 0x0 - dummy sync flag']
  #allocation86 [shape = 's32[]', space=sflag, size = 0x4, offset = 0, fixed_abs, tag = 'sflag constant byte address 0x0 - dummy sync flag']
  #allocation87 [shape = 's32[]', space=sflag, size = 0x4, offset = 0, fixed_abs, tag = 'sflag constant byte address 0x0 - dummy sync flag']
  #allocation88 [shape = 's32[]', space=sflag, size = 0x4, offset = 0, fixed_abs, tag = 'sflag constant byte address 0x0 - dummy sync flag']
  #allocation89 [shape = 's32[]', space=sflag, size = 0x4, offset = 0, fixed_abs, tag = 'sflag constant byte address 0x0 - dummy sync flag']
  #allocation90 [shape = 's32[]', space=sflag, size = 0x4, offset = 0, fixed_abs, tag = 'sflag constant byte address 0x0 - dummy sync flag']
  #allocation91 [shape = 's32[]', space=sflag, size = 0x4, offset = 0, fixed_abs, tag = 'sflag constant byte address 0x0 - dummy sync flag']
  #allocation92 [shape = 's32[]', space=sflag, size = 0x4, offset = 0, fixed_abs, tag = 'sflag constant byte address 0x0 - dummy sync flag']
  #allocation93 [shape = 's32[]', space=sflag, size = 0x4, offset = 0, fixed_abs, tag = 'sflag constant byte address 0x0 - dummy sync flag']
  #allocation94 [shape = 's32[]', space=sflag, size = 0x4, offset = 0, fixed_abs, tag = 'sflag constant byte address 0x0 - dummy sync flag']
  #allocation95 [shape = 's32[]', space=sflag, size = 0x4, offset = 0, fixed_abs, tag = 'sflag constant byte address 0x0 - dummy sync flag']
  #allocation96 [shape = 's32[]', space=sflag, size = 0x4, offset = 0, fixed_abs, tag = 'sflag constant byte address 0x0 - dummy sync flag']
  #allocation97 [shape = 's32[]', space=sflag, size = 0x4, offset = 0, fixed_abs, tag = 'sflag constant byte address 0x0 - dummy sync flag']
  #allocation98 [shape = 's32[]', space=sflag, size = 0x4, offset = 0, fixed_abs, tag = 'sflag constant byte address 0x0 - dummy sync flag']
  #allocation99 [shape = 's32[]', space=sflag, size = 0x4, offset = 0, fixed_abs, tag = 'sflag constant byte address 0x0 - dummy sync flag']
  #allocation100 [shape = 's32[]', space=sflag, size = 0x4, offset = 0, fixed_abs, tag = 'sflag constant byte address 0x0 - dummy sync flag']
  #allocation101 [shape = 's32[]', space=sflag, size = 0x4, offset = 0, fixed_abs, tag = 'sflag constant byte address 0x0 - dummy sync flag']
  #allocation102 [shape = 's32[]', space=sflag, size = 0x4, offset = 0, fixed_abs, tag = 'sflag constant byte address 0x0 - dummy sync flag']
  #allocation103 [shape = 's32[]', space=sflag, size = 0x4, offset = 0, fixed_abs, tag = 'sflag constant byte address 0x0 - dummy sync flag']
  #allocation104 [shape = 's32[]', space=sflag, size = 0x4, offset = 0, fixed_abs, tag = 'sflag constant byte address 0x0 - dummy sync flag']
  #allocation105 [shape = 's32[]', space=sflag, size = 0x4, offset = 0, fixed_abs, tag = 'sflag constant byte address 0x0 - dummy sync flag']
  #allocation106 [shape = 's32[]', space=sflag, size = 0x4, offset = 0, fixed_abs, tag = 'sflag constant byte address 0x0 - dummy sync flag']
  #allocation107 [shape = 's32[]', space=sflag, size = 0x4, offset = 0, fixed_abs, tag = 'sflag constant byte address 0x0 - dummy sync flag']
  #allocation108 [shape = 's32[]', space=sflag, size = 0x4, offset = 0, fixed_abs, tag = 'sflag constant byte address 0x0 - dummy sync flag']
  #allocation109 [shape = 's32[]', space=sflag, size = 0x4, offset = 0, fixed_abs, tag = 'sflag constant byte address 0x0 - dummy sync flag']
  %s0 = inlined_call_operand.hbm [shape: s32[24], index: 0, kind: input, shape index: {}]
  %s1 = inlined_call_operand.hbm [shape: f32[8,16,128], index: 1, kind: input, shape index: {}]
  %s2 = inlined_call_operand.hbm [shape: bf16[384,512], index: 2, kind: input, shape index: {}]
  %s3 = inlined_call_operand.vmem [shape: f32[1,512], index: 3, kind: input, shape index: {}]
  %s4 = inlined_call_operand.hbm [shape: bf16[512,128], index: 4, kind: input, shape index: {}]
  %s5 = inlined_call_operand.vmem [shape: f32[1,128], index: 5, kind: input, shape index: {}]
  %s6 = inlined_call_operand.hbm [shape: f32[8,128], index: 6, kind: output, shape index: {}]
  %s7 = sld [smem:[#allocation0]]
  $region234: #{tpu_custom_call.1} parent=0
    _
  %s9 = ssub.s32 1, %s7
  %s10 = scalar_select 0, %s9, %s7
  %12 = dma.hbm_to_smem %s0, 16, [#allocation5], [#allocation4]
  %13 = dma.done [#allocation4], 16
  %14 = sfence
  $region1: #{tpu_custom_call.1} parent=0
    #allocation6 [shape = 'u8[393216]{0}', space=vmem, size = 0x60000, scoped, tag = 'input window, operand 2, single buffered']
    #allocation7 [shape = 's32[1]{0}', space=sflag, size = 0x4, scoped, tag = 'scoped memory for tpu_custom_call.1']
    #allocation8 [shape = 's32[1]{0}', space=sflag, size = 0x4, scoped, tag = 'scoped memory for tpu_custom_call.1']
    #allocation9 [shape = 'u8[131072]{0}', space=vmem, size = 0x20000, scoped, tag = 'input window, operand 4, single buffered']
    #allocation10 [shape = 's32[1]{0}', space=sflag, size = 0x4, scoped, tag = 'scoped memory for tpu_custom_call.1']
    #allocation11 [shape = 'u8[4096]{0}', space=vmem, size = 0x1000, scoped, tag = 'output window, operand 0, single buffered']
    %15 = vsyncpa [#allocation7], 0
    %16 = vsyncpa [#allocation10], 0
    %17 = vsyncpa [#allocation8], 0
    // Predicated region
    $region2: #{tpu_custom_call.1} parent=1 // pred_check
      _
    $region3: #{tpu_custom_call.1} parent=1 // pred_check_branch
      %19 = sbr.rel (0) target = $region5
    $region4: #{tpu_custom_call.1} parent=1 // pred_region
      %s21 = ssub.s32 12288, 12288
      %22 = vsyncadd [#allocation7], %s21
      %s23 = sshll.u32 [#allocation6], 4
      %s24 = int_to_ptr.vmem [resolvable:$true] %s23
      %29 = dma.hbm_to_vmem [thread:$0]  %s2, 12288, %s24, [#allocation7], 256, 256, 16
    $region5: #{tpu_custom_call.1} parent=1 // pred_fallthru
      _
    // Predicated region
    $region6: #{tpu_custom_call.1} parent=1 // pred_check
      _
    $region7: #{tpu_custom_call.1} parent=1 // pred_check_branch
      %31 = sbr.rel (0) target = $region9
    $region8: #{tpu_custom_call.1} parent=1 // pred_region
      _
    $region9: #{tpu_custom_call.1} parent=1 // pred_fallthru
      _
    // Predicated region
    $region10: #{tpu_custom_call.1} parent=1 // pred_check
      _
    $region11: #{tpu_custom_call.1} parent=1 // pred_check_branch
      %33 = sbr.rel (0) target = $region13
    $region12: #{tpu_custom_call.1} parent=1 // pred_region
      %s35 = ssub.s32 4096, 4096
      %36 = vsyncadd [#allocation10], %s35
      %s37 = sshll.u32 [#allocation9], 4
      %s38 = int_to_ptr.vmem [resolvable:$true] %s37
      %43 = dma.hbm_to_vmem [thread:$0]  %s4, 4096, %s38, [#allocation10], 64, 64, 4
    $region13: #{tpu_custom_call.1} parent=1 // pred_fallthru
      _
    // Predicated region
    $region14: #{tpu_custom_call.1} parent=1 // pred_check
      _
    $region15: #{tpu_custom_call.1} parent=1 // pred_check_branch
      %45 = sbr.rel (0) target = $region17
    $region16: #{tpu_custom_call.1} parent=1 // pred_region
      _
    $region17: #{tpu_custom_call.1} parent=1 // pred_fallthru
      _
    // Predicated region
    $region18: #{tpu_custom_call.1} parent=1 // pred_check
      _
    $region19: #{tpu_custom_call.1} parent=1 // pred_check_branch
      %47 = sbr.rel (0) target = $region21
    $region20: #{tpu_custom_call.1} parent=1 // pred_region
      %48 = dma.done [#allocation7], 12288
    $region21: #{tpu_custom_call.1} parent=1 // pred_fallthru
      _
    // Predicated region
    $region22: #{tpu_custom_call.1} parent=1 // pred_check
      _
    $region23: #{tpu_custom_call.1} parent=1 // pred_check_branch
      %50 = sbr.rel (0) target = $region25
    $region24: #{tpu_custom_call.1} parent=1 // pred_region
      %51 = dma.done [#allocation10], 4096
    $region25: #{tpu_custom_call.1} parent=1 // pred_fallthru
      _
    %s53 = ssub.s32 0, 0
    %s54 = ssub.s32 0, 0
    %p55 = scmp.ne.s32.totalorder 0, 0
    %p56 = scmp.lt.s32.totalorder 0, 0
    %p57 = pnand %p56, %p55
    %p58 = pneg %p57
    %s59 = sadd.s32 0, 2
    %s60 = scalar_select %p58, %s59, 0
    %p61 = scmp.eq.s32.totalorder 0, 0
    // Predicated region
    $region26: #{tpu_custom_call.1} parent=1 // pred_check
      %p62 = pneg %p61
    $region27: #{tpu_custom_call.1} parent=1 // pred_check_branch
      %64 = sbr.rel (%p62) target = $region29
    $region28: #{tpu_custom_call.1} parent=1 // pred_region
      %s65 = sld [smem:[#allocation5]]
      %s66 = smul.addr %s65, 16
      %s67 = scalar_lea.hbm %s1, %s66
      // Predicated region
      $region30: #{tpu_custom_call.1} parent=28 // pred_check
        _
      $region31: #{tpu_custom_call.1} parent=28 // pred_check_branch
        %69 = sbr.rel target = $region33
      $region32: #{tpu_custom_call.1} parent=28 // pred_region
        %70 = sst [smem:[#allocation14]] [#allocation13]
        %71 = sst [smem:[#allocation15]] [#allocation12]
      $region33: #{tpu_custom_call.1} parent=28 // pred_fallthru
        _
      %73 = shalt.err (0)
      %s75 = sshll.u32 [#allocation2], 4
      %s76 = int_to_ptr.vmem [resolvable:$true] %s75
      %78 = dma.hbm_to_vmem [thread:$0]  %s67, 16, %s76, [#allocation3]
      %s79 = sld [smem:[#allocation5 + $0x1]]
      %s80 = smul.addr %s79, 16
      %s81 = scalar_lea.hbm %s1, %s80
      %s82 = scalar_lea.vmem [#allocation2], 8
      // Predicated region
      $region34: #{tpu_custom_call.1} parent=28 // pred_check
        _
      $region35: #{tpu_custom_call.1} parent=28 // pred_check_branch
        %84 = sbr.rel target = $region37
      $region36: #{tpu_custom_call.1} parent=28 // pred_region
        %85 = sst [smem:[#allocation14]] [#allocation17]
        %86 = sst [smem:[#allocation15]] [#allocation16]
      $region37: #{tpu_custom_call.1} parent=28 // pred_fallthru
        _
      %88 = shalt.err (0)
      %s90 = sshll.u32 %s82, 4
      %s91 = int_to_ptr.vmem [resolvable:$true] %s90
      %93 = dma.hbm_to_vmem [thread:$0]  %s81, 16, %s91, [#allocation3]
      %s94 = sld [smem:[#allocation5 + $0x2]]
      %s95 = smul.addr %s94, 16
      %s96 = scalar_lea.hbm %s1, %s95
      %s97 = scalar_lea.vmem [#allocation2], 16
      // Predicated region
      $region38: #{tpu_custom_call.1} parent=28 // pred_check
        _
      $region39: #{tpu_custom_call.1} parent=28 // pred_check_branch
        %99 = sbr.rel target = $region41
      $region40: #{tpu_custom_call.1} parent=28 // pred_region
        %100 = sst [smem:[#allocation14]] [#allocation19]
        %101 = sst [smem:[#allocation15]] [#allocation18]
      $region41: #{tpu_custom_call.1} parent=28 // pred_fallthru
        _
      %103 = shalt.err (0)
      %s105 = sshll.u32 %s97, 4
      %s106 = int_to_ptr.vmem [resolvable:$true] %s105
      %108 = dma.hbm_to_vmem [thread:$0]  %s96, 16, %s106, [#allocation3]
      %s109 = sld [smem:[#allocation5 + $0x3]]
      %s110 = sadd.s32 %s109, 16
      %s111 = smul.addr %s110, 16
      %s112 = scalar_lea.hbm %s1, %s111
      %s113 = scalar_lea.vmem [#allocation2], 1
      // Predicated region
      $region42: #{tpu_custom_call.1} parent=28 // pred_check
        _
      $region43: #{tpu_custom_call.1} parent=28 // pred_check_branch
        %115 = sbr.rel target = $region45
      $region44: #{tpu_custom_call.1} parent=28 // pred_region
        %116 = sst [smem:[#allocation14]] [#allocation21]
        %117 = sst [smem:[#allocation15]] [#allocation20]
      $region45: #{tpu_custom_call.1} parent=28 // pred_fallthru
        _
      %119 = shalt.err (0)
      %s121 = sshll.u32 %s113, 4
      %s122 = int_to_ptr.vmem [resolvable:$true] %s121
      %124 = dma.hbm_to_vmem [thread:$0]  %s112, 16, %s122, [#allocation3]
      %s125 = sld [smem:[#allocation5 + $0x4]]
      %s126 = sadd.s32 %s125, 16
      %s127 = smul.addr %s126, 16
      %s128 = scalar_lea.hbm %s1, %s127
      %s129 = scalar_lea.vmem [#allocation2], 9
      // Predicated region
      $region46: #{tpu_custom_call.1} parent=28 // pred_check
        _
      $region47: #{tpu_custom_call.1} parent=28 // pred_check_branch
        %131 = sbr.rel target = $region49
      $region48: #{tpu_custom_call.1} parent=28 // pred_region
        %132 = sst [smem:[#allocation14]] [#allocation23]
        %133 = sst [smem:[#allocation15]] [#allocation22]
      $region49: #{tpu_custom_call.1} parent=28 // pred_fallthru
        _
      %135 = shalt.err (0)
      %s137 = sshll.u32 %s129, 4
      %s138 = int_to_ptr.vmem [resolvable:$true] %s137
      %140 = dma.hbm_to_vmem [thread:$0]  %s128, 16, %s138, [#allocation3]
      %s141 = sld [smem:[#allocation5 + $0x5]]
      %s142 = sadd.s32 %s141, 16
      %s143 = smul.addr %s142, 16
      %s144 = scalar_lea.hbm %s1, %s143
      %s145 = scalar_lea.vmem [#allocation2], 17
      // Predicated region
      $region50: #{tpu_custom_call.1} parent=28 // pred_check
        _
      $region51: #{tpu_custom_call.1} parent=28 // pred_check_branch
        %147 = sbr.rel target = $region53
      $region52: #{tpu_custom_call.1} parent=28 // pred_region
        %148 = sst [smem:[#allocation14]] [#allocation25]
        %149 = sst [smem:[#allocation15]] [#allocation24]
      $region53: #{tpu_custom_call.1} parent=28 // pred_fallthru
        _
      %151 = shalt.err (0)
      %s153 = sshll.u32 %s145, 4
      %s154 = int_to_ptr.vmem [resolvable:$true] %s153
      %156 = dma.hbm_to_vmem [thread:$0]  %s144, 16, %s154, [#allocation3]
      %s157 = sld [smem:[#allocation5 + $0x6]]
      %s158 = sadd.s32 %s157, 32
      %s159 = smul.addr %s158, 16
      %s160 = scalar_lea.hbm %s1, %s159
      %s161 = scalar_lea.vmem [#allocation2], 2
      // Predicated region
      $region54: #{tpu_custom_call.1} parent=28 // pred_check
        _
      $region55: #{tpu_custom_call.1} parent=28 // pred_check_branch
        %163 = sbr.rel target = $region57
      $region56: #{tpu_custom_call.1} parent=28 // pred_region
        %164 = sst [smem:[#allocation14]] [#allocation27]
        %165 = sst [smem:[#allocation15]] [#allocation26]
      $region57: #{tpu_custom_call.1} parent=28 // pred_fallthru
        _
      %167 = shalt.err (0)
      %s169 = sshll.u32 %s161, 4
      %s170 = int_to_ptr.vmem [resolvable:$true] %s169
      %172 = dma.hbm_to_vmem [thread:$0]  %s160, 16, %s170, [#allocation3]
      %s173 = sld [smem:[#allocation5 + $0x7]]
      %s174 = sadd.s32 %s173, 32
      %s175 = smul.addr %s174, 16
      %s176 = scalar_lea.hbm %s1, %s175
      %s177 = scalar_lea.vmem [#allocation2], 10
      // Predicated region
      $region58: #{tpu_custom_call.1} parent=28 // pred_check
        _
      $region59: #{tpu_custom_call.1} parent=28 // pred_check_branch
        %179 = sbr.rel target = $region61
      $region60: #{tpu_custom_call.1} parent=28 // pred_region
        %180 = sst [smem:[#allocation14]] [#allocation29]
        %181 = sst [smem:[#allocation15]] [#allocation28]
      $region61: #{tpu_custom_call.1} parent=28 // pred_fallthru
        _
      %183 = shalt.err (0)
      %s185 = sshll.u32 %s177, 4
      %s186 = int_to_ptr.vmem [resolvable:$true] %s185
      %188 = dma.hbm_to_vmem [thread:$0]  %s176, 16, %s186, [#allocation3]
      %s189 = sld [smem:[#allocation5 + $0x8]]
      %s190 = sadd.s32 %s189, 32
      %s191 = smul.addr %s190, 16
      %s192 = scalar_lea.hbm %s1, %s191
      %s193 = scalar_lea.vmem [#allocation2], 18
      // Predicated region
      $region62: #{tpu_custom_call.1} parent=28 // pred_check
        _
      $region63: #{tpu_custom_call.1} parent=28 // pred_check_branch
        %195 = sbr.rel target = $region65
      $region64: #{tpu_custom_call.1} parent=28 // pred_region
        %196 = sst [smem:[#allocation14]] [#allocation31]
        %197 = sst [smem:[#allocation15]] [#allocation30]
      $region65: #{tpu_custom_call.1} parent=28 // pred_fallthru
        _
      %199 = shalt.err (0)
      %s201 = sshll.u32 %s193, 4
      %s202 = int_to_ptr.vmem [resolvable:$true] %s201
      %204 = dma.hbm_to_vmem [thread:$0]  %s192, 16, %s202, [#allocation3]
      %s205 = sld [smem:[#allocation5 + $0x9]]
      %s206 = sadd.s32 %s205, 48
      %s207 = smul.addr %s206, 16
      %s208 = scalar_lea.hbm %s1, %s207
      %s209 = scalar_lea.vmem [#allocation2], 3
      // Predicated region
      $region66: #{tpu_custom_call.1} parent=28 // pred_check
        _
      $region67: #{tpu_custom_call.1} parent=28 // pred_check_branch
        %211 = sbr.rel target = $region69
      $region68: #{tpu_custom_call.1} parent=28 // pred_region
        %212 = sst [smem:[#allocation14]] [#allocation33]
        %213 = sst [smem:[#allocation15]] [#allocation32]
      $region69: #{tpu_custom_call.1} parent=28 // pred_fallthru
        _
      %215 = shalt.err (0)
      %s217 = sshll.u32 %s209, 4
      %s218 = int_to_ptr.vmem [resolvable:$true] %s217
      %220 = dma.hbm_to_vmem [thread:$0]  %s208, 16, %s218, [#allocation3]
      %s221 = sld [smem:[#allocation5 + $0xa]]
      %s222 = sadd.s32 %s221, 48
      %s223 = smul.addr %s222, 16
      %s224 = scalar_lea.hbm %s1, %s223
      %s225 = scalar_lea.vmem [#allocation2], 11
      // Predicated region
      $region70: #{tpu_custom_call.1} parent=28 // pred_check
        _
      $region71: #{tpu_custom_call.1} parent=28 // pred_check_branch
        %227 = sbr.rel target = $region73
      $region72: #{tpu_custom_call.1} parent=28 // pred_region
        %228 = sst [smem:[#allocation14]] [#allocation35]
        %229 = sst [smem:[#allocation15]] [#allocation34]
      $region73: #{tpu_custom_call.1} parent=28 // pred_fallthru
        _
      %231 = shalt.err (0)
      %s233 = sshll.u32 %s225, 4
      %s234 = int_to_ptr.vmem [resolvable:$true] %s233
      %236 = dma.hbm_to_vmem [thread:$0]  %s224, 16, %s234, [#allocation3]
      %s237 = sld [smem:[#allocation5 + $0xb]]
      %s238 = sadd.s32 %s237, 48
      %s239 = smul.addr %s238, 16
      %s240 = scalar_lea.hbm %s1, %s239
      %s241 = scalar_lea.vmem [#allocation2], 19
      // Predicated region
      $region74: #{tpu_custom_call.1} parent=28 // pred_check
        _
      $region75: #{tpu_custom_call.1} parent=28 // pred_check_branch
        %243 = sbr.rel target = $region77
      $region76: #{tpu_custom_call.1} parent=28 // pred_region
        %244 = sst [smem:[#allocation14]] [#allocation37]
        %245 = sst [smem:[#allocation15]] [#allocation36]
      $region77: #{tpu_custom_call.1} parent=28 // pred_fallthru
        _
      %247 = shalt.err (0)
      %s249 = sshll.u32 %s241, 4
      %s250 = int_to_ptr.vmem [resolvable:$true] %s249
      %252 = dma.hbm_to_vmem [thread:$0]  %s240, 16, %s250, [#allocation3]
      %s253 = sld [smem:[#allocation5 + $0xc]]
      %s254 = sadd.s32 %s253, 64
      %s255 = smul.addr %s254, 16
      %s256 = scalar_lea.hbm %s1, %s255
      %s257 = scalar_lea.vmem [#allocation2], 4
      // Predicated region
      $region78: #{tpu_custom_call.1} parent=28 // pred_check
        _
      $region79: #{tpu_custom_call.1} parent=28 // pred_check_branch
        %259 = sbr.rel target = $region81
      $region80: #{tpu_custom_call.1} parent=28 // pred_region
        %260 = sst [smem:[#allocation14]] [#allocation39]
        %261 = sst [smem:[#allocation15]] [#allocation38]
      $region81: #{tpu_custom_call.1} parent=28 // pred_fallthru
        _
      %263 = shalt.err (0)
      %s265 = sshll.u32 %s257, 4
      %s266 = int_to_ptr.vmem [resolvable:$true] %s265
      %268 = dma.hbm_to_vmem [thread:$0]  %s256, 16, %s266, [#allocation3]
      %s269 = sld [smem:[#allocation5 + $0xd]]
      %s270 = sadd.s32 %s269, 64
      %s271 = smul.addr %s270, 16
      %s272 = scalar_lea.hbm %s1, %s271
      %s273 = scalar_lea.vmem [#allocation2], 12
      // Predicated region
      $region82: #{tpu_custom_call.1} parent=28 // pred_check
        _
      $region83: #{tpu_custom_call.1} parent=28 // pred_check_branch
        %275 = sbr.rel target = $region85
      $region84: #{tpu_custom_call.1} parent=28 // pred_region
        %276 = sst [smem:[#allocation14]] [#allocation41]
        %277 = sst [smem:[#allocation15]] [#allocation40]
      $region85: #{tpu_custom_call.1} parent=28 // pred_fallthru
        _
      %279 = shalt.err (0)
      %s281 = sshll.u32 %s273, 4
      %s282 = int_to_ptr.vmem [resolvable:$true] %s281
      %284 = dma.hbm_to_vmem [thread:$0]  %s272, 16, %s282, [#allocation3]
      %s285 = sld [smem:[#allocation5 + $0xe]]
      %s286 = sadd.s32 %s285, 64
      %s287 = smul.addr %s286, 16
      %s288 = scalar_lea.hbm %s1, %s287
      %s289 = scalar_lea.vmem [#allocation2], 20
      // Predicated region
      $region86: #{tpu_custom_call.1} parent=28 // pred_check
        _
      $region87: #{tpu_custom_call.1} parent=28 // pred_check_branch
        %291 = sbr.rel target = $region89
      $region88: #{tpu_custom_call.1} parent=28 // pred_region
        %292 = sst [smem:[#allocation14]] [#allocation43]
        %293 = sst [smem:[#allocation15]] [#allocation42]
      $region89: #{tpu_custom_call.1} parent=28 // pred_fallthru
        _
      %295 = shalt.err (0)
      %s297 = sshll.u32 %s289, 4
      %s298 = int_to_ptr.vmem [resolvable:$true] %s297
      %300 = dma.hbm_to_vmem [thread:$0]  %s288, 16, %s298, [#allocation3]
      %s301 = sld [smem:[#allocation5 + $0xf]]
      %s302 = sadd.s32 %s301, 80
      %s303 = smul.addr %s302, 16
      %s304 = scalar_lea.hbm %s1, %s303
      %s305 = scalar_lea.vmem [#allocation2], 5
      // Predicated region
      $region90: #{tpu_custom_call.1} parent=28 // pred_check
        _
      $region91: #{tpu_custom_call.1} parent=28 // pred_check_branch
        %307 = sbr.rel target = $region93
      $region92: #{tpu_custom_call.1} parent=28 // pred_region
        %308 = sst [smem:[#allocation14]] [#allocation45]
        %309 = sst [smem:[#allocation15]] [#allocation44]
      $region93: #{tpu_custom_call.1} parent=28 // pred_fallthru
        _
      %311 = shalt.err (0)
      %s313 = sshll.u32 %s305, 4
      %s314 = int_to_ptr.vmem [resolvable:$true] %s313
      %316 = dma.hbm_to_vmem [thread:$0]  %s304, 16, %s314, [#allocation3]
      %s317 = sld [smem:[#allocation5 + $0x10]]
      %s318 = sadd.s32 %s317, 80
      %s319 = smul.addr %s318, 16
      %s320 = scalar_lea.hbm %s1, %s319
      %s321 = scalar_lea.vmem [#allocation2], 13
      // Predicated region
      $region94: #{tpu_custom_call.1} parent=28 // pred_check
        _
      $region95: #{tpu_custom_call.1} parent=28 // pred_check_branch
        %323 = sbr.rel target = $region97
      $region96: #{tpu_custom_call.1} parent=28 // pred_region
        %324 = sst [smem:[#allocation14]] [#allocation47]
        %325 = sst [smem:[#allocation15]] [#allocation46]
      $region97: #{tpu_custom_call.1} parent=28 // pred_fallthru
        _
      %327 = shalt.err (0)
      %s329 = sshll.u32 %s321, 4
      %s330 = int_to_ptr.vmem [resolvable:$true] %s329
      %332 = dma.hbm_to_vmem [thread:$0]  %s320, 16, %s330, [#allocation3]
      %s333 = sld [smem:[#allocation5 + $0x11]]
      %s334 = sadd.s32 %s333, 80
      %s335 = smul.addr %s334, 16
      %s336 = scalar_lea.hbm %s1, %s335
      %s337 = scalar_lea.vmem [#allocation2], 21
      // Predicated region
      $region98: #{tpu_custom_call.1} parent=28 // pred_check
        _
      $region99: #{tpu_custom_call.1} parent=28 // pred_check_branch
        %339 = sbr.rel target = $region101
      $region100: #{tpu_custom_call.1} parent=28 // pred_region
        %340 = sst [smem:[#allocation14]] [#allocation49]
        %341 = sst [smem:[#allocation15]] [#allocation48]
      $region101: #{tpu_custom_call.1} parent=28 // pred_fallthru
        _
      %343 = shalt.err (0)
      %s345 = sshll.u32 %s337, 4
      %s346 = int_to_ptr.vmem [resolvable:$true] %s345
      %348 = dma.hbm_to_vmem [thread:$0]  %s336, 16, %s346, [#allocation3]
      %s349 = sld [smem:[#allocation5 + $0x12]]
      %s350 = sadd.s32 %s349, 96
      %s351 = smul.addr %s350, 16
      %s352 = scalar_lea.hbm %s1, %s351
      %s353 = scalar_lea.vmem [#allocation2], 6
      // Predicated region
      $region102: #{tpu_custom_call.1} parent=28 // pred_check
        _
      $region103: #{tpu_custom_call.1} parent=28 // pred_check_branch
        %355 = sbr.rel target = $region105
      $region104: #{tpu_custom_call.1} parent=28 // pred_region
        %356 = sst [smem:[#allocation14]] [#allocation51]
        %357 = sst [smem:[#allocation15]] [#allocation50]
      $region105: #{tpu_custom_call.1} parent=28 // pred_fallthru
        _
      %359 = shalt.err (0)
      %s361 = sshll.u32 %s353, 4
      %s362 = int_to_ptr.vmem [resolvable:$true] %s361
      %364 = dma.hbm_to_vmem [thread:$0]  %s352, 16, %s362, [#allocation3]
      %s365 = sld [smem:[#allocation5 + $0x13]]
      %s366 = sadd.s32 %s365, 96
      %s367 = smul.addr %s366, 16
      %s368 = scalar_lea.hbm %s1, %s367
      %s369 = scalar_lea.vmem [#allocation2], 14
      // Predicated region
      $region106: #{tpu_custom_call.1} parent=28 // pred_check
        _
      $region107: #{tpu_custom_call.1} parent=28 // pred_check_branch
        %371 = sbr.rel target = $region109
      $region108: #{tpu_custom_call.1} parent=28 // pred_region
        %372 = sst [smem:[#allocation14]] [#allocation53]
        %373 = sst [smem:[#allocation15]] [#allocation52]
      $region109: #{tpu_custom_call.1} parent=28 // pred_fallthru
        _
      %375 = shalt.err (0)
      %s377 = sshll.u32 %s369, 4
      %s378 = int_to_ptr.vmem [resolvable:$true] %s377
      %380 = dma.hbm_to_vmem [thread:$0]  %s368, 16, %s378, [#allocation3]
      %s381 = sld [smem:[#allocation5 + $0x14]]
      %s382 = sadd.s32 %s381, 96
      %s383 = smul.addr %s382, 16
      %s384 = scalar_lea.hbm %s1, %s383
      %s385 = scalar_lea.vmem [#allocation2], 22
      // Predicated region
      $region110: #{tpu_custom_call.1} parent=28 // pred_check
        _
      $region111: #{tpu_custom_call.1} parent=28 // pred_check_branch
        %387 = sbr.rel target = $region113
      $region112: #{tpu_custom_call.1} parent=28 // pred_region
        %388 = sst [smem:[#allocation14]] [#allocation55]
        %389 = sst [smem:[#allocation15]] [#allocation54]
      $region113: #{tpu_custom_call.1} parent=28 // pred_fallthru
        _
      %391 = shalt.err (0)
      %s393 = sshll.u32 %s385, 4
      %s394 = int_to_ptr.vmem [resolvable:$true] %s393
      %396 = dma.hbm_to_vmem [thread:$0]  %s384, 16, %s394, [#allocation3]
      %s397 = sld [smem:[#allocation5 + $0x15]]
      %s398 = sadd.s32 %s397, 112
      %s399 = smul.addr %s398, 16
      %s400 = scalar_lea.hbm %s1, %s399
      %s401 = scalar_lea.vmem [#allocation2], 7
      // Predicated region
      $region114: #{tpu_custom_call.1} parent=28 // pred_check
        _
      $region115: #{tpu_custom_call.1} parent=28 // pred_check_branch
        %403 = sbr.rel target = $region117
      $region116: #{tpu_custom_call.1} parent=28 // pred_region
        %404 = sst [smem:[#allocation14]] [#allocation57]
        %405 = sst [smem:[#allocation15]] [#allocation56]
      $region117: #{tpu_custom_call.1} parent=28 // pred_fallthru
        _
      %407 = shalt.err (0)
      %s409 = sshll.u32 %s401, 4
      %s410 = int_to_ptr.vmem [resolvable:$true] %s409
      %412 = dma.hbm_to_vmem [thread:$0]  %s400, 16, %s410, [#allocation3]
      %s413 = sld [smem:[#allocation5 + $0x16]]
      %s414 = sadd.s32 %s413, 112
      %s415 = smul.addr %s414, 16
      %s416 = scalar_lea.hbm %s1, %s415
      %s417 = scalar_lea.vmem [#allocation2], 15
      // Predicated region
      $region118: #{tpu_custom_call.1} parent=28 // pred_check
        _
      $region119: #{tpu_custom_call.1} parent=28 // pred_check_branch
        %419 = sbr.rel target = $region121
      $region120: #{tpu_custom_call.1} parent=28 // pred_region
        %420 = sst [smem:[#allocation14]] [#allocation59]
        %421 = sst [smem:[#allocation15]] [#allocation58]
      $region121: #{tpu_custom_call.1} parent=28 // pred_fallthru
        _
      %423 = shalt.err (0)
      %s425 = sshll.u32 %s417, 4
      %s426 = int_to_ptr.vmem [resolvable:$true] %s425
      %428 = dma.hbm_to_vmem [thread:$0]  %s416, 16, %s426, [#allocation3]
      %s429 = sld [smem:[#allocation5 + $0x17]]
      %s430 = sadd.s32 %s429, 112
      %s431 = smul.addr %s430, 16
      %s432 = scalar_lea.hbm %s1, %s431
      %s433 = scalar_lea.vmem [#allocation2], 23
      // Predicated region
      $region122: #{tpu_custom_call.1} parent=28 // pred_check
        _
      $region123: #{tpu_custom_call.1} parent=28 // pred_check_branch
        %435 = sbr.rel target = $region125
      $region124: #{tpu_custom_call.1} parent=28 // pred_region
        %436 = sst [smem:[#allocation14]] [#allocation61]
        %437 = sst [smem:[#allocation15]] [#allocation60]
      $region125: #{tpu_custom_call.1} parent=28 // pred_fallthru
        _
      %439 = shalt.err (0)
      %s441 = sshll.u32 %s433, 4
      %s442 = int_to_ptr.vmem [resolvable:$true] %s441
      %444 = dma.hbm_to_vmem [thread:$0]  %s432, 16, %s442, [#allocation3]
    $region29: #{tpu_custom_call.1} parent=1 // pred_fallthru
      _
    %s445 = sadd.s32 0, 1
    %p446 = scmp.lt.s32.totalorder %s445, 1
    // Predicated region
    $region126: #{tpu_custom_call.1} parent=1 // pred_check
      %p447 = pneg %p446
    $region127: #{tpu_custom_call.1} parent=1 // pred_check_branch
      %449 = sbr.rel (%p447) target = $region129
    $region128: #{tpu_custom_call.1} parent=1 // pred_region
      %s450 = ssub.s32 1, %s60
      %s451 = smul.u32 %s445, 8
      %p452 = scmp.lt.s32.totalorder %s451, 7
      %s453 = scalar_select %p452, %s451, 7
      %s454 = smul.u32 %s453, 3
      %s455 = sld [smem:[#allocation5 + %s454]]
      %s456 = smul.u32 %s453, 16
      %s457 = sadd.s32 %s455, %s456
      %s458 = smul.addr %s457, 16
      %s459 = scalar_lea.hbm %s1, %s458
      %s460 = smul.u32 %s450, 24
      %s461 = scalar_lea.vmem [#allocation2], %s460
      %s462 = scalar_lea.sflag [#allocation3], %s450
      // Predicated region
      $region130: #{tpu_custom_call.1} parent=128 // pred_check
        _
      $region131: #{tpu_custom_call.1} parent=128 // pred_check_branch
        %464 = sbr.rel target = $region133
      $region132: #{tpu_custom_call.1} parent=128 // pred_region
        %465 = sst [smem:[#allocation14]] [#allocation63]
        %466 = sst [smem:[#allocation15]] [#allocation62]
      $region133: #{tpu_custom_call.1} parent=128 // pred_fallthru
        _
      %468 = shalt.err (0)
      %s470 = sshll.u32 %s461, 4
      %s471 = int_to_ptr.vmem [resolvable:$true] %s470
      %473 = dma.hbm_to_vmem [thread:$0]  %s459, 16, %s471, %s462
      %s474 = sadd.s32 %s454, 1
      %s475 = sld [smem:[#allocation5 + %s474]]
      %s476 = sadd.s32 %s475, %s456
      %s477 = smul.addr %s476, 16
      %s478 = scalar_lea.hbm %s1, %s477
      %s479 = sadd.s32 8, %s460
      %s480 = scalar_lea.vmem [#allocation2], %s479
      // Predicated region
      $region134: #{tpu_custom_call.1} parent=128 // pred_check
        _
      $region135: #{tpu_custom_call.1} parent=128 // pred_check_branch
        %482 = sbr.rel target = $region137
      $region136: #{tpu_custom_call.1} parent=128 // pred_region
        %483 = sst [smem:[#allocation14]] [#allocation65]
        %484 = sst [smem:[#allocation15]] [#allocation64]
      $region137: #{tpu_custom_call.1} parent=128 // pred_fallthru
        _
      %486 = shalt.err (0)
      %s488 = sshll.u32 %s480, 4
      %s489 = int_to_ptr.vmem [resolvable:$true] %s488
      %491 = dma.hbm_to_vmem [thread:$0]  %s478, 16, %s489, %s462
      %s492 = sadd.s32 %s454, 2
      %s493 = sld [smem:[#allocation5 + %s492]]
      %s494 = sadd.s32 %s493, %s456
      %s495 = smul.addr %s494, 16
      %s496 = scalar_lea.hbm %s1, %s495
      %s497 = sadd.s32 16, %s460
      %s498 = scalar_lea.vmem [#allocation2], %s497
      // Predicated region
      $region138: #{tpu_custom_call.1} parent=128 // pred_check
        _
      $region139: #{tpu_custom_call.1} parent=128 // pred_check_branch
        %500 = sbr.rel target = $region141
      $region140: #{tpu_custom_call.1} parent=128 // pred_region
        %501 = sst [smem:[#allocation14]] [#allocation67]
        %502 = sst [smem:[#allocation15]] [#allocation66]
      $region141: #{tpu_custom_call.1} parent=128 // pred_fallthru
        _
      %504 = shalt.err (0)
      %s506 = sshll.u32 %s498, 4
      %s507 = int_to_ptr.vmem [resolvable:$true] %s506
      %509 = dma.hbm_to_vmem [thread:$0]  %s496, 16, %s507, %s462
      %s510 = sadd.s32 %s451, 1
      %p511 = scmp.lt.s32.totalorder %s510, 7
      %s512 = scalar_select %p511, %s510, 7
      %s513 = smul.u32 %s512, 3
      %s514 = sld [smem:[#allocation5 + %s513]]
      %s515 = smul.u32 %s512, 16
      %s516 = sadd.s32 %s514, %s515
      %s517 = smul.addr %s516, 16
      %s518 = scalar_lea.hbm %s1, %s517
      %s519 = sadd.s32 1, %s460
      %s520 = scalar_lea.vmem [#allocation2], %s519
      // Predicated region
      $region142: #{tpu_custom_call.1} parent=128 // pred_check
        _
      $region143: #{tpu_custom_call.1} parent=128 // pred_check_branch
        %522 = sbr.rel target = $region145
      $region144: #{tpu_custom_call.1} parent=128 // pred_region
        %523 = sst [smem:[#allocation14]] [#allocation69]
        %524 = sst [smem:[#allocation15]] [#allocation68]
      $region145: #{tpu_custom_call.1} parent=128 // pred_fallthru
        _
      %526 = shalt.err (0)
      %s528 = sshll.u32 %s520, 4
      %s529 = int_to_ptr.vmem [resolvable:$true] %s528
      %531 = dma.hbm_to_vmem [thread:$0]  %s518, 16, %s529, %s462
      %s532 = sadd.s32 %s513, 1
      %s533 = sld [smem:[#allocation5 + %s532]]
      %s534 = sadd.s32 %s533, %s515
      %s535 = smul.addr %s534, 16
      %s536 = scalar_lea.hbm %s1, %s535
      %s537 = sadd.s32 9, %s460
      %s538 = scalar_lea.vmem [#allocation2], %s537
      // Predicated region
      $region146: #{tpu_custom_call.1} parent=128 // pred_check
        _
      $region147: #{tpu_custom_call.1} parent=128 // pred_check_branch
        %540 = sbr.rel target = $region149
      $region148: #{tpu_custom_call.1} parent=128 // pred_region
        %541 = sst [smem:[#allocation14]] [#allocation71]
        %542 = sst [smem:[#allocation15]] [#allocation70]
      $region149: #{tpu_custom_call.1} parent=128 // pred_fallthru
        _
      %544 = shalt.err (0)
      %s546 = sshll.u32 %s538, 4
      %s547 = int_to_ptr.vmem [resolvable:$true] %s546
      %549 = dma.hbm_to_vmem [thread:$0]  %s536, 16, %s547, %s462
      %s550 = sadd.s32 %s513, 2
      %s551 = sld [smem:[#allocation5 + %s550]]
      %s552 = sadd.s32 %s551, %s515
      %s553 = smul.addr %s552, 16
      %s554 = scalar_lea.hbm %s1, %s553
      %s555 = sadd.s32 17, %s460
      %s556 = scalar_lea.vmem [#allocation2], %s555
      // Predicated region
      $region150: #{tpu_custom_call.1} parent=128 // pred_check
        _
      $region151: #{tpu_custom_call.1} parent=128 // pred_check_branch
        %558 = sbr.rel target = $region153
      $region152: #{tpu_custom_call.1} parent=128 // pred_region
        %559 = sst [smem:[#allocation14]] [#allocation73]
        %560 = sst [smem:[#allocation15]] [#allocation72]
      $region153: #{tpu_custom_call.1} parent=128 // pred_fallthru
        _
      %562 = shalt.err (0)
      %s564 = sshll.u32 %s556, 4
      %s565 = int_to_ptr.vmem [resolvable:$true] %s564
      %567 = dma.hbm_to_vmem [thread:$0]  %s554, 16, %s565, %s462
      %s568 = sadd.s32 %s451, 2
      %p569 = scmp.lt.s32.totalorder %s568, 7
      %s570 = scalar_select %p569, %s568, 7
      %s571 = smul.u32 %s570, 3
      %s572 = sld [smem:[#allocation5 + %s571]]
      %s573 = smul.u32 %s570, 16
      %s574 = sadd.s32 %s572, %s573
      %s575 = smul.addr %s574, 16
      %s576 = scalar_lea.hbm %s1, %s575
      %s577 = sadd.s32 2, %s460
      %s578 = scalar_lea.vmem [#allocation2], %s577
      // Predicated region
      $region154: #{tpu_custom_call.1} parent=128 // pred_check
        _
      $region155: #{tpu_custom_call.1} parent=128 // pred_check_branch
        %580 = sbr.rel target = $region157
      $region156: #{tpu_custom_call.1} parent=128 // pred_region
        %581 = sst [smem:[#allocation14]] [#allocation75]
        %582 = sst [smem:[#allocation15]] [#allocation74]
      $region157: #{tpu_custom_call.1} parent=128 // pred_fallthru
        _
      %584 = shalt.err (0)
      %s586 = sshll.u32 %s578, 4
      %s587 = int_to_ptr.vmem [resolvable:$true] %s586
      %589 = dma.hbm_to_vmem [thread:$0]  %s576, 16, %s587, %s462
      %s590 = sadd.s32 %s571, 1
      %s591 = sld [smem:[#allocation5 + %s590]]
      %s592 = sadd.s32 %s591, %s573
      %s593 = smul.addr %s592, 16
      %s594 = scalar_lea.hbm %s1, %s593
      %s595 = sadd.s32 10, %s460
      %s596 = scalar_lea.vmem [#allocation2], %s595
      // Predicated region
      $region158: #{tpu_custom_call.1} parent=128 // pred_check
        _
      $region159: #{tpu_custom_call.1} parent=128 // pred_check_branch
        %598 = sbr.rel target = $region161
      $region160: #{tpu_custom_call.1} parent=128 // pred_region
        %599 = sst [smem:[#allocation14]] [#allocation77]
        %600 = sst [smem:[#allocation15]] [#allocation76]
      $region161: #{tpu_custom_call.1} parent=128 // pred_fallthru
        _
      %602 = shalt.err (0)
      %s604 = sshll.u32 %s596, 4
      %s605 = int_to_ptr.vmem [resolvable:$true] %s604
      %607 = dma.hbm_to_vmem [thread:$0]  %s594, 16, %s605, %s462
      %s608 = sadd.s32 %s571, 2
      %s609 = sld [smem:[#allocation5 + %s608]]
      %s610 = sadd.s32 %s609, %s573
      %s611 = smul.addr %s610, 16
      %s612 = scalar_lea.hbm %s1, %s611
      %s613 = sadd.s32 18, %s460
      %s614 = scalar_lea.vmem [#allocation2], %s613
      // Predicated region
      $region162: #{tpu_custom_call.1} parent=128 // pred_check
        _
      $region163: #{tpu_custom_call.1} parent=128 // pred_check_branch
        %616 = sbr.rel target = $region165
      $region164: #{tpu_custom_call.1} parent=128 // pred_region
        %617 = sst [smem:[#allocation14]] [#allocation79]
        %618 = sst [smem:[#allocation15]] [#allocation78]
      $region165: #{tpu_custom_call.1} parent=128 // pred_fallthru
        _
      %620 = shalt.err (0)
      %s622 = sshll.u32 %s614, 4
      %s623 = int_to_ptr.vmem [resolvable:$true] %s622
      %625 = dma.hbm_to_vmem [thread:$0]  %s612, 16, %s623, %s462
      %s626 = sadd.s32 %s451, 3
      %p627 = scmp.lt.s32.totalorder %s626, 7
      %s628 = scalar_select %p627, %s626, 7
      %s629 = smul.u32 %s628, 3
      %s630 = sld [smem:[#allocation5 + %s629]]
      %s631 = smul.u32 %s628, 16
      %s632 = sadd.s32 %s630, %s631
      %s633 = smul.addr %s632, 16
      %s634 = scalar_lea.hbm %s1, %s633
      %s635 = sadd.s32 3, %s460
      %s636 = scalar_lea.vmem [#allocation2], %s635
      // Predicated region
      $region166: #{tpu_custom_call.1} parent=128 // pred_check
        _
      $region167: #{tpu_custom_call.1} parent=128 // pred_check_branch
        %638 = sbr.rel target = $region169
      $region168: #{tpu_custom_call.1} parent=128 // pred_region
        %639 = sst [smem:[#allocation14]] [#allocation81]
        %640 = sst [smem:[#allocation15]] [#allocation80]
      $region169: #{tpu_custom_call.1} parent=128 // pred_fallthru
        _
      %642 = shalt.err (0)
      %s644 = sshll.u32 %s636, 4
      %s645 = int_to_ptr.vmem [resolvable:$true] %s644
      %647 = dma.hbm_to_vmem [thread:$0]  %s634, 16, %s645, %s462
      %s648 = sadd.s32 %s629, 1
      %s649 = sld [smem:[#allocation5 + %s648]]
      %s650 = sadd.s32 %s649, %s631
      %s651 = smul.addr %s650, 16
      %s652 = scalar_lea.hbm %s1, %s651
      %s653 = sadd.s32 11, %s460
      %s654 = scalar_lea.vmem [#allocation2], %s653
      // Predicated region
      $region170: #{tpu_custom_call.1} parent=128 // pred_check
        _
      $region171: #{tpu_custom_call.1} parent=128 // pred_check_branch
        %656 = sbr.rel target = $region173
      $region172: #{tpu_custom_call.1} parent=128 // pred_region
        %657 = sst [smem:[#allocation14]] [#allocation83]
        %658 = sst [smem:[#allocation15]] [#allocation82]
      $region173: #{tpu_custom_call.1} parent=128 // pred_fallthru
        _
      %660 = shalt.err (0)
      %s662 = sshll.u32 %s654, 4
      %s663 = int_to_ptr.vmem [resolvable:$true] %s662
      %665 = dma.hbm_to_vmem [thread:$0]  %s652, 16, %s663, %s462
      %s666 = sadd.s32 %s629, 2
      %s667 = sld [smem:[#allocation5 + %s666]]
      %s668 = sadd.s32 %s667, %s631
      %s669 = smul.addr %s668, 16
      %s670 = scalar_lea.hbm %s1, %s669
      %s671 = sadd.s32 19, %s460
      %s672 = scalar_lea.vmem [#allocation2], %s671
      // Predicated region
      $region174: #{tpu_custom_call.1} parent=128 // pred_check
        _
      $region175: #{tpu_custom_call.1} parent=128 // pred_check_branch
        %674 = sbr.rel target = $region177
      $region176: #{tpu_custom_call.1} parent=128 // pred_region
        %675 = sst [smem:[#allocation14]] [#allocation85]
        %676 = sst [smem:[#allocation15]] [#allocation84]
      $region177: #{tpu_custom_call.1} parent=128 // pred_fallthru
        _
      %678 = shalt.err (0)
      %s680 = sshll.u32 %s672, 4
      %s681 = int_to_ptr.vmem [resolvable:$true] %s680
      %683 = dma.hbm_to_vmem [thread:$0]  %s670, 16, %s681, %s462
      %s684 = sadd.s32 %s451, 4
      %p685 = scmp.lt.s32.totalorder %s684, 7
      %s686 = scalar_select %p685, %s684, 7
      %s687 = smul.u32 %s686, 3
      %s688 = sld [smem:[#allocation5 + %s687]]
      %s689 = smul.u32 %s686, 16
      %s690 = sadd.s32 %s688, %s689
      %s691 = smul.addr %s690, 16
      %s692 = scalar_lea.hbm %s1, %s691
      %s693 = sadd.s32 4, %s460
      %s694 = scalar_lea.vmem [#allocation2], %s693
      // Predicated region
      $region178: #{tpu_custom_call.1} parent=128 // pred_check
        _
      $region179: #{tpu_custom_call.1} parent=128 // pred_check_branch
        %696 = sbr.rel target = $region181
      $region180: #{tpu_custom_call.1} parent=128 // pred_region
        %697 = sst [smem:[#allocation14]] [#allocation87]
        %698 = sst [smem:[#allocation15]] [#allocation86]
      $region181: #{tpu_custom_call.1} parent=128 // pred_fallthru
        _
      %700 = shalt.err (0)
      %s702 = sshll.u32 %s694, 4
      %s703 = int_to_ptr.vmem [resolvable:$true] %s702
      %705 = dma.hbm_to_vmem [thread:$0]  %s692, 16, %s703, %s462
      %s706 = sadd.s32 %s687, 1
      %s707 = sld [smem:[#allocation5 + %s706]]
      %s708 = sadd.s32 %s707, %s689
      %s709 = smul.addr %s708, 16
      %s710 = scalar_lea.hbm %s1, %s709
      %s711 = sadd.s32 12, %s460
      %s712 = scalar_lea.vmem [#allocation2], %s711
      // Predicated region
      $region182: #{tpu_custom_call.1} parent=128 // pred_check
        _
      $region183: #{tpu_custom_call.1} parent=128 // pred_check_branch
        %714 = sbr.rel target = $region185
      $region184: #{tpu_custom_call.1} parent=128 // pred_region
        %715 = sst [smem:[#allocation14]] [#allocation89]
        %716 = sst [smem:[#allocation15]] [#allocation88]
      $region185: #{tpu_custom_call.1} parent=128 // pred_fallthru
        _
      %718 = shalt.err (0)
      %s720 = sshll.u32 %s712, 4
      %s721 = int_to_ptr.vmem [resolvable:$true] %s720
      %723 = dma.hbm_to_vmem [thread:$0]  %s710, 16, %s721, %s462
      %s724 = sadd.s32 %s687, 2
      %s725 = sld [smem:[#allocation5 + %s724]]
      %s726 = sadd.s32 %s725, %s689
      %s727 = smul.addr %s726, 16
      %s728 = scalar_lea.hbm %s1, %s727
      %s729 = sadd.s32 20, %s460
      %s730 = scalar_lea.vmem [#allocation2], %s729
      // Predicated region
      $region186: #{tpu_custom_call.1} parent=128 // pred_check
        _
      $region187: #{tpu_custom_call.1} parent=128 // pred_check_branch
        %732 = sbr.rel target = $region189
      $region188: #{tpu_custom_call.1} parent=128 // pred_region
        %733 = sst [smem:[#allocation14]] [#allocation91]
        %734 = sst [smem:[#allocation15]] [#allocation90]
      $region189: #{tpu_custom_call.1} parent=128 // pred_fallthru
        _
      %736 = shalt.err (0)
      %s738 = sshll.u32 %s730, 4
      %s739 = int_to_ptr.vmem [resolvable:$true] %s738
      %741 = dma.hbm_to_vmem [thread:$0]  %s728, 16, %s739, %s462
      %s742 = sadd.s32 %s451, 5
      %p743 = scmp.lt.s32.totalorder %s742, 7
      %s744 = scalar_select %p743, %s742, 7
      %s745 = smul.u32 %s744, 3
      %s746 = sld [smem:[#allocation5 + %s745]]
      %s747 = smul.u32 %s744, 16
      %s748 = sadd.s32 %s746, %s747
      %s749 = smul.addr %s748, 16
      %s750 = scalar_lea.hbm %s1, %s749
      %s751 = sadd.s32 5, %s460
      %s752 = scalar_lea.vmem [#allocation2], %s751
      // Predicated region
      $region190: #{tpu_custom_call.1} parent=128 // pred_check
        _
      $region191: #{tpu_custom_call.1} parent=128 // pred_check_branch
        %754 = sbr.rel target = $region193
      $region192: #{tpu_custom_call.1} parent=128 // pred_region
        %755 = sst [smem:[#allocation14]] [#allocation93]
        %756 = sst [smem:[#allocation15]] [#allocation92]
      $region193: #{tpu_custom_call.1} parent=128 // pred_fallthru
        _
      %758 = shalt.err (0)
      %s760 = sshll.u32 %s752, 4
      %s761 = int_to_ptr.vmem [resolvable:$true] %s760
      %763 = dma.hbm_to_vmem [thread:$0]  %s750, 16, %s761, %s462
      %s764 = sadd.s32 %s745, 1
      %s765 = sld [smem:[#allocation5 + %s764]]
      %s766 = sadd.s32 %s765, %s747
      %s767 = smul.addr %s766, 16
      %s768 = scalar_lea.hbm %s1, %s767
      %s769 = sadd.s32 13, %s460
      %s770 = scalar_lea.vmem [#allocation2], %s769
      // Predicated region
      $region194: #{tpu_custom_call.1} parent=128 // pred_check
        _
      $region195: #{tpu_custom_call.1} parent=128 // pred_check_branch
        %772 = sbr.rel target = $region197
      $region196: #{tpu_custom_call.1} parent=128 // pred_region
        %773 = sst [smem:[#allocation14]] [#allocation95]
        %774 = sst [smem:[#allocation15]] [#allocation94]
      $region197: #{tpu_custom_call.1} parent=128 // pred_fallthru
        _
      %776 = shalt.err (0)
      %s778 = sshll.u32 %s770, 4
      %s779 = int_to_ptr.vmem [resolvable:$true] %s778
      %781 = dma.hbm_to_vmem [thread:$0]  %s768, 16, %s779, %s462
      %s782 = sadd.s32 %s745, 2
      %s783 = sld [smem:[#allocation5 + %s782]]
      %s784 = sadd.s32 %s783, %s747
      %s785 = smul.addr %s784, 16
      %s786 = scalar_lea.hbm %s1, %s785
      %s787 = sadd.s32 21, %s460
      %s788 = scalar_lea.vmem [#allocation2], %s787
      // Predicated region
      $region198: #{tpu_custom_call.1} parent=128 // pred_check
        _
      $region199: #{tpu_custom_call.1} parent=128 // pred_check_branch
        %790 = sbr.rel target = $region201
      $region200: #{tpu_custom_call.1} parent=128 // pred_region
        %791 = sst [smem:[#allocation14]] [#allocation97]
        %792 = sst [smem:[#allocation15]] [#allocation96]
      $region201: #{tpu_custom_call.1} parent=128 // pred_fallthru
        _
      %794 = shalt.err (0)
      %s796 = sshll.u32 %s788, 4
      %s797 = int_to_ptr.vmem [resolvable:$true] %s796
      %799 = dma.hbm_to_vmem [thread:$0]  %s786, 16, %s797, %s462
      %s800 = sadd.s32 %s451, 6
      %p801 = scmp.lt.s32.totalorder %s800, 7
      %s802 = scalar_select %p801, %s800, 7
      %s803 = smul.u32 %s802, 3
      %s804 = sld [smem:[#allocation5 + %s803]]
      %s805 = smul.u32 %s802, 16
      %s806 = sadd.s32 %s804, %s805
      %s807 = smul.addr %s806, 16
      %s808 = scalar_lea.hbm %s1, %s807
      %s809 = sadd.s32 6, %s460
      %s810 = scalar_lea.vmem [#allocation2], %s809
      // Predicated region
      $region202: #{tpu_custom_call.1} parent=128 // pred_check
        _
      $region203: #{tpu_custom_call.1} parent=128 // pred_check_branch
        %812 = sbr.rel target = $region205
      $region204: #{tpu_custom_call.1} parent=128 // pred_region
        %813 = sst [smem:[#allocation14]] [#allocation99]
        %814 = sst [smem:[#allocation15]] [#allocation98]
      $region205: #{tpu_custom_call.1} parent=128 // pred_fallthru
        _
      %816 = shalt.err (0)
      %s818 = sshll.u32 %s810, 4
      %s819 = int_to_ptr.vmem [resolvable:$true] %s818
      %821 = dma.hbm_to_vmem [thread:$0]  %s808, 16, %s819, %s462
      %s822 = sadd.s32 %s803, 1
      %s823 = sld [smem:[#allocation5 + %s822]]
      %s824 = sadd.s32 %s823, %s805
      %s825 = smul.addr %s824, 16
      %s826 = scalar_lea.hbm %s1, %s825
      %s827 = sadd.s32 14, %s460
      %s828 = scalar_lea.vmem [#allocation2], %s827
      // Predicated region
      $region206: #{tpu_custom_call.1} parent=128 // pred_check
        _
      $region207: #{tpu_custom_call.1} parent=128 // pred_check_branch
        %830 = sbr.rel target = $region209
      $region208: #{tpu_custom_call.1} parent=128 // pred_region
        %831 = sst [smem:[#allocation14]] [#allocation101]
        %832 = sst [smem:[#allocation15]] [#allocation100]
      $region209: #{tpu_custom_call.1} parent=128 // pred_fallthru
        _
      %834 = shalt.err (0)
      %s836 = sshll.u32 %s828, 4
      %s837 = int_to_ptr.vmem [resolvable:$true] %s836
      %839 = dma.hbm_to_vmem [thread:$0]  %s826, 16, %s837, %s462
      %s840 = sadd.s32 %s803, 2
      %s841 = sld [smem:[#allocation5 + %s840]]
      %s842 = sadd.s32 %s841, %s805
      %s843 = smul.addr %s842, 16
      %s844 = scalar_lea.hbm %s1, %s843
      %s845 = sadd.s32 22, %s460
      %s846 = scalar_lea.vmem [#allocation2], %s845
      // Predicated region
      $region210: #{tpu_custom_call.1} parent=128 // pred_check
        _
      $region211: #{tpu_custom_call.1} parent=128 // pred_check_branch
        %848 = sbr.rel target = $region213
      $region212: #{tpu_custom_call.1} parent=128 // pred_region
        %849 = sst [smem:[#allocation14]] [#allocation103]
        %850 = sst [smem:[#allocation15]] [#allocation102]
      $region213: #{tpu_custom_call.1} parent=128 // pred_fallthru
        _
      %852 = shalt.err (0)
      %s854 = sshll.u32 %s846, 4
      %s855 = int_to_ptr.vmem [resolvable:$true] %s854
      %857 = dma.hbm_to_vmem [thread:$0]  %s844, 16, %s855, %s462
      %s858 = sadd.s32 %s451, 7
      %p859 = scmp.lt.s32.totalorder %s858, 7
      %s860 = scalar_select %p859, %s858, 7
      %s861 = smul.u32 %s860, 3
      %s862 = sld [smem:[#allocation5 + %s861]]
      %s863 = smul.u32 %s860, 16
      %s864 = sadd.s32 %s862, %s863
      %s865 = smul.addr %s864, 16
      %s866 = scalar_lea.hbm %s1, %s865
      %s867 = sadd.s32 7, %s460
      %s868 = scalar_lea.vmem [#allocation2], %s867
      // Predicated region
      $region214: #{tpu_custom_call.1} parent=128 // pred_check
        _
      $region215: #{tpu_custom_call.1} parent=128 // pred_check_branch
        %870 = sbr.rel target = $region217
      $region216: #{tpu_custom_call.1} parent=128 // pred_region
        %871 = sst [smem:[#allocation14]] [#allocation105]
        %872 = sst [smem:[#allocation15]] [#allocation104]
      $region217: #{tpu_custom_call.1} parent=128 // pred_fallthru
        _
      %874 = shalt.err (0)
      %s876 = sshll.u32 %s868, 4
      %s877 = int_to_ptr.vmem [resolvable:$true] %s876
      %879 = dma.hbm_to_vmem [thread:$0]  %s866, 16, %s877, %s462
      %s880 = sadd.s32 %s861, 1
      %s881 = sld [smem:[#allocation5 + %s880]]
      %s882 = sadd.s32 %s881, %s863
      %s883 = smul.addr %s882, 16
      %s884 = scalar_lea.hbm %s1, %s883
      %s885 = sadd.s32 15, %s460
      %s886 = scalar_lea.vmem [#allocation2], %s885
      // Predicated region
      $region218: #{tpu_custom_call.1} parent=128 // pred_check
        _
      $region219: #{tpu_custom_call.1} parent=128 // pred_check_branch
        %888 = sbr.rel target = $region221
      $region220: #{tpu_custom_call.1} parent=128 // pred_region
        %889 = sst [smem:[#allocation14]] [#allocation107]
        %890 = sst [smem:[#allocation15]] [#allocation106]
      $region221: #{tpu_custom_call.1} parent=128 // pred_fallthru
        _
      %892 = shalt.err (0)
      %s894 = sshll.u32 %s886, 4
      %s895 = int_to_ptr.vmem [resolvable:$true] %s894
      %897 = dma.hbm_to_vmem [thread:$0]  %s884, 16, %s895, %s462
      %s898 = sadd.s32 %s861, 2
      %s899 = sld [smem:[#allocation5 + %s898]]
      %s900 = sadd.s32 %s899, %s863
      %s901 = smul.addr %s900, 16
      %s902 = scalar_lea.hbm %s1, %s901
      %s903 = sadd.s32 23, %s460
      %s904 = scalar_lea.vmem [#allocation2], %s903
      // Predicated region
      $region222: #{tpu_custom_call.1} parent=128 // pred_check
        _
      $region223: #{tpu_custom_call.1} parent=128 // pred_check_branch
        %906 = sbr.rel target = $region225
      $region224: #{tpu_custom_call.1} parent=128 // pred_region
        %907 = sst [smem:[#allocation14]] [#allocation109]
        %908 = sst [smem:[#allocation15]] [#allocation108]
      $region225: #{tpu_custom_call.1} parent=128 // pred_fallthru
        _
      %910 = shalt.err (0)
      %s912 = sshll.u32 %s904, 4
      %s913 = int_to_ptr.vmem [resolvable:$true] %s912
      %915 = dma.hbm_to_vmem [thread:$0]  %s902, 16, %s913, %s462
    $region129: #{tpu_custom_call.1} parent=1 // pred_fallthru
      _
    %s916 = smul.u32 %s60, 3
    %s917 = smul.addr %s916, 8
    %s918 = scalar_lea.vmem [#allocation2], %s917
    %s919 = scalar_lea.sflag [#allocation3], %s60
    %s920 = smul.u32 8, 1
    %s921 = smul.u32 %s920, 3
    %s922 = sshll.u32 %s921, 4
    %923 = dma.done %s919, %s922
    %v924 = vld [vmem:[%s918] sm:$0xff]
    %v925 = vld [vmem:[%s918 + $0x8] sm:$0xff]
    %v926 = vld [vmem:[%s918 + $0x10] sm:$0xff]
    %v927 = vpack.c.bf16 %v924, %v924
    %v928 = vpack.c.bf16 %v925, %v925
    %v929 = vpack.c.bf16 %v926, %v926
    %v930 = vld [vmem:[#allocation6] sm:$0xff]
    %v931 = vld [vmem:[#allocation6 + $0x8] sm:$0xff]
    %v932 = vld [vmem:[#allocation6 + $0x10] sm:$0xff]
    %v933 = vld [vmem:[#allocation6 + $0x18] sm:$0xff]
    %v934 = vld [vmem:[#allocation6 + $0x20] sm:$0xff]
    %v935 = vld [vmem:[#allocation6 + $0x28] sm:$0xff]
    %v936 = vld [vmem:[#allocation6 + $0x30] sm:$0xff]
    %v937 = vld [vmem:[#allocation6 + $0x38] sm:$0xff]
    %v938 = vld [vmem:[#allocation6 + $0x40] sm:$0xff]
    %v939 = vld [vmem:[#allocation6 + $0x48] sm:$0xff]
    %v940 = vld [vmem:[#allocation6 + $0x50] sm:$0xff]
    %v941 = vld [vmem:[#allocation6 + $0x58] sm:$0xff]
    %v942 = vld [vmem:[#allocation6 + $0x60] sm:$0xff]
    %v943 = vld [vmem:[#allocation6 + $0x68] sm:$0xff]
    %v944 = vld [vmem:[#allocation6 + $0x70] sm:$0xff]
    %v945 = vld [vmem:[#allocation6 + $0x78] sm:$0xff]
    %v946 = vld [vmem:[#allocation6 + $0x80] sm:$0xff]
    %v947 = vld [vmem:[#allocation6 + $0x88] sm:$0xff]
    %v948 = vld [vmem:[#allocation6 + $0x90] sm:$0xff]
    %v949 = vld [vmem:[#allocation6 + $0x98] sm:$0xff]
    %v950 = vld [vmem:[#allocation6 + $0xa0] sm:$0xff]
    %v951 = vld [vmem:[#allocation6 + $0xa8] sm:$0xff]
    %v952 = vld [vmem:[#allocation6 + $0xb0] sm:$0xff]
    %v953 = vld [vmem:[#allocation6 + $0xb8] sm:$0xff]
    %v954 = vld [vmem:[#allocation6 + $0xc0] sm:$0xff]
    %v955 = vld [vmem:[#allocation6 + $0xc8] sm:$0xff]
    %v956 = vld [vmem:[#allocation6 + $0xd0] sm:$0xff]
    %v957 = vld [vmem:[#allocation6 + $0xd8] sm:$0xff]
    %v958 = vld [vmem:[#allocation6 + $0xe0] sm:$0xff]
    %v959 = vld [vmem:[#allocation6 + $0xe8] sm:$0xff]
    %v960 = vld [vmem:[#allocation6 + $0xf0] sm:$0xff]
    %v961 = vld [vmem:[#allocation6 + $0xf8] sm:$0xff]
    %v962 = vld [vmem:[#allocation6 + $0x100] sm:$0xff]
    %v963 = vld [vmem:[#allocation6 + $0x108] sm:$0xff]
    %v964 = vld [vmem:[#allocation6 + $0x110] sm:$0xff]
    %v965 = vld [vmem:[#allocation6 + $0x118] sm:$0xff]
    %v966 = vld [vmem:[#allocation6 + $0x120] sm:$0xff]
    %v967 = vld [vmem:[#allocation6 + $0x128] sm:$0xff]
    %v968 = vld [vmem:[#allocation6 + $0x130] sm:$0xff]
    %v969 = vld [vmem:[#allocation6 + $0x138] sm:$0xff]
    %v970 = vld [vmem:[#allocation6 + $0x140] sm:$0xff]
    %v971 = vld [vmem:[#allocation6 + $0x148] sm:$0xff]
    %v972 = vld [vmem:[#allocation6 + $0x150] sm:$0xff]
    %v973 = vld [vmem:[#allocation6 + $0x158] sm:$0xff]
    %v974 = vld [vmem:[#allocation6 + $0x160] sm:$0xff]
    %v975 = vld [vmem:[#allocation6 + $0x168] sm:$0xff]
    %v976 = vld [vmem:[#allocation6 + $0x170] sm:$0xff]
    %v977 = vld [vmem:[#allocation6 + $0x178] sm:$0xff]
    %v978 = vld [vmem:[#allocation6 + $0x180] sm:$0xff]
    %v979 = vld [vmem:[#allocation6 + $0x188] sm:$0xff]
    %v980 = vld [vmem:[#allocation6 + $0x190] sm:$0xff]
    %v981 = vld [vmem:[#allocation6 + $0x198] sm:$0xff]
    %v982 = vld [vmem:[#allocation6 + $0x1a0] sm:$0xff]
    %v983 = vld [vmem:[#allocation6 + $0x1a8] sm:$0xff]
    %v984 = vld [vmem:[#allocation6 + $0x1b0] sm:$0xff]
    %v985 = vld [vmem:[#allocation6 + $0x1b8] sm:$0xff]
    %v986 = vld [vmem:[#allocation6 + $0x1c0] sm:$0xff]
    %v987 = vld [vmem:[#allocation6 + $0x1c8] sm:$0xff]
    %v988 = vld [vmem:[#allocation6 + $0x1d0] sm:$0xff]
    %v989 = vld [vmem:[#allocation6 + $0x1d8] sm:$0xff]
    %v990 = vld [vmem:[#allocation6 + $0x1e0] sm:$0xff]
    %v991 = vld [vmem:[#allocation6 + $0x1e8] sm:$0xff]
    %v992 = vld [vmem:[#allocation6 + $0x1f0] sm:$0xff]
    %v993 = vld [vmem:[#allocation6 + $0x1f8] sm:$0xff]
    %v994 = vld [vmem:[#allocation6 + $0x200] sm:$0xff]
    %v995 = vld [vmem:[#allocation6 + $0x208] sm:$0xff]
    %v996 = vld [vmem:[#allocation6 + $0x210] sm:$0xff]
    %v997 = vld [vmem:[#allocation6 + $0x218] sm:$0xff]
    %v998 = vld [vmem:[#allocation6 + $0x220] sm:$0xff]
    %v999 = vld [vmem:[#allocation6 + $0x228] sm:$0xff]
    %v1000 = vld [vmem:[#allocation6 + $0x230] sm:$0xff]
    %v1001 = vld [vmem:[#allocation6 + $0x238] sm:$0xff]
    %v1002 = vld [vmem:[#allocation6 + $0x240] sm:$0xff]
    %v1003 = vld [vmem:[#allocation6 + $0x248] sm:$0xff]
    %v1004 = vld [vmem:[#allocation6 + $0x250] sm:$0xff]
    %v1005 = vld [vmem:[#allocation6 + $0x258] sm:$0xff]
    %v1006 = vld [vmem:[#allocation6 + $0x260] sm:$0xff]
    %v1007 = vld [vmem:[#allocation6 + $0x268] sm:$0xff]
    %v1008 = vld [vmem:[#allocation6 + $0x270] sm:$0xff]
    %v1009 = vld [vmem:[#allocation6 + $0x278] sm:$0xff]
    %v1010 = vld [vmem:[#allocation6 + $0x280] sm:$0xff]
    %v1011 = vld [vmem:[#allocation6 + $0x288] sm:$0xff]
    %v1012 = vld [vmem:[#allocation6 + $0x290] sm:$0xff]
    %v1013 = vld [vmem:[#allocation6 + $0x298] sm:$0xff]
    %v1014 = vld [vmem:[#allocation6 + $0x2a0] sm:$0xff]
    %v1015 = vld [vmem:[#allocation6 + $0x2a8] sm:$0xff]
    %v1016 = vld [vmem:[#allocation6 + $0x2b0] sm:$0xff]
    %v1017 = vld [vmem:[#allocation6 + $0x2b8] sm:$0xff]
    %v1018 = vld [vmem:[#allocation6 + $0x2c0] sm:$0xff]
    %v1019 = vld [vmem:[#allocation6 + $0x2c8] sm:$0xff]
    %v1020 = vld [vmem:[#allocation6 + $0x2d0] sm:$0xff]
    %v1021 = vld [vmem:[#allocation6 + $0x2d8] sm:$0xff]
    %v1022 = vld [vmem:[#allocation6 + $0x2e0] sm:$0xff]
    %v1023 = vld [vmem:[#allocation6 + $0x2e8] sm:$0xff]
    %v1024 = vld [vmem:[#allocation6 + $0x2f0] sm:$0xff]
    %v1025 = vld [vmem:[#allocation6 + $0x2f8] sm:$0xff]
    %v1026 = vld [vmem:[%s3] sm:$0xf]
    %v1028 = vlaneseq
    %v1029 = vshrl.u32 %v1028, 7
    %v1030 = vsub.s32 0, %v1029
    %v1031 = vrot.slane %v1026, %v1030
    %v1032 = vlaneseq
    %v1033 = vshrl.u32 %v1032, 7
    %v1034 = vsub.s32 1, %v1033
    %v1035 = vrot.slane %v1026, %v1034
    %v1036 = vlaneseq
    %v1037 = vshrl.u32 %v1036, 7
    %v1038 = vsub.s32 2, %v1037
    %v1039 = vrot.slane %v1026, %v1038
    %v1040 = vlaneseq
    %v1041 = vshrl.u32 %v1040, 7
    %v1042 = vsub.s32 3, %v1041
    %v1043 = vrot.slane %v1026, %v1042
    %v1144 = vunpack.c.l.b16 %v930
    %v1145 = vunpack.c.h.b16 %v930
    %v1146 = vunpack.c.l.b16 %v931
    %v1147 = vunpack.c.h.b16 %v931
    %v1148 = vunpack.c.l.b16 %v932
    %v1149 = vunpack.c.h.b16 %v932
    %v1150 = vunpack.c.l.b16 %v933
    %v1151 = vunpack.c.h.b16 %v933
    %v1152 = vunpack.c.l.b16 %v934
    %v1153 = vunpack.c.h.b16 %v934
    %v1154 = vunpack.c.l.b16 %v935
    %v1155 = vunpack.c.h.b16 %v935
    %v1156 = vunpack.c.l.b16 %v936
    %v1157 = vunpack.c.h.b16 %v936
    %v1158 = vunpack.c.l.b16 %v937
    %v1159 = vunpack.c.h.b16 %v937
    %v1160 = vunpack.c.l.b16 %v938
    %v1161 = vunpack.c.h.b16 %v938
    %v1162 = vunpack.c.l.b16 %v939
    %v1163 = vunpack.c.h.b16 %v939
    %v1164 = vunpack.c.l.b16 %v940
    %v1165 = vunpack.c.h.b16 %v940
    %v1166 = vunpack.c.l.b16 %v941
    %v1167 = vunpack.c.h.b16 %v941
    %v1168 = vunpack.c.l.b16 %v942
    %v1169 = vunpack.c.h.b16 %v942
    %v1170 = vunpack.c.l.b16 %v943
    %v1171 = vunpack.c.h.b16 %v943
    %v1172 = vunpack.c.l.b16 %v944
    %v1173 = vunpack.c.h.b16 %v944
    %v1174 = vunpack.c.l.b16 %v945
    %v1175 = vunpack.c.h.b16 %v945
    %v1176 = vunpack.c.l.b16 %v946
    %v1177 = vunpack.c.h.b16 %v946
    %v1178 = vunpack.c.l.b16 %v947
    %v1179 = vunpack.c.h.b16 %v947
    %v1180 = vunpack.c.l.b16 %v948
    %v1181 = vunpack.c.h.b16 %v948
    %v1182 = vunpack.c.l.b16 %v949
    %v1183 = vunpack.c.h.b16 %v949
    %v1184 = vunpack.c.l.b16 %v950
    %v1185 = vunpack.c.h.b16 %v950
    %v1186 = vunpack.c.l.b16 %v951
    %v1187 = vunpack.c.h.b16 %v951
    %v1188 = vunpack.c.l.b16 %v952
    %v1189 = vunpack.c.h.b16 %v952
    %v1190 = vunpack.c.l.b16 %v953
    %v1191 = vunpack.c.h.b16 %v953
    %v1192 = vunpack.c.l.b16 %v954
    %v1193 = vunpack.c.h.b16 %v954
    %v1194 = vunpack.c.l.b16 %v955
    %v1195 = vunpack.c.h.b16 %v955
    %v1196 = vunpack.c.l.b16 %v956
    %v1197 = vunpack.c.h.b16 %v956
    %v1198 = vunpack.c.l.b16 %v957
    %v1199 = vunpack.c.h.b16 %v957
    %v1200 = vunpack.c.l.b16 %v958
    %v1201 = vunpack.c.h.b16 %v958
    %v1202 = vunpack.c.l.b16 %v959
    %v1203 = vunpack.c.h.b16 %v959
    %v1204 = vunpack.c.l.b16 %v960
    %v1205 = vunpack.c.h.b16 %v960
    %v1206 = vunpack.c.l.b16 %v961
    %v1207 = vunpack.c.h.b16 %v961
    %v1208 = vunpack.c.l.b16 %v962
    %v1209 = vunpack.c.h.b16 %v962
    %v1210 = vunpack.c.l.b16 %v963
    %v1211 = vunpack.c.h.b16 %v963
    %v1212 = vunpack.c.l.b16 %v964
    %v1213 = vunpack.c.h.b16 %v964
    %v1214 = vunpack.c.l.b16 %v965
    %v1215 = vunpack.c.h.b16 %v965
    %v1216 = vunpack.c.l.b16 %v966
    %v1217 = vunpack.c.h.b16 %v966
    %v1218 = vunpack.c.l.b16 %v967
    %v1219 = vunpack.c.h.b16 %v967
    %v1220 = vunpack.c.l.b16 %v968
    %v1221 = vunpack.c.h.b16 %v968
    %v1222 = vunpack.c.l.b16 %v969
    %v1223 = vunpack.c.h.b16 %v969
    %v1224 = vunpack.c.l.b16 %v970
    %v1225 = vunpack.c.h.b16 %v970
    %v1226 = vunpack.c.l.b16 %v971
    %v1227 = vunpack.c.h.b16 %v971
    %v1228 = vunpack.c.l.b16 %v972
    %v1229 = vunpack.c.h.b16 %v972
    %v1230 = vunpack.c.l.b16 %v973
    %v1231 = vunpack.c.h.b16 %v973
    %v1232 = vunpack.c.l.b16 %v974
    %v1233 = vunpack.c.h.b16 %v974
    %v1234 = vunpack.c.l.b16 %v975
    %v1235 = vunpack.c.h.b16 %v975
    %v1236 = vunpack.c.l.b16 %v976
    %v1237 = vunpack.c.h.b16 %v976
    %v1238 = vunpack.c.l.b16 %v977
    %v1239 = vunpack.c.h.b16 %v977
    %v1240 = vunpack.c.l.b16 %v978
    %v1241 = vunpack.c.h.b16 %v978
    %v1242 = vunpack.c.l.b16 %v979
    %v1243 = vunpack.c.h.b16 %v979
    %v1244 = vunpack.c.l.b16 %v980
    %v1245 = vunpack.c.h.b16 %v980
    %v1246 = vunpack.c.l.b16 %v981
    %v1247 = vunpack.c.h.b16 %v981
    %v1248 = vunpack.c.l.b16 %v982
    %v1249 = vunpack.c.h.b16 %v982
    %v1250 = vunpack.c.l.b16 %v983
    %v1251 = vunpack.c.h.b16 %v983
    %v1252 = vunpack.c.l.b16 %v984
    %v1253 = vunpack.c.h.b16 %v984
    %v1254 = vunpack.c.l.b16 %v985
    %v1255 = vunpack.c.h.b16 %v985
    %v1256 = vunpack.c.l.b16 %v986
    %v1257 = vunpack.c.h.b16 %v986
    %v1258 = vunpack.c.l.b16 %v987
    %v1259 = vunpack.c.h.b16 %v987
    %v1260 = vunpack.c.l.b16 %v988
    %v1261 = vunpack.c.h.b16 %v988
    %v1262 = vunpack.c.l.b16 %v989
    %v1263 = vunpack.c.h.b16 %v989
    %v1264 = vunpack.c.l.b16 %v990
    %v1265 = vunpack.c.h.b16 %v990
    %v1266 = vunpack.c.l.b16 %v991
    %v1267 = vunpack.c.h.b16 %v991
    %v1268 = vunpack.c.l.b16 %v992
    %v1269 = vunpack.c.h.b16 %v992
    %v1270 = vunpack.c.l.b16 %v993
    %v1271 = vunpack.c.h.b16 %v993
    %v1272 = vunpack.c.l.b16 %v994
    %v1273 = vunpack.c.h.b16 %v994
    %v1274 = vunpack.c.l.b16 %v995
    %v1275 = vunpack.c.h.b16 %v995
    %v1276 = vunpack.c.l.b16 %v996
    %v1277 = vunpack.c.h.b16 %v996
    %v1278 = vunpack.c.l.b16 %v997
    %v1279 = vunpack.c.h.b16 %v997
    %v1280 = vunpack.c.l.b16 %v998
    %v1281 = vunpack.c.h.b16 %v998
    %v1282 = vunpack.c.l.b16 %v999
    %v1283 = vunpack.c.h.b16 %v999
    %v1284 = vunpack.c.l.b16 %v1000
    %v1285 = vunpack.c.h.b16 %v1000
    %v1286 = vunpack.c.l.b16 %v1001
    %v1287 = vunpack.c.h.b16 %v1001
    %v1288 = vunpack.c.l.b16 %v1002
    %v1289 = vunpack.c.h.b16 %v1002
    %v1290 = vunpack.c.l.b16 %v1003
    %v1291 = vunpack.c.h.b16 %v1003
    %v1292 = vunpack.c.l.b16 %v1004
    %v1293 = vunpack.c.h.b16 %v1004
    %v1294 = vunpack.c.l.b16 %v1005
    %v1295 = vunpack.c.h.b16 %v1005
    %v1296 = vunpack.c.l.b16 %v1006
    %v1297 = vunpack.c.h.b16 %v1006
    %v1298 = vunpack.c.l.b16 %v1007
    %v1299 = vunpack.c.h.b16 %v1007
    %v1300 = vunpack.c.l.b16 %v1008
    %v1301 = vunpack.c.h.b16 %v1008
    %v1302 = vunpack.c.l.b16 %v1009
    %v1303 = vunpack.c.h.b16 %v1009
    %v1304 = vunpack.c.l.b16 %v1010
    %v1305 = vunpack.c.h.b16 %v1010
    %v1306 = vunpack.c.l.b16 %v1011
    %v1307 = vunpack.c.h.b16 %v1011
    %v1308 = vunpack.c.l.b16 %v1012
    %v1309 = vunpack.c.h.b16 %v1012
    %v1310 = vunpack.c.l.b16 %v1013
    %v1311 = vunpack.c.h.b16 %v1013
    %v1312 = vunpack.c.l.b16 %v1014
    %v1313 = vunpack.c.h.b16 %v1014
    %v1314 = vunpack.c.l.b16 %v1015
    %v1315 = vunpack.c.h.b16 %v1015
    %v1316 = vunpack.c.l.b16 %v1016
    %v1317 = vunpack.c.h.b16 %v1016
    %v1318 = vunpack.c.l.b16 %v1017
    %v1319 = vunpack.c.h.b16 %v1017
    %v1320 = vunpack.c.l.b16 %v1018
    %v1321 = vunpack.c.h.b16 %v1018
    %v1322 = vunpack.c.l.b16 %v1019
    %v1323 = vunpack.c.h.b16 %v1019
    %v1324 = vunpack.c.l.b16 %v1020
    %v1325 = vunpack.c.h.b16 %v1020
    %v1326 = vunpack.c.l.b16 %v1021
    %v1327 = vunpack.c.h.b16 %v1021
    %v1328 = vunpack.c.l.b16 %v1022
    %v1329 = vunpack.c.h.b16 %v1022
    %v1330 = vunpack.c.l.b16 %v1023
    %v1331 = vunpack.c.h.b16 %v1023
    %v1332 = vunpack.c.l.b16 %v1024
    %v1333 = vunpack.c.h.b16 %v1024
    %v1334 = vunpack.c.l.b16 %v1025
    %v1335 = vunpack.c.h.b16 %v1025
    %v1336 = vpack.c.b16 %v1148, %v1144
    %v1337 = vpack.c.b16 %v1149, %v1145
    %v1338 = vpack.c.b16 %v1150, %v1146
    %v1339 = vpack.c.b16 %v1151, %v1147
    %v1340 = vpack.c.b16 %v1156, %v1152
    %v1341 = vpack.c.b16 %v1157, %v1153
    %v1342 = vpack.c.b16 %v1158, %v1154
    %v1343 = vpack.c.b16 %v1159, %v1155
    %v1344 = vpack.c.b16 %v1164, %v1160
    %v1345 = vpack.c.b16 %v1165, %v1161
    %v1346 = vpack.c.b16 %v1166, %v1162
    %v1347 = vpack.c.b16 %v1167, %v1163
    %v1348 = vpack.c.b16 %v1172, %v1168
    %v1349 = vpack.c.b16 %v1173, %v1169
    %v1350 = vpack.c.b16 %v1174, %v1170
    %v1351 = vpack.c.b16 %v1175, %v1171
    %v1352 = vpack.c.b16 %v1180, %v1176
    %v1353 = vpack.c.b16 %v1181, %v1177
    %v1354 = vpack.c.b16 %v1182, %v1178
    %v1355 = vpack.c.b16 %v1183, %v1179
    %v1356 = vpack.c.b16 %v1188, %v1184
    %v1357 = vpack.c.b16 %v1189, %v1185
    %v1358 = vpack.c.b16 %v1190, %v1186
    %v1359 = vpack.c.b16 %v1191, %v1187
    %v1360 = vpack.c.b16 %v1196, %v1192
    %v1361 = vpack.c.b16 %v1197, %v1193
    %v1362 = vpack.c.b16 %v1198, %v1194
    %v1363 = vpack.c.b16 %v1199, %v1195
    %v1364 = vpack.c.b16 %v1204, %v1200
    %v1365 = vpack.c.b16 %v1205, %v1201
    %v1366 = vpack.c.b16 %v1206, %v1202
    %v1367 = vpack.c.b16 %v1207, %v1203
    %v1368 = vpack.c.b16 %v1212, %v1208
    %v1369 = vpack.c.b16 %v1213, %v1209
    %v1370 = vpack.c.b16 %v1214, %v1210
    %v1371 = vpack.c.b16 %v1215, %v1211
    %v1372 = vpack.c.b16 %v1220, %v1216
    %v1373 = vpack.c.b16 %v1221, %v1217
    %v1374 = vpack.c.b16 %v1222, %v1218
    %v1375 = vpack.c.b16 %v1223, %v1219
    %v1376 = vpack.c.b16 %v1228, %v1224
    %v1377 = vpack.c.b16 %v1229, %v1225
    %v1378 = vpack.c.b16 %v1230, %v1226
    %v1379 = vpack.c.b16 %v1231, %v1227
    %v1380 = vpack.c.b16 %v1236, %v1232
    %v1381 = vpack.c.b16 %v1237, %v1233
    %v1382 = vpack.c.b16 %v1238, %v1234
    %v1383 = vpack.c.b16 %v1239, %v1235
    %v1384 = vpack.c.b16 %v1244, %v1240
    %v1385 = vpack.c.b16 %v1245, %v1241
    %v1386 = vpack.c.b16 %v1246, %v1242
    %v1387 = vpack.c.b16 %v1247, %v1243
    %v1388 = vpack.c.b16 %v1252, %v1248
    %v1389 = vpack.c.b16 %v1253, %v1249
    %v1390 = vpack.c.b16 %v1254, %v1250
    %v1391 = vpack.c.b16 %v1255, %v1251
    %v1392 = vpack.c.b16 %v1260, %v1256
    %v1393 = vpack.c.b16 %v1261, %v1257
    %v1394 = vpack.c.b16 %v1262, %v1258
    %v1395 = vpack.c.b16 %v1263, %v1259
    %v1396 = vpack.c.b16 %v1268, %v1264
    %v1397 = vpack.c.b16 %v1269, %v1265
    %v1398 = vpack.c.b16 %v1270, %v1266
    %v1399 = vpack.c.b16 %v1271, %v1267
    %v1400 = vpack.c.b16 %v1276, %v1272
    %v1401 = vpack.c.b16 %v1277, %v1273
    %v1402 = vpack.c.b16 %v1278, %v1274
    %v1403 = vpack.c.b16 %v1279, %v1275
    %v1404 = vpack.c.b16 %v1284, %v1280
    %v1405 = vpack.c.b16 %v1285, %v1281
    %v1406 = vpack.c.b16 %v1286, %v1282
    %v1407 = vpack.c.b16 %v1287, %v1283
    %v1408 = vpack.c.b16 %v1292, %v1288
    %v1409 = vpack.c.b16 %v1293, %v1289
    %v1410 = vpack.c.b16 %v1294, %v1290
    %v1411 = vpack.c.b16 %v1295, %v1291
    %v1412 = vpack.c.b16 %v1300, %v1296
    %v1413 = vpack.c.b16 %v1301, %v1297
    %v1414 = vpack.c.b16 %v1302, %v1298
    %v1415 = vpack.c.b16 %v1303, %v1299
    %v1416 = vpack.c.b16 %v1308, %v1304
    %v1417 = vpack.c.b16 %v1309, %v1305
    %v1418 = vpack.c.b16 %v1310, %v1306
    %v1419 = vpack.c.b16 %v1311, %v1307
    %v1420 = vpack.c.b16 %v1316, %v1312
    %v1421 = vpack.c.b16 %v1317, %v1313
    %v1422 = vpack.c.b16 %v1318, %v1314
    %v1423 = vpack.c.b16 %v1319, %v1315
    %v1424 = vpack.c.b16 %v1324, %v1320
    %v1425 = vpack.c.b16 %v1325, %v1321
    %v1426 = vpack.c.b16 %v1326, %v1322
    %v1427 = vpack.c.b16 %v1327, %v1323
    %v1428 = vpack.c.b16 %v1332, %v1328
    %v1429 = vpack.c.b16 %v1333, %v1329
    %v1430 = vpack.c.b16 %v1334, %v1330
    %v1431 = vpack.c.b16 %v1335, %v1331
    %1528 = vmatprep.subr.bf16.mxu0 %v1337
    %1529 = vmatpush1.bf16.msra.mxu0 %v1336
    %1530 = vmatprep.subr.bf16.mxu0 %v1341
    %1531 = vmatpush1.bf16.msra.mxu0 %v1340
    %1532 = vmatprep.subr.bf16.mxu0 %v1345
    %1533 = vmatpush1.bf16.msra.mxu0 %v1344
    %1534 = vmatprep.subr.bf16.mxu0 %v1349
    %1535 = vmatpush1.bf16.msra.mxu0 %v1348
    %1536 = vmatprep.subr.bf16.mxu0 %v1353
    %1537 = vmatpush1.bf16.msra.mxu0 %v1352
    %1538 = vmatprep.subr.bf16.mxu0 %v1357
    %1539 = vmatpush1.bf16.msra.mxu0 %v1356
    %1540 = vmatprep.subr.bf16.mxu0 %v1361
    %1541 = vmatpush1.bf16.msra.mxu0 %v1360
    %1542 = vmatprep.subr.bf16.mxu0 %v1365
    %1543 = vmatpush1.bf16.msra.mxu0 %v1364
    %1544 = vmatprep.subr.bf16.mxu0 %v1369
    %1545 = vmatpush1.bf16.msra.mxu0 %v1368
    %1546 = vmatprep.subr.bf16.mxu0 %v1373
    %1547 = vmatpush1.bf16.msra.mxu0 %v1372
    %1548 = vmatprep.subr.bf16.mxu0 %v1377
    %1549 = vmatpush1.bf16.msra.mxu0 %v1376
    %1550 = vmatprep.subr.bf16.mxu0 %v1381
    %1551 = vmatpush1.bf16.msra.mxu0 %v1380
    %1552 = vmatprep.subr.bf16.mxu0 %v1385
    %1553 = vmatpush1.bf16.msra.mxu0 %v1384
    %1554 = vmatprep.subr.bf16.mxu0 %v1389
    %1555 = vmatpush1.bf16.msra.mxu0 %v1388
    %1556 = vmatprep.subr.bf16.mxu0 %v1393
    %1557 = vmatpush1.bf16.msra.mxu0 %v1392
    %1558 = vmatprep.subr.bf16.mxu0 %v1397
    %1559 = vmatpush1.bf16.msra.mxu0 %v1396
    %1560 = vmatprep.mubr.bf16.mxu0 %v928
    %1561 = vmatmul.mubr.bf16.gmra.mrb[0].mxu0 %v927
    %v1562 = vpop.f32.mrb[0].mxu0
    %v1563 = vadd.f32 %v1031, %v1562
    %v1564 = vpop.f32.mrb[0].mxu0
    %v1565 = vadd.f32 %v1035, %v1564
    %v1566 = vpop.f32.mrb[0].mxu0
    %v1567 = vpop.f32.mrb[0].mxu0
    %1568 = vdwg.mxu0
    %1569 = vmatprep.subr.bf16.mxu0 %v1401
    %1570 = vmatpush1.bf16.msra.mxu0 %v1400
    %1571 = vmatprep.subr.bf16.mxu0 %v1405
    %1572 = vmatpush1.bf16.msra.mxu0 %v1404
    %1573 = vmatprep.subr.bf16.mxu0 %v1409
    %1574 = vmatpush1.bf16.msra.mxu0 %v1408
    %1575 = vmatprep.subr.bf16.mxu0 %v1413
    %1576 = vmatpush1.bf16.msra.mxu0 %v1412
    %1577 = vmatprep.subr.bf16.mxu0 %v1417
    %1578 = vmatpush1.bf16.msra.mxu0 %v1416
    %1579 = vmatprep.subr.bf16.mxu0 %v1421
    %1580 = vmatpush1.bf16.msra.mxu0 %v1420
    %1581 = vmatprep.subr.bf16.mxu0 %v1425
    %1582 = vmatpush1.bf16.msra.mxu0 %v1424
    %1583 = vmatprep.subr.bf16.mxu0 %v1429
    %1584 = vmatpush1.bf16.msra.mxu0 %v1428
    %1585 = vmatprep.subr.bf16.mxu0 0
    %1586 = vmatpush1.bf16.msra.mxu0 0
    %1587 = vmatprep.subr.bf16.mxu0 0
    %1588 = vmatpush1.bf16.msra.mxu0 0
    %1589 = vmatprep.subr.bf16.mxu0 0
    %1590 = vmatpush1.bf16.msra.mxu0 0
    %1591 = vmatprep.subr.bf16.mxu0 0
    %1592 = vmatpush1.bf16.msra.mxu0 0
    %1593 = vmatprep.subr.bf16.mxu0 0
    %1594 = vmatpush1.bf16.msra.mxu0 0
    %1595 = vmatprep.subr.bf16.mxu0 0
    %1596 = vmatpush1.bf16.msra.mxu0 0
    %1597 = vmatprep.subr.bf16.mxu0 0
    %1598 = vmatpush1.bf16.msra.mxu0 0
    %1599 = vmatprep.subr.bf16.mxu0 0
    %1600 = vmatpush1.bf16.msra.mxu0 0
    %1601 = vmatprep.mubr.bf16.mxu0 0
    %1602 = vmatmul.mubr.bf16.gmra.mrb[0].mxu0 %v929
    %v1603 = vpop.f32.mrb[0].mxu0
    %v1604 = vadd.f32 %v1563, %v1603
    %v1605 = vpop.f32.mrb[0].mxu0
    %v1606 = vadd.f32 %v1565, %v1605
    %v1607 = vpop.f32.mrb[0].mxu0
    %v1608 = vpop.f32.mrb[0].mxu0
    %1609 = vdwg.mxu0
    %1610 = vmatprep.subr.bf16.mxu0 %v1339
    %1611 = vmatpush1.bf16.msra.mxu0 %v1338
    %1612 = vmatprep.subr.bf16.mxu0 %v1343
    %1613 = vmatpush1.bf16.msra.mxu0 %v1342
    %1614 = vmatprep.subr.bf16.mxu0 %v1347
    %1615 = vmatpush1.bf16.msra.mxu0 %v1346
    %1616 = vmatprep.subr.bf16.mxu0 %v1351
    %1617 = vmatpush1.bf16.msra.mxu0 %v1350
    %1618 = vmatprep.subr.bf16.mxu0 %v1355
    %1619 = vmatpush1.bf16.msra.mxu0 %v1354
    %1620 = vmatprep.subr.bf16.mxu0 %v1359
    %1621 = vmatpush1.bf16.msra.mxu0 %v1358
    %1622 = vmatprep.subr.bf16.mxu0 %v1363
    %1623 = vmatpush1.bf16.msra.mxu0 %v1362
    %1624 = vmatprep.subr.bf16.mxu0 %v1367
    %1625 = vmatpush1.bf16.msra.mxu0 %v1366
    %1626 = vmatprep.subr.bf16.mxu0 %v1371
    %1627 = vmatpush1.bf16.msra.mxu0 %v1370
    %1628 = vmatprep.subr.bf16.mxu0 %v1375
    %1629 = vmatpush1.bf16.msra.mxu0 %v1374
    %1630 = vmatprep.subr.bf16.mxu0 %v1379
    %1631 = vmatpush1.bf16.msra.mxu0 %v1378
    %1632 = vmatprep.subr.bf16.mxu0 %v1383
    %1633 = vmatpush1.bf16.msra.mxu0 %v1382
    %1634 = vmatprep.subr.bf16.mxu0 %v1387
    %1635 = vmatpush1.bf16.msra.mxu0 %v1386
    %1636 = vmatprep.subr.bf16.mxu0 %v1391
    %1637 = vmatpush1.bf16.msra.mxu0 %v1390
    %1638 = vmatprep.subr.bf16.mxu0 %v1395
    %1639 = vmatpush1.bf16.msra.mxu0 %v1394
    %1640 = vmatprep.subr.bf16.mxu0 %v1399
    %1641 = vmatpush1.bf16.msra.mxu0 %v1398
    %1642 = vmatprep.mubr.bf16.mxu0 %v928
    %1643 = vmatmul.mubr.bf16.gmra.mrb[0].mxu0 %v927
    %v1644 = vpop.f32.mrb[0].mxu0
    %v1645 = vadd.f32 %v1039, %v1644
    %v1646 = vpop.f32.mrb[0].mxu0
    %v1647 = vadd.f32 %v1043, %v1646
    %v1648 = vpop.f32.mrb[0].mxu0
    %v1649 = vpop.f32.mrb[0].mxu0
    %1650 = vdwg.mxu0
    %1651 = vmatprep.subr.bf16.mxu0 %v1403
    %1652 = vmatpush1.bf16.msra.mxu0 %v1402
    %1653 = vmatprep.subr.bf16.mxu0 %v1407
    %1654 = vmatpush1.bf16.msra.mxu0 %v1406
    %1655 = vmatprep.subr.bf16.mxu0 %v1411
    %1656 = vmatpush1.bf16.msra.mxu0 %v1410
    %1657 = vmatprep.subr.bf16.mxu0 %v1415
    %1658 = vmatpush1.bf16.msra.mxu0 %v1414
    %1659 = vmatprep.subr.bf16.mxu0 %v1419
    %1660 = vmatpush1.bf16.msra.mxu0 %v1418
    %1661 = vmatprep.subr.bf16.mxu0 %v1423
    %1662 = vmatpush1.bf16.msra.mxu0 %v1422
    %1663 = vmatprep.subr.bf16.mxu0 %v1427
    %1664 = vmatpush1.bf16.msra.mxu0 %v1426
    %1665 = vmatprep.subr.bf16.mxu0 %v1431
    %1666 = vmatpush1.bf16.msra.mxu0 %v1430
    %1667 = vmatprep.subr.bf16.mxu0 0
    %1668 = vmatpush1.bf16.msra.mxu0 0
    %1669 = vmatprep.subr.bf16.mxu0 0
    %1670 = vmatpush1.bf16.msra.mxu0 0
    %1671 = vmatprep.subr.bf16.mxu0 0
    %1672 = vmatpush1.bf16.msra.mxu0 0
    %1673 = vmatprep.subr.bf16.mxu0 0
    %1674 = vmatpush1.bf16.msra.mxu0 0
    %1675 = vmatprep.subr.bf16.mxu0 0
    %1676 = vmatpush1.bf16.msra.mxu0 0
    %1677 = vmatprep.subr.bf16.mxu0 0
    %1678 = vmatpush1.bf16.msra.mxu0 0
    %1679 = vmatprep.subr.bf16.mxu0 0
    %1680 = vmatpush1.bf16.msra.mxu0 0
    %1681 = vmatprep.subr.bf16.mxu0 0
    %1682 = vmatpush1.bf16.msra.mxu0 0
    %1683 = vmatprep.mubr.bf16.mxu0 0
    %1684 = vmatmul.mubr.bf16.gmra.mrb[0].mxu0 %v929
    %v1685 = vpop.f32.mrb[0].mxu0
    %v1686 = vadd.f32 %v1645, %v1685
    %v1687 = vpop.f32.mrb[0].mxu0
    %v1688 = vadd.f32 %v1647, %v1687
    %v1689 = vpop.f32.mrb[0].mxu0
    %v1690 = vpop.f32.mrb[0].mxu0
    %1691 = vdwg.mxu0
    %v1692 = vmax.f32 %v1604, 0.0
    %v1693 = vmax.f32 %v1606, 0.0
    %v1694 = vmax.f32 %v1686, 0.0
    %v1695 = vmax.f32 %v1688, 0.0
    %v1696 = vpack.c.bf16 %v1692, %v1692
    %v1697 = vpack.c.bf16 %v1693, %v1693
    %v1698 = vpack.c.bf16 %v1694, %v1694
    %v1699 = vpack.c.bf16 %v1695, %v1695
    %v1700 = vld [vmem:[#allocation9] sm:$0xf]
    %v1701 = vld [vmem:[#allocation9 + $0x4] sm:$0xf]
    %v1702 = vld [vmem:[#allocation9 + $0x8] sm:$0xf]
    %v1703 = vld [vmem:[#allocation9 + $0xc] sm:$0xf]
    %v1704 = vld [vmem:[#allocation9 + $0x10] sm:$0xf]
    %v1705 = vld [vmem:[#allocation9 + $0x14] sm:$0xf]
    %v1706 = vld [vmem:[#allocation9 + $0x18] sm:$0xf]
    %v1707 = vld [vmem:[#allocation9 + $0x1c] sm:$0xf]
    %v1708 = vld [vmem:[#allocation9 + $0x20] sm:$0xf]
    %v1709 = vld [vmem:[#allocation9 + $0x24] sm:$0xf]
    %v1710 = vld [vmem:[#allocation9 + $0x28] sm:$0xf]
    %v1711 = vld [vmem:[#allocation9 + $0x2c] sm:$0xf]
    %v1712 = vld [vmem:[#allocation9 + $0x30] sm:$0xf]
    %v1713 = vld [vmem:[#allocation9 + $0x34] sm:$0xf]
    %v1714 = vld [vmem:[#allocation9 + $0x38] sm:$0xf]
    %v1715 = vld [vmem:[#allocation9 + $0x3c] sm:$0xf]
    %v1716 = vld [vmem:[#allocation9 + $0x40] sm:$0xf]
    %v1717 = vld [vmem:[#allocation9 + $0x44] sm:$0xf]
    %v1718 = vld [vmem:[#allocation9 + $0x48] sm:$0xf]
    %v1719 = vld [vmem:[#allocation9 + $0x4c] sm:$0xf]
    %v1720 = vld [vmem:[#allocation9 + $0x50] sm:$0xf]
    %v1721 = vld [vmem:[#allocation9 + $0x54] sm:$0xf]
    %v1722 = vld [vmem:[#allocation9 + $0x58] sm:$0xf]
    %v1723 = vld [vmem:[#allocation9 + $0x5c] sm:$0xf]
    %v1724 = vld [vmem:[#allocation9 + $0x60] sm:$0xf]
    %v1725 = vld [vmem:[#allocation9 + $0x64] sm:$0xf]
    %v1726 = vld [vmem:[#allocation9 + $0x68] sm:$0xf]
    %v1727 = vld [vmem:[#allocation9 + $0x6c] sm:$0xf]
    %v1728 = vld [vmem:[#allocation9 + $0x70] sm:$0xf]
    %v1729 = vld [vmem:[#allocation9 + $0x74] sm:$0xf]
    %v1730 = vld [vmem:[#allocation9 + $0x78] sm:$0xf]
    %v1731 = vld [vmem:[#allocation9 + $0x7c] sm:$0xf]
    %v1732 = vld [vmem:[#allocation9 + $0x80] sm:$0xf]
    %v1733 = vld [vmem:[#allocation9 + $0x84] sm:$0xf]
    %v1734 = vld [vmem:[#allocation9 + $0x88] sm:$0xf]
    %v1735 = vld [vmem:[#allocation9 + $0x8c] sm:$0xf]
    %v1736 = vld [vmem:[#allocation9 + $0x90] sm:$0xf]
    %v1737 = vld [vmem:[#allocation9 + $0x94] sm:$0xf]
    %v1738 = vld [vmem:[#allocation9 + $0x98] sm:$0xf]
    %v1739 = vld [vmem:[#allocation9 + $0x9c] sm:$0xf]
    %v1740 = vld [vmem:[#allocation9 + $0xa0] sm:$0xf]
    %v1741 = vld [vmem:[#allocation9 + $0xa4] sm:$0xf]
    %v1742 = vld [vmem:[#allocation9 + $0xa8] sm:$0xf]
    %v1743 = vld [vmem:[#allocation9 + $0xac] sm:$0xf]
    %v1744 = vld [vmem:[#allocation9 + $0xb0] sm:$0xf]
    %v1745 = vld [vmem:[#allocation9 + $0xb4] sm:$0xf]
    %v1746 = vld [vmem:[#allocation9 + $0xb8] sm:$0xf]
    %v1747 = vld [vmem:[#allocation9 + $0xbc] sm:$0xf]
    %v1748 = vld [vmem:[#allocation9 + $0xc0] sm:$0xf]
    %v1749 = vld [vmem:[#allocation9 + $0xc4] sm:$0xf]
    %v1750 = vld [vmem:[#allocation9 + $0xc8] sm:$0xf]
    %v1751 = vld [vmem:[#allocation9 + $0xcc] sm:$0xf]
    %v1752 = vld [vmem:[#allocation9 + $0xd0] sm:$0xf]
    %v1753 = vld [vmem:[#allocation9 + $0xd4] sm:$0xf]
    %v1754 = vld [vmem:[#allocation9 + $0xd8] sm:$0xf]
    %v1755 = vld [vmem:[#allocation9 + $0xdc] sm:$0xf]
    %v1756 = vld [vmem:[#allocation9 + $0xe0] sm:$0xf]
    %v1757 = vld [vmem:[#allocation9 + $0xe4] sm:$0xf]
    %v1758 = vld [vmem:[#allocation9 + $0xe8] sm:$0xf]
    %v1759 = vld [vmem:[#allocation9 + $0xec] sm:$0xf]
    %v1760 = vld [vmem:[#allocation9 + $0xf0] sm:$0xf]
    %v1761 = vld [vmem:[#allocation9 + $0xf4] sm:$0xf]
    %v1762 = vld [vmem:[#allocation9 + $0xf8] sm:$0xf]
    %v1763 = vld [vmem:[#allocation9 + $0xfc] sm:$0xf]
    %v1764 = vld [vmem:[%s5] sm:$0x1]
    %v1766 = vlaneseq
    %v1767 = vshrl.u32 %v1766, 7
    %v1768 = vsub.s32 0, %v1767
    %v1769 = vrot.slane %v1764, %v1768
    %v1835 = vunpack.c.l.b16 %v1700
    %v1836 = vunpack.c.l.b16 %v1701
    %v1837 = vunpack.c.l.b16 %v1702
    %v1838 = vunpack.c.l.b16 %v1703
    %v1839 = vunpack.c.l.b16 %v1704
    %v1840 = vunpack.c.l.b16 %v1705
    %v1841 = vunpack.c.l.b16 %v1706
    %v1842 = vunpack.c.l.b16 %v1707
    %v1843 = vunpack.c.l.b16 %v1708
    %v1844 = vunpack.c.l.b16 %v1709
    %v1845 = vunpack.c.l.b16 %v1710
    %v1846 = vunpack.c.l.b16 %v1711
    %v1847 = vunpack.c.l.b16 %v1712
    %v1848 = vunpack.c.l.b16 %v1713
    %v1849 = vunpack.c.l.b16 %v1714
    %v1850 = vunpack.c.l.b16 %v1715
    %v1851 = vunpack.c.l.b16 %v1716
    %v1852 = vunpack.c.l.b16 %v1717
    %v1853 = vunpack.c.l.b16 %v1718
    %v1854 = vunpack.c.l.b16 %v1719
    %v1855 = vunpack.c.l.b16 %v1720
    %v1856 = vunpack.c.l.b16 %v1721
    %v1857 = vunpack.c.l.b16 %v1722
    %v1858 = vunpack.c.l.b16 %v1723
    %v1859 = vunpack.c.l.b16 %v1724
    %v1860 = vunpack.c.l.b16 %v1725
    %v1861 = vunpack.c.l.b16 %v1726
    %v1862 = vunpack.c.l.b16 %v1727
    %v1863 = vunpack.c.l.b16 %v1728
    %v1864 = vunpack.c.l.b16 %v1729
    %v1865 = vunpack.c.l.b16 %v1730
    %v1866 = vunpack.c.l.b16 %v1731
    %v1867 = vunpack.c.l.b16 %v1732
    %v1868 = vunpack.c.l.b16 %v1733
    %v1869 = vunpack.c.l.b16 %v1734
    %v1870 = vunpack.c.l.b16 %v1735
    %v1871 = vunpack.c.l.b16 %v1736
    %v1872 = vunpack.c.l.b16 %v1737
    %v1873 = vunpack.c.l.b16 %v1738
    %v1874 = vunpack.c.l.b16 %v1739
    %v1875 = vunpack.c.l.b16 %v1740
    %v1876 = vunpack.c.l.b16 %v1741
    %v1877 = vunpack.c.l.b16 %v1742
    %v1878 = vunpack.c.l.b16 %v1743
    %v1879 = vunpack.c.l.b16 %v1744
    %v1880 = vunpack.c.l.b16 %v1745
    %v1881 = vunpack.c.l.b16 %v1746
    %v1882 = vunpack.c.l.b16 %v1747
    %v1883 = vunpack.c.l.b16 %v1748
    %v1884 = vunpack.c.l.b16 %v1749
    %v1885 = vunpack.c.l.b16 %v1750
    %v1886 = vunpack.c.l.b16 %v1751
    %v1887 = vunpack.c.l.b16 %v1752
    %v1888 = vunpack.c.l.b16 %v1753
    %v1889 = vunpack.c.l.b16 %v1754
    %v1890 = vunpack.c.l.b16 %v1755
    %v1891 = vunpack.c.l.b16 %v1756
    %v1892 = vunpack.c.l.b16 %v1757
    %v1893 = vunpack.c.l.b16 %v1758
    %v1894 = vunpack.c.l.b16 %v1759
    %v1895 = vunpack.c.l.b16 %v1760
    %v1896 = vunpack.c.l.b16 %v1761
    %v1897 = vunpack.c.l.b16 %v1762
    %v1898 = vunpack.c.l.b16 %v1763
    %v1899 = vpack.c.b16 %v1836, %v1835
    %v1900 = vpack.c.b16 %v1838, %v1837
    %v1901 = vpack.c.b16 %v1840, %v1839
    %v1902 = vpack.c.b16 %v1842, %v1841
    %v1903 = vpack.c.b16 %v1844, %v1843
    %v1904 = vpack.c.b16 %v1846, %v1845
    %v1905 = vpack.c.b16 %v1848, %v1847
    %v1906 = vpack.c.b16 %v1850, %v1849
    %v1907 = vpack.c.b16 %v1852, %v1851
    %v1908 = vpack.c.b16 %v1854, %v1853
    %v1909 = vpack.c.b16 %v1856, %v1855
    %v1910 = vpack.c.b16 %v1858, %v1857
    %v1911 = vpack.c.b16 %v1860, %v1859
    %v1912 = vpack.c.b16 %v1862, %v1861
    %v1913 = vpack.c.b16 %v1864, %v1863
    %v1914 = vpack.c.b16 %v1866, %v1865
    %v1915 = vpack.c.b16 %v1868, %v1867
    %v1916 = vpack.c.b16 %v1870, %v1869
    %v1917 = vpack.c.b16 %v1872, %v1871
    %v1918 = vpack.c.b16 %v1874, %v1873
    %v1919 = vpack.c.b16 %v1876, %v1875
    %v1920 = vpack.c.b16 %v1878, %v1877
    %v1921 = vpack.c.b16 %v1880, %v1879
    %v1922 = vpack.c.b16 %v1882, %v1881
    %v1923 = vpack.c.b16 %v1884, %v1883
    %v1924 = vpack.c.b16 %v1886, %v1885
    %v1925 = vpack.c.b16 %v1888, %v1887
    %v1926 = vpack.c.b16 %v1890, %v1889
    %v1927 = vpack.c.b16 %v1892, %v1891
    %v1928 = vpack.c.b16 %v1894, %v1893
    %v1929 = vpack.c.b16 %v1896, %v1895
    %v1930 = vpack.c.b16 %v1898, %v1897
    %1963 = vmatprep.subr.bf16.mxu0 0
    %1964 = vmatpush1.bf16.msra.mxu0 %v1899
    %1965 = vmatprep.subr.bf16.mxu0 0
    %1966 = vmatpush1.bf16.msra.mxu0 %v1900
    %1967 = vmatprep.subr.bf16.mxu0 0
    %1968 = vmatpush1.bf16.msra.mxu0 %v1901
    %1969 = vmatprep.subr.bf16.mxu0 0
    %1970 = vmatpush1.bf16.msra.mxu0 %v1902
    %1971 = vmatprep.subr.bf16.mxu0 0
    %1972 = vmatpush1.bf16.msra.mxu0 %v1903
    %1973 = vmatprep.subr.bf16.mxu0 0
    %1974 = vmatpush1.bf16.msra.mxu0 %v1904
    %1975 = vmatprep.subr.bf16.mxu0 0
    %1976 = vmatpush1.bf16.msra.mxu0 %v1905
    %1977 = vmatprep.subr.bf16.mxu0 0
    %1978 = vmatpush1.bf16.msra.mxu0 %v1906
    %1979 = vmatprep.subr.bf16.mxu0 0
    %1980 = vmatpush1.bf16.msra.mxu0 %v1907
    %1981 = vmatprep.subr.bf16.mxu0 0
    %1982 = vmatpush1.bf16.msra.mxu0 %v1908
    %1983 = vmatprep.subr.bf16.mxu0 0
    %1984 = vmatpush1.bf16.msra.mxu0 %v1909
    %1985 = vmatprep.subr.bf16.mxu0 0
    %1986 = vmatpush1.bf16.msra.mxu0 %v1910
    %1987 = vmatprep.subr.bf16.mxu0 0
    %1988 = vmatpush1.bf16.msra.mxu0 %v1911
    %1989 = vmatprep.subr.bf16.mxu0 0
    %1990 = vmatpush1.bf16.msra.mxu0 %v1912
    %1991 = vmatprep.subr.bf16.mxu0 0
    %1992 = vmatpush1.bf16.msra.mxu0 %v1913
    %1993 = vmatprep.subr.bf16.mxu0 0
    %1994 = vmatpush1.bf16.msra.mxu0 %v1914
    %1995 = vmatprep.mubr.bf16.mxu0 %v1697
    %1996 = vmatmul.mubr.bf16.gmra.mrb[0].mxu0 %v1696
    %v1997 = vpop.f32.mrb[0].mxu0
    %v1998 = vadd.f32 %v1769, %v1997
    %v1999 = vpop.f32.mrb[0].mxu0
    %v2000 = vpop.f32.mrb[0].mxu0
    %v2001 = vpop.f32.mrb[0].mxu0
    %2002 = vdwg.mxu0
    %2003 = vmatprep.subr.bf16.mxu0 0
    %2004 = vmatpush1.bf16.msra.mxu0 %v1915
    %2005 = vmatprep.subr.bf16.mxu0 0
    %2006 = vmatpush1.bf16.msra.mxu0 %v1916
    %2007 = vmatprep.subr.bf16.mxu0 0
    %2008 = vmatpush1.bf16.msra.mxu0 %v1917
    %2009 = vmatprep.subr.bf16.mxu0 0
    %2010 = vmatpush1.bf16.msra.mxu0 %v1918
    %2011 = vmatprep.subr.bf16.mxu0 0
    %2012 = vmatpush1.bf16.msra.mxu0 %v1919
    %2013 = vmatprep.subr.bf16.mxu0 0
    %2014 = vmatpush1.bf16.msra.mxu0 %v1920
    %2015 = vmatprep.subr.bf16.mxu0 0
    %2016 = vmatpush1.bf16.msra.mxu0 %v1921
    %2017 = vmatprep.subr.bf16.mxu0 0
    %2018 = vmatpush1.bf16.msra.mxu0 %v1922
    %2019 = vmatprep.subr.bf16.mxu0 0
    %2020 = vmatpush1.bf16.msra.mxu0 %v1923
    %2021 = vmatprep.subr.bf16.mxu0 0
    %2022 = vmatpush1.bf16.msra.mxu0 %v1924
    %2023 = vmatprep.subr.bf16.mxu0 0
    %2024 = vmatpush1.bf16.msra.mxu0 %v1925
    %2025 = vmatprep.subr.bf16.mxu0 0
    %2026 = vmatpush1.bf16.msra.mxu0 %v1926
    %2027 = vmatprep.subr.bf16.mxu0 0
    %2028 = vmatpush1.bf16.msra.mxu0 %v1927
    %2029 = vmatprep.subr.bf16.mxu0 0
    %2030 = vmatpush1.bf16.msra.mxu0 %v1928
    %2031 = vmatprep.subr.bf16.mxu0 0
    %2032 = vmatpush1.bf16.msra.mxu0 %v1929
    %2033 = vmatprep.subr.bf16.mxu0 0
    %2034 = vmatpush1.bf16.msra.mxu0 %v1930
    %2035 = vmatprep.mubr.bf16.mxu0 %v1699
    %2036 = vmatmul.mubr.bf16.gmra.mrb[0].mxu0 %v1698
    %v2037 = vpop.f32.mrb[0].mxu0
    %v2038 = vadd.f32 %v1998, %v2037
    %v2039 = vpop.f32.mrb[0].mxu0
    %v2040 = vpop.f32.mrb[0].mxu0
    %v2041 = vpop.f32.mrb[0].mxu0
    %2042 = vdwg.mxu0
    %2043 = vst [vmem:[#allocation11] sm:$0xff] %v2038
    // Predicated region
    $region226: #{tpu_custom_call.1} parent=1 // pred_check
      _
    $region227: #{tpu_custom_call.1} parent=1 // pred_check_branch
      %2045 = sbr.rel (0) target = $region229
    $region228: #{tpu_custom_call.1} parent=1 // pred_region
      %s2047 = ssub.s32 128, 128
      %2048 = vsyncadd [#allocation8], %s2047
      %s2050 = sshll.u32 [#allocation11], 4
      %s2051 = int_to_ptr.vmem [resolvable:$true] %s2050
      %2053 = dma.vmem_to_hbm [thread:$0]  %s2051, 128, %s6, [#allocation8]
    $region229: #{tpu_custom_call.1} parent=1 // pred_fallthru
      _
    // Predicated region
    $region230: #{tpu_custom_call.1} parent=1 // pred_check
      _
    $region231: #{tpu_custom_call.1} parent=1 // pred_check_branch
      %2055 = sbr.rel (0) target = $region233
    $region232: #{tpu_custom_call.1} parent=1 // pred_region
      %2056 = dma.done [#allocation8], 128
    $region233: #{tpu_custom_call.1} parent=1 // pred_fallthru
      _
    %2057 = vsyncpa [#allocation7], 1
    %2058 = vsyncpa [#allocation10], 1
    %2059 = vsyncpa [#allocation8], 1
  %2060 = vsyncmov [#allocation3]
  %s2061 = vpop.sfrf %2060
  %p2062 = scmp.eq.s32.totalorder %s2061, 0
  %p2063 = pneg %p2062
  %2065 = shalt.err (%p2063)
  %s2066 = scalar_lea.sflag [#allocation3], 1
  %2067 = vsyncmov %s2066
  %s2068 = vpop.sfrf %2067
  %p2069 = scmp.eq.s32.totalorder %s2068, 0
  %p2070 = pneg %p2069
  %2072 = shalt.err (%p2070)

</llo_original>
